<compile_context>
chip_gen: v6e
topology: v6e:2x2x1
jax: 0.10.0
libtpu: 0.0.40
codegen_flags: <defaults>
</compile_context>

<pallas_src>
import numpy as np
import jax
import jax.numpy as jnp
from jax.experimental import pallas as pl
from jax.experimental.pallas import tpu as pltpu

# MXU-native matmul input dtype; set to jnp.float32 for maximum accuracy.
MAT_DTYPE = jnp.bfloat16


# =============================================================================
# Pallas kernel
# =============================================================================
def _lcmm(m_ref, ar, ai):
    """(Mr + i*Mi) @ (ar + i*ai) via Gauss 3-matmul; m_ref planes = [Mr, Mi, Mr+Mi].

    ar/ai are f32; they (and the ar+ai combo) are cast to MAT_DTYPE immediately
    before the dots so the MXU runs native bf16 passes with f32 accumulation.
    """
    arm = ar.astype(MAT_DTYPE)
    aim = ai.astype(MAT_DTYPE)
    sm = (ar + ai).astype(MAT_DTYPE)
    t1 = jnp.dot(m_ref[0], arm, preferred_element_type=jnp.float32)
    t2 = jnp.dot(m_ref[1], aim, preferred_element_type=jnp.float32)
    t3 = jnp.dot(m_ref[2], sm, preferred_element_type=jnp.float32)
    return t1 - t2, t3 - t1 - t2


def _rcmm(ar, ai, m_ref):
    """(ar + i*ai) @ (Mr + i*Mi) via Gauss 3-matmul; m_ref planes = [Mr, Mi, Mr+Mi]."""
    arm = ar.astype(MAT_DTYPE)
    aim = ai.astype(MAT_DTYPE)
    sm = (ar + ai).astype(MAT_DTYPE)
    t1 = jnp.dot(arm, m_ref[0], preferred_element_type=jnp.float32)
    t2 = jnp.dot(aim, m_ref[1], preferred_element_type=jnp.float32)
    t3 = jnp.dot(sm, m_ref[2], preferred_element_type=jnp.float32)
    return t1 - t2, t3 - t1 - t2


def _cmul(ar, ai, b_ref):
    """Elementwise complex multiply by a packed [real, imag] constant plane (f32)."""
    br, bi = b_ref[0], b_ref[1]
    return ar * br - ai * bi, ar * bi + ai * br


def _sas_kernel(x_ref, ck_ref, q1_ref, q2_ref,
                fh_ref, fw_ref, ih_ref, iw_ref, sh_ref, sw_ref,
                out_ref):
    xr, xi = x_ref[0], x_ref[1]

    # fft2(x) == F_H @ x @ F_W^T   (right matrices pre-transposed on host)
    tr, ti = _lcmm(fh_ref, xr, xi)
    tr, ti = _rcmm(tr, ti, fw_ref)
    # * comp_kernel (pre-ifftshifted on host)
    tr, ti = _cmul(tr, ti, ck_ref)
    # ifft2
    tr, ti = _lcmm(ih_ref, tr, ti)
    tr, ti = _rcmm(tr, ti, iw_ref)
    # * Q1
    tr, ti = _cmul(tr, ti, q1_ref)
    # shifted_fft = fftshift(fft2(ifftshift(.))), with the output crop (and its
    # lane/sublane padding) folded into the last matmul pair.
    tr, ti = _lcmm(sh_ref, tr, ti)
    tr, ti = _rcmm(tr, ti, sw_ref)
    # * Q2 (already cropped + zero-padded to (Hout, Wout))
    outr, outi = _cmul(tr, ti, q2_ref)

    out_ref[0] = outr
    out_ref[1] = outi


def _run_pallas(xs, ck, q1, q2, fh, fw, ih, iw, sh, sw, *, single_buffer_consts):
    B, C, _, Ha, Wa = xs.shape
    Hout, Wout = q2.shape[-2:]

    # Constants whose block never changes (matrices) or only changes with the
    # slow grid axis c (ck/q1/q2) don't benefit from double buffering.
    const_mode = dict(pipeline_mode=pl.Buffered(1)) if single_buffer_consts else {}

    # Grid is (C, B): c slow, b fast -> per-channel ck/Q1/Q2 stay resident for
    # B consecutive steps (their HBM traffic drops by a factor of B).
    field_spec = pl.BlockSpec((None, None, 2, Ha, Wa), lambda c, b: (b, c, 0, 0, 0))
    plane_spec = pl.BlockSpec((None, 2, Ha, Wa), lambda c, b: (c, 0, 0, 0), **const_mode)
    q2_spec = pl.BlockSpec((None, 2, Hout, Wout), lambda c, b: (c, 0, 0, 0), **const_mode)

    def mat_spec(m):
        return pl.BlockSpec(m.shape, lambda c, b: (0, 0, 0), **const_mode)

    in_specs = [field_spec, plane_spec, plane_spec, q2_spec,
                mat_spec(fh), mat_spec(fw), mat_spec(ih),
                mat_spec(iw), mat_spec(sh), mat_spec(sw)]
    out_spec = pl.BlockSpec((None, None, 2, Hout, Wout), lambda c, b: (b, c, 0, 0, 0))

    # --- cost estimate (18 real matmuls per grid step) -----------------------
    mm_flops = 2 * 3 * (Ha * Ha * Wa          # F_H
                        + Ha * Wa * Wa        # F_W^T
                        + Ha * Ha * Wa        # I_H
                        + Ha * Wa * Wa        # I_W^T
                        + Hout * Ha * Wa      # S_H (crop folded in)
                        + Hout * Wa * Wout)   # S_W^T (crop folded in)
    mat_bytes = sum(int(m.nbytes) for m in (fh, fw, ih, iw, sh, sw))
    out_bytes = B * C * 2 * Hout * Wout * 4
    cost = pl.CostEstimate(
        flops=int(B * C * mm_flops),
        transcendentals=0,
        bytes_accessed=int(xs.nbytes + out_bytes + int(ck.nbytes) + int(q1.nbytes)
                           + int(q2.nbytes) + mat_bytes))

    # --- VMEM budget ----------------------------------------------------------
    buf_mult = 1 if single_buffer_consts else 2
    plane_block_bytes = 2 * (2 * Ha * Wa * 4) + 2 * Hout * Wout * 4   # ck,q1,q2 blocks (f32)
    need = (buf_mult * (mat_bytes + plane_block_bytes)
            + 2 * (2 * Ha * Wa * 4)              # input block, double-buffered
            + 2 * (2 * Hout * Wout * 4)          # output block, double-buffered
            + 10 * Ha * Wa * 4)                  # live f32/bf16 intermediates headroom
    vmem_limit = int(min(max(int(need * 1.5), 32 * 2 ** 20), 100 * 2 ** 20))

    fn = pl.pallas_call(
        _sas_kernel,
        out_shape=jax.ShapeDtypeStruct((B, C, 2, Hout, Wout), jnp.float32),
        grid_spec=pltpu.PrefetchScalarGridSpec(
            num_scalar_prefetch=0,
            grid=(C, B),
            in_specs=in_specs,
            out_specs=out_spec),
        compiler_params=pltpu.CompilerParams(
            dimension_semantics=("parallel", "parallel"),
            vmem_limit_bytes=vmem_limit),
        cost_estimate=cost,
    )
    return fn(xs, ck, q1, q2, fh, fw, ih, iw, sh, sw)


# =============================================================================
# Host-side constants (grids, padding, propagation kernels) -- plain numpy
# =============================================================================
def _round_up(x, m):
    return ((x + m - 1) // m) * m


def _set_spatial_grid(H, W, dx, dy):
    x = (np.arange(H) - H // 2) * dx
    y = (np.arange(W) - W // 2) * dy
    gx, gy = np.meshgrid(x, y, indexing="ij")
    return gx, gy


def _set_freq_grid(H, W, dx, dy):
    fx = np.fft.fftshift(np.fft.fftfreq(H, d=dx))
    fy = np.fft.fftshift(np.fft.fftfreq(W, d=dy))
    gfx, gfy = np.meshgrid(fx, fy, indexing="ij")
    return gfx, gfy


def _physical_constants(lamb0, dx, dy, H, W, z, n):
    """Propagation constants at the original scalable-ASM pad size Hp=2H-1, Wp=2W-1."""
    Hp, Wp = 2 * H - 1, 2 * W - 1
    pt, pleft = (Hp - H) // 2, (Wp - W) // 2
    newLx, newLy = Hp * dx, Wp * dy
    lamb = lamb0 / n
    k = 2 * np.pi / lamb

    def zbound(L, N):
        a = np.sqrt(L ** 2 / (8 * L ** 2 + N ** 2 * lamb ** 2))
        return (-4 * L * np.sqrt(8 * L ** 2 / N ** 2 + lamb ** 2) * a
                / (lamb * (-1 + 2 * np.sqrt(2) * a)))
    assert np.all(z <= zbound(H * dx, H)) and np.all(z <= zbound(W * dy, W)), \
        "z exceeds scalable-ASM distance limit"

    # ASM compensation kernel on the padded frequency grid
    gfx, gfy = _set_freq_grid(Hp, Wp, dx, dy)
    lfx = lamb[:, None, None] * gfx[None]
    lfy = lamb[:, None, None] * gfy[None]
    asm_phase = np.sqrt(1.0 - lfx ** 2 - lfy ** 2)
    fresnel_phase = 1.0 - lfx ** 2 / 2 - lfy ** 2 / 2
    comp_kernel = np.fft.ifftshift(
        np.exp(1j * k[:, None, None] * z * (asm_phase - fresnel_phase)),
        axes=(-2, -1))

    # Fourier-representation Fresnel (single-FFT) factors on the padded spatial grid
    gx, gy = _set_spatial_grid(Hp, Wp, dx, dy)
    dest_dx = lamb * z / newLx
    dest_dy = lamb * z / newLy
    mag_x = dest_dx / (newLx / Hp)
    mag_y = dest_dy / (newLy / Wp)
    Q1 = np.exp(1j * k[:, None, None] / (2 * z) * (gx[None] ** 2 + gy[None] ** 2))
    Q2_front = np.exp(1j * k[:, None, None] * z) / (1j * (lamb0[:, None, None] / n) * z)
    dgx = gx[None] * mag_x[:, None, None]
    dgy = gy[None] * mag_y[:, None, None]
    Q2 = Q2_front * np.exp(1j * k[:, None, None] / (2 * z) * (dgx ** 2 + dgy ** 2))

    return dict(Hp=Hp, Wp=Wp, pt=pt, pleft=pleft,
                comp_kernel=comp_kernel, Q1=Q1, Q2=Q2,
                dest_dx=dest_dx, dest_dy=dest_dy)


def _gauss_pack(m):
    """Stack [Re, Im, Re+Im] planes (MAT_DTYPE) for the Gauss 3-matmul complex product."""
    mr, mi = np.real(m), np.imag(m)
    return jnp.asarray(np.stack([mr, mi, mr + mi], axis=0), MAT_DTYPE)


def _ri_pack(m, axis):
    """Stack [Re, Im] along `axis` as f32."""
    return jnp.asarray(np.stack([np.real(m), np.imag(m)], axis=axis), jnp.float32)


def _embed(m, shape):
    out = np.zeros(shape, dtype=m.dtype)
    out[tuple(slice(0, s) for s in m.shape)] = m
    return out


def _kernel_constants(consts, H, W, sublane=8, lane=128):
    """Tile-aligned, zero-embedded kernel constants (exact physics preserved)."""
    Hp, Wp = consts["Hp"], consts["Wp"]
    pt, pleft = consts["pt"], consts["pleft"]
    Ha, Wa = _round_up(Hp, sublane), _round_up(Wp, lane)
    # Lane/sublane-padded output crop: unmasked stores + full MXU columns on
    # the final matmul; the extra rows/cols are exactly zero and sliced off
    # in the wrapper.
    Hout, Wout = _round_up(H, sublane), _round_up(W, lane)

    eyeH, eyeW = np.eye(Hp), np.eye(Wp)
    F_H = np.fft.fft(eyeH, axis=0)            # F_H @ x  == fft  along rows
    F_Wt = np.fft.fft(eyeW, axis=0).T         # x @ F_Wt == fft  along cols
    I_H = np.fft.ifft(eyeH, axis=0)
    I_Wt = np.fft.ifft(eyeW, axis=0).T
    # shifted_fft := fftshift(fft2(ifftshift(x)))  (assumed convention)
    S_H = np.fft.fftshift(np.fft.fft(np.fft.ifftshift(eyeH, axes=0), axis=0), axes=0)
    S_Wt = np.fft.fftshift(np.fft.fft(np.fft.ifftshift(eyeW, axes=0), axis=0), axes=0).T
    # Fold the double_unpadnd crop into the last matmul pair.
    S_Hc = S_H[pt:pt + H, :]                  # (H,  Hp)
    S_Wtc = S_Wt[:, pleft:pleft + W]          # (Wp, W)

    C = consts["comp_kernel"].shape[0]
    ck_e = np.zeros((C, Ha, Wa), np.complex128)
    ck_e[:, :Hp, :Wp] = consts["comp_kernel"]
    q1_e = np.zeros((C, Ha, Wa), np.complex128)
    q1_e[:, :Hp, :Wp] = consts["Q1"]
    q2_e = np.zeros((C, Hout, Wout), np.complex128)
    q2_e[:, :H, :W] = consts["Q2"][:, pt:pt + H, pleft:pleft + W]

    mats = dict(
        fh=_gauss_pack(_embed(F_H, (Ha, Ha))),
        fw=_gauss_pack(_embed(F_Wt, (Wa, Wa))),
        ih=_gauss_pack(_embed(I_H, (Ha, Ha))),
        iw=_gauss_pack(_embed(I_Wt, (Wa, Wa))),
        sh=_gauss_pack(_embed(S_Hc, (Hout, Ha))),
        sw=_gauss_pack(_embed(S_Wtc, (Wa, Wout))),
    )
    planes = dict(ck=_ri_pack(ck_e, 1), q1=_ri_pack(q1_e, 1), q2=_ri_pack(q2_e, 1))
    return Ha, Wa, Hout, Wout, mats, planes


def sas_propagation(field, lamb0, dx, dy, z, ref_idx):
    """JAX/Pallas equivalent of SASPropagation.forward.

    field : complex ndarray (B, C, H, W)
    Returns (output_field (B, C, H, W) complex64, (dest_dx, dest_dy) each (C,)).
    """
    B, C, H, W = field.shape
    consts = _physical_constants(lamb0, dx, dy, H, W, z, ref_idx)
    Ha, Wa, Hout, Wout, mats, planes = _kernel_constants(consts, H, W)

    # double_padnd: centre the field inside the Hp x Wp physical plane, which
    # itself sits in the top-left of the tile-aligned Ha x Wa compute plane.
    pt, pleft = consts["pt"], consts["pleft"]
    xpad = np.zeros((B, C, Ha, Wa), np.complex128)
    xpad[..., pt:pt + H, pleft:pleft + W] = np.asarray(field)
    xs = _ri_pack(xpad, 2)                                # (B, C, 2, Ha, Wa)

    args = (xs, planes["ck"], planes["q1"], planes["q2"],
            mats["fh"], mats["fw"], mats["ih"], mats["iw"],
            mats["sh"], mats["sw"])
    try:
        out = _run_pallas(*args, single_buffer_consts=True)
    except Exception:
        # pl.Buffered(1) not accepted on this jax version / config:
        # fall back to default double buffering (correctness identical).
        out = _run_pallas(*args, single_buffer_consts=False)

    out = out[..., :H, :W]                                # drop lane/sublane padding
    out_c = out[:, :, 0].astype(jnp.complex64) + 1j * out[:, :, 1].astype(jnp.complex64)
    return out_c, (consts["dest_dx"], consts["dest_dy"])


# =============================================================================
# Pure numpy reference of scalable_ASM (for verification)
# =============================================================================
def _reference(field, lamb0, dx, dy, z, ref_idx):
    B, C, H, W = field.shape
    consts = _physical_constants(lamb0, dx, dy, H, W, z, ref_idx)
    Hp, Wp, pt, pleft = consts["Hp"], consts["Wp"], consts["pt"], consts["pleft"]
    fpad = np.zeros((B, C, Hp, Wp), np.complex128)
    fpad[..., pt:pt + H, pleft:pleft + W] = np.asarray(field, np.complex128)
    f = np.fft.ifft2(np.fft.fft2(fpad) * consts["comp_kernel"][None])
    shifted = np.fft.fftshift(
        np.fft.fft2(np.fft.ifftshift(f * consts["Q1"][None], axes=(-2, -1))),
        axes=(-2, -1))
    out = consts["Q2"][None] * shifted
    return out[..., pt:pt + H, pleft:pleft + W]


# =============================================================================
if __name__ == "__main__":
    # Small, physically sensible configuration
    B, C, H, W = 2, 3, 16, 16
    dx = dy = 1.0e-6                                   # 1 um pixels
    lamb0 = np.array([450e-9, 550e-9, 650e-9])         # per-channel wavelengths
    z = 1.0e-3                                         # 1 mm propagation
    ref_idx = 1.0

    key = jax.random.PRNGKey(0)
    kr, ki = jax.random.split(key)
    field_re = np.asarray(jax.random.normal(kr, (B, C, H, W), jnp.float32))
    field_im = np.asarray(jax.random.normal(ki, (B, C, H, W), jnp.float32))
    field = (field_re + 1j * field_im).astype(np.complex64)

    out, (dest_dx, dest_dy) = sas_propagation(field, lamb0, dx, dy, z, ref_idx)
    out = jax.block_until_ready(out)

    ref = _reference(field, lamb0, dx, dy, z, ref_idx)
    rel_err = np.linalg.norm(np.asarray(out) - ref) / np.linalg.norm(ref)
    # bf16 MXU inputs (f32 accumulation) across 6 chained dense-DFT matmuls give
    # ~1e-2 relative error; a wrong shift/pad/crop convention would be O(1),
    # so 4e-2 still catches real bugs while tolerating bf16 rounding.
    assert rel_err < 4e-2, f"relative error too large: {rel_err}"

    # TODO(synk): shifted_fft / grid / padding helpers were not provided by the
    # source repo; standard optics conventions (centered grids, fftshifted fft,
    # symmetric 2N-1 zero padding) were assumed, identically in kernel + reference.
    print("KERNEL_OK")
</pallas_src>

<mosaic_0001>
module attributes {stable_mosaic.version = 11 : i64} {
  func.func @_sas_kernel(%arg0: i32, %arg1: i32, %arg2: memref<1x1x2x32x128xf32, #tpu.memory_space<vmem>>, %arg3: memref<1x2x32x128xf32, #tpu.memory_space<vmem>>, %arg4: memref<1x2x32x128xf32, #tpu.memory_space<vmem>>, %arg5: memref<1x2x16x128xf32, #tpu.memory_space<vmem>>, %arg6: memref<3x32x32xbf16, #tpu.memory_space<vmem>>, %arg7: memref<3x128x128xbf16, #tpu.memory_space<vmem>>, %arg8: memref<3x32x32xbf16, #tpu.memory_space<vmem>>, %arg9: memref<3x128x128xbf16, #tpu.memory_space<vmem>>, %arg10: memref<3x16x32xbf16, #tpu.memory_space<vmem>>, %arg11: memref<3x128x128xbf16, #tpu.memory_space<vmem>>, %arg12: memref<1x1x2x16x128xf32, #tpu.memory_space<vmem>>) attributes {dimension_semantics = [#tpu.dimension_semantics<parallel>, #tpu.dimension_semantics<parallel>], iteration_bounds = array<i64: 3, 2>, scalar_prefetch = 0 : i64, scratch_operands = 0 : i64, tpu.core_type = #tpu.core_type<tc>, window_params = [{transform_indices = @transform_0, window_bounds = array<i64: 1, 1, 2, 32, 128>}, {pipeline_mode = #tpu.pipeline_mode<synchronous>, transform_indices = @transform_1, window_bounds = array<i64: 1, 2, 32, 128>}, {pipeline_mode = #tpu.pipeline_mode<synchronous>, transform_indices = @transform_2, window_bounds = array<i64: 1, 2, 32, 128>}, {pipeline_mode = #tpu.pipeline_mode<synchronous>, transform_indices = @transform_3, window_bounds = array<i64: 1, 2, 16, 128>}, {pipeline_mode = #tpu.pipeline_mode<synchronous>, transform_indices = @transform_4, window_bounds = array<i64: 3, 32, 32>}, {pipeline_mode = #tpu.pipeline_mode<synchronous>, transform_indices = @transform_5, window_bounds = array<i64: 3, 128, 128>}, {pipeline_mode = #tpu.pipeline_mode<synchronous>, transform_indices = @transform_6, window_bounds = array<i64: 3, 32, 32>}, {pipeline_mode = #tpu.pipeline_mode<synchronous>, transform_indices = @transform_7, window_bounds = array<i64: 3, 128, 128>}, {pipeline_mode = #tpu.pipeline_mode<synchronous>, transform_indices = @transform_8, window_bounds = array<i64: 3, 16, 32>}, {pipeline_mode = #tpu.pipeline_mode<synchronous>, transform_indices = @transform_9, window_bounds = array<i64: 3, 128, 128>}, {transform_indices = @transform_10, window_bounds = array<i64: 1, 1, 2, 16, 128>}]} {
    %c0 = arith.constant 0 : index
    %c0_0 = arith.constant 0 : index
    %c0_1 = arith.constant 0 : index
    %c0_2 = arith.constant 0 : index
    %c0_3 = arith.constant 0 : index
    %0 = vector.load %arg2[%c0, %c0_0, %c0_1, %c0_2, %c0_3] : memref<1x1x2x32x128xf32, #tpu.memory_space<vmem>>, vector<1x1x1x32x128xf32>
    %1 = vector.shape_cast %0 : vector<1x1x1x32x128xf32> to vector<32x128xf32>
    %c0_4 = arith.constant 0 : index
    %c0_5 = arith.constant 0 : index
    %c1 = arith.constant 1 : index
    %c0_6 = arith.constant 0 : index
    %c0_7 = arith.constant 0 : index
    %2 = vector.load %arg2[%c0_4, %c0_5, %c1, %c0_6, %c0_7] : memref<1x1x2x32x128xf32, #tpu.memory_space<vmem>>, vector<1x1x1x32x128xf32>
    %3 = vector.shape_cast %2 : vector<1x1x1x32x128xf32> to vector<32x128xf32>
    %4 = arith.truncf %1 : vector<32x128xf32> to vector<32x128xbf16>
    %5 = arith.truncf %3 : vector<32x128xf32> to vector<32x128xbf16>
    %6 = arith.addf %1, %3 : vector<32x128xf32>
    %7 = arith.truncf %6 : vector<32x128xf32> to vector<32x128xbf16>
    %c0_8 = arith.constant 0 : index
    %c0_9 = arith.constant 0 : index
    %c0_10 = arith.constant 0 : index
    %8 = vector.load %arg6[%c0_8, %c0_9, %c0_10] : memref<3x32x32xbf16, #tpu.memory_space<vmem>>, vector<1x32x32xbf16>
    %9 = vector.shape_cast %8 : vector<1x32x32xbf16> to vector<32x32xbf16>
    %cst = arith.constant dense<0.000000e+00> : vector<32x128xf32>
    %10 = tpu.matmul %9, %4, %cst {dimension_numbers = #tpu.dot_dimension_numbers<[1], [0], [0], [1], [0, 0, 1, 1], [], []>} : vector<32x32xbf16>, vector<32x128xbf16>, vector<32x128xf32> -> vector<32x128xf32>
    %c1_11 = arith.constant 1 : index
    %c0_12 = arith.constant 0 : index
    %c0_13 = arith.constant 0 : index
    %11 = vector.load %arg6[%c1_11, %c0_12, %c0_13] : memref<3x32x32xbf16, #tpu.memory_space<vmem>>, vector<1x32x32xbf16>
    %12 = vector.shape_cast %11 : vector<1x32x32xbf16> to vector<32x32xbf16>
    %cst_14 = arith.constant dense<0.000000e+00> : vector<32x128xf32>
    %13 = tpu.matmul %12, %5, %cst_14 {dimension_numbers = #tpu.dot_dimension_numbers<[1], [0], [0], [1], [0, 0, 1, 1], [], []>} : vector<32x32xbf16>, vector<32x128xbf16>, vector<32x128xf32> -> vector<32x128xf32>
    %c2 = arith.constant 2 : index
    %c0_15 = arith.constant 0 : index
    %c0_16 = arith.constant 0 : index
    %14 = vector.load %arg6[%c2, %c0_15, %c0_16] : memref<3x32x32xbf16, #tpu.memory_space<vmem>>, vector<1x32x32xbf16>
    %15 = vector.shape_cast %14 : vector<1x32x32xbf16> to vector<32x32xbf16>
    %cst_17 = arith.constant dense<0.000000e+00> : vector<32x128xf32>
    %16 = tpu.matmul %15, %7, %cst_17 {dimension_numbers = #tpu.dot_dimension_numbers<[1], [0], [0], [1], [0, 0, 1, 1], [], []>} : vector<32x32xbf16>, vector<32x128xbf16>, vector<32x128xf32> -> vector<32x128xf32>
    %17 = arith.subf %10, %13 : vector<32x128xf32>
    %18 = arith.subf %16, %10 : vector<32x128xf32>
    %19 = arith.subf %18, %13 : vector<32x128xf32>
    %20 = arith.truncf %17 : vector<32x128xf32> to vector<32x128xbf16>
    %21 = arith.truncf %19 : vector<32x128xf32> to vector<32x128xbf16>
    %22 = arith.addf %17, %19 : vector<32x128xf32>
    %23 = arith.truncf %22 : vector<32x128xf32> to vector<32x128xbf16>
    %c0_18 = arith.constant 0 : index
    %c0_19 = arith.constant 0 : index
    %c0_20 = arith.constant 0 : index
    %24 = vector.load %arg7[%c0_18, %c0_19, %c0_20] : memref<3x128x128xbf16, #tpu.memory_space<vmem>>, vector<1x128x128xbf16>
    %25 = vector.shape_cast %24 : vector<1x128x128xbf16> to vector<128x128xbf16>
    %cst_21 = arith.constant dense<0.000000e+00> : vector<32x128xf32>
    %26 = tpu.matmul %20, %25, %cst_21 {dimension_numbers = #tpu.dot_dimension_numbers<[1], [0], [0], [1], [0, 0, 1, 1], [], []>} : vector<32x128xbf16>, vector<128x128xbf16>, vector<32x128xf32> -> vector<32x128xf32>
    %c1_22 = arith.constant 1 : index
    %c0_23 = arith.constant 0 : index
    %c0_24 = arith.constant 0 : index
    %27 = vector.load %arg7[%c1_22, %c0_23, %c0_24] : memref<3x128x128xbf16, #tpu.memory_space<vmem>>, vector<1x128x128xbf16>
    %28 = vector.shape_cast %27 : vector<1x128x128xbf16> to vector<128x128xbf16>
    %cst_25 = arith.constant dense<0.000000e+00> : vector<32x128xf32>
    %29 = tpu.matmul %21, %28, %cst_25 {dimension_numbers = #tpu.dot_dimension_numbers<[1], [0], [0], [1], [0, 0, 1, 1], [], []>} : vector<32x128xbf16>, vector<128x128xbf16>, vector<32x128xf32> -> vector<32x128xf32>
    %c2_26 = arith.constant 2 : index
    %c0_27 = arith.constant 0 : index
    %c0_28 = arith.constant 0 : index
    %30 = vector.load %arg7[%c2_26, %c0_27, %c0_28] : memref<3x128x128xbf16, #tpu.memory_space<vmem>>, vector<1x128x128xbf16>
    %31 = vector.shape_cast %30 : vector<1x128x128xbf16> to vector<128x128xbf16>
    %cst_29 = arith.constant dense<0.000000e+00> : vector<32x128xf32>
    %32 = tpu.matmul %23, %31, %cst_29 {dimension_numbers = #tpu.dot_dimension_numbers<[1], [0], [0], [1], [0, 0, 1, 1], [], []>} : vector<32x128xbf16>, vector<128x128xbf16>, vector<32x128xf32> -> vector<32x128xf32>
    %33 = arith.subf %26, %29 : vector<32x128xf32>
    %34 = arith.subf %32, %26 : vector<32x128xf32>
    %35 = arith.subf %34, %29 : vector<32x128xf32>
    %c0_30 = arith.constant 0 : index
    %c0_31 = arith.constant 0 : index
    %c0_32 = arith.constant 0 : index
    %c0_33 = arith.constant 0 : index
    %36 = vector.load %arg3[%c0_30, %c0_31, %c0_32, %c0_33] : memref<1x2x32x128xf32, #tpu.memory_space<vmem>>, vector<1x1x32x128xf32>
    %37 = vector.shape_cast %36 : vector<1x1x32x128xf32> to vector<32x128xf32>
    %c0_34 = arith.constant 0 : index
    %c1_35 = arith.constant 1 : index
    %c0_36 = arith.constant 0 : index
    %c0_37 = arith.constant 0 : index
    %38 = vector.load %arg3[%c0_34, %c1_35, %c0_36, %c0_37] : memref<1x2x32x128xf32, #tpu.memory_space<vmem>>, vector<1x1x32x128xf32>
    %39 = vector.shape_cast %38 : vector<1x1x32x128xf32> to vector<32x128xf32>
    %40 = arith.mulf %33, %37 : vector<32x128xf32>
    %41 = arith.mulf %35, %39 : vector<32x128xf32>
    %42 = arith.subf %40, %41 : vector<32x128xf32>
    %43 = arith.mulf %33, %39 : vector<32x128xf32>
    %44 = arith.mulf %35, %37 : vector<32x128xf32>
    %45 = arith.addf %43, %44 : vector<32x128xf32>
    %46 = arith.truncf %42 : vector<32x128xf32> to vector<32x128xbf16>
    %47 = arith.truncf %45 : vector<32x128xf32> to vector<32x128xbf16>
    %48 = arith.addf %42, %45 : vector<32x128xf32>
    %49 = arith.truncf %48 : vector<32x128xf32> to vector<32x128xbf16>
    %c0_38 = arith.constant 0 : index
    %c0_39 = arith.constant 0 : index
    %c0_40 = arith.constant 0 : index
    %50 = vector.load %arg8[%c0_38, %c0_39, %c0_40] : memref<3x32x32xbf16, #tpu.memory_space<vmem>>, vector<1x32x32xbf16>
    %51 = vector.shape_cast %50 : vector<1x32x32xbf16> to vector<32x32xbf16>
    %cst_41 = arith.constant dense<0.000000e+00> : vector<32x128xf32>
    %52 = tpu.matmul %51, %46, %cst_41 {dimension_numbers = #tpu.dot_dimension_numbers<[1], [0], [0], [1], [0, 0, 1, 1], [], []>} : vector<32x32xbf16>, vector<32x128xbf16>, vector<32x128xf32> -> vector<32x128xf32>
    %c1_42 = arith.constant 1 : index
    %c0_43 = arith.constant 0 : index
    %c0_44 = arith.constant 0 : index
    %53 = vector.load %arg8[%c1_42, %c0_43, %c0_44] : memref<3x32x32xbf16, #tpu.memory_space<vmem>>, vector<1x32x32xbf16>
    %54 = vector.shape_cast %53 : vector<1x32x32xbf16> to vector<32x32xbf16>
    %cst_45 = arith.constant dense<0.000000e+00> : vector<32x128xf32>
    %55 = tpu.matmul %54, %47, %cst_45 {dimension_numbers = #tpu.dot_dimension_numbers<[1], [0], [0], [1], [0, 0, 1, 1], [], []>} : vector<32x32xbf16>, vector<32x128xbf16>, vector<32x128xf32> -> vector<32x128xf32>
    %c2_46 = arith.constant 2 : index
    %c0_47 = arith.constant 0 : index
    %c0_48 = arith.constant 0 : index
    %56 = vector.load %arg8[%c2_46, %c0_47, %c0_48] : memref<3x32x32xbf16, #tpu.memory_space<vmem>>, vector<1x32x32xbf16>
    %57 = vector.shape_cast %56 : vector<1x32x32xbf16> to vector<32x32xbf16>
    %cst_49 = arith.constant dense<0.000000e+00> : vector<32x128xf32>
    %58 = tpu.matmul %57, %49, %cst_49 {dimension_numbers = #tpu.dot_dimension_numbers<[1], [0], [0], [1], [0, 0, 1, 1], [], []>} : vector<32x32xbf16>, vector<32x128xbf16>, vector<32x128xf32> -> vector<32x128xf32>
    %59 = arith.subf %52, %55 : vector<32x128xf32>
    %60 = arith.subf %58, %52 : vector<32x128xf32>
    %61 = arith.subf %60, %55 : vector<32x128xf32>
    %62 = arith.truncf %59 : vector<32x128xf32> to vector<32x128xbf16>
    %63 = arith.truncf %61 : vector<32x128xf32> to vector<32x128xbf16>
    %64 = arith.addf %59, %61 : vector<32x128xf32>
    %65 = arith.truncf %64 : vector<32x128xf32> to vector<32x128xbf16>
    %c0_50 = arith.constant 0 : index
    %c0_51 = arith.constant 0 : index
    %c0_52 = arith.constant 0 : index
    %66 = vector.load %arg9[%c0_50, %c0_51, %c0_52] : memref<3x128x128xbf16, #tpu.memory_space<vmem>>, vector<1x128x128xbf16>
    %67 = vector.shape_cast %66 : vector<1x128x128xbf16> to vector<128x128xbf16>
    %cst_53 = arith.constant dense<0.000000e+00> : vector<32x128xf32>
    %68 = tpu.matmul %62, %67, %cst_53 {dimension_numbers = #tpu.dot_dimension_numbers<[1], [0], [0], [1], [0, 0, 1, 1], [], []>} : vector<32x128xbf16>, vector<128x128xbf16>, vector<32x128xf32> -> vector<32x128xf32>
    %c1_54 = arith.constant 1 : index
    %c0_55 = arith.constant 0 : index
    %c0_56 = arith.constant 0 : index
    %69 = vector.load %arg9[%c1_54, %c0_55, %c0_56] : memref<3x128x128xbf16, #tpu.memory_space<vmem>>, vector<1x128x128xbf16>
    %70 = vector.shape_cast %69 : vector<1x128x128xbf16> to vector<128x128xbf16>
    %cst_57 = arith.constant dense<0.000000e+00> : vector<32x128xf32>
    %71 = tpu.matmul %63, %70, %cst_57 {dimension_numbers = #tpu.dot_dimension_numbers<[1], [0], [0], [1], [0, 0, 1, 1], [], []>} : vector<32x128xbf16>, vector<128x128xbf16>, vector<32x128xf32> -> vector<32x128xf32>
    %c2_58 = arith.constant 2 : index
    %c0_59 = arith.constant 0 : index
    %c0_60 = arith.constant 0 : index
    %72 = vector.load %arg9[%c2_58, %c0_59, %c0_60] : memref<3x128x128xbf16, #tpu.memory_space<vmem>>, vector<1x128x128xbf16>
    %73 = vector.shape_cast %72 : vector<1x128x128xbf16> to vector<128x128xbf16>
    %cst_61 = arith.constant dense<0.000000e+00> : vector<32x128xf32>
    %74 = tpu.matmul %65, %73, %cst_61 {dimension_numbers = #tpu.dot_dimension_numbers<[1], [0], [0], [1], [0, 0, 1, 1], [], []>} : vector<32x128xbf16>, vector<128x128xbf16>, vector<32x128xf32> -> vector<32x128xf32>
    %75 = arith.subf %68, %71 : vector<32x128xf32>
    %76 = arith.subf %74, %68 : vector<32x128xf32>
    %77 = arith.subf %76, %71 : vector<32x128xf32>
    %c0_62 = arith.constant 0 : index
    %c0_63 = arith.constant 0 : index
    %c0_64 = arith.constant 0 : index
    %c0_65 = arith.constant 0 : index
    %78 = vector.load %arg4[%c0_62, %c0_63, %c0_64, %c0_65] : memref<1x2x32x128xf32, #tpu.memory_space<vmem>>, vector<1x1x32x128xf32>
    %79 = vector.shape_cast %78 : vector<1x1x32x128xf32> to vector<32x128xf32>
    %c0_66 = arith.constant 0 : index
    %c1_67 = arith.constant 1 : index
    %c0_68 = arith.constant 0 : index
    %c0_69 = arith.constant 0 : index
    %80 = vector.load %arg4[%c0_66, %c1_67, %c0_68, %c0_69] : memref<1x2x32x128xf32, #tpu.memory_space<vmem>>, vector<1x1x32x128xf32>
    %81 = vector.shape_cast %80 : vector<1x1x32x128xf32> to vector<32x128xf32>
    %82 = arith.mulf %75, %79 : vector<32x128xf32>
    %83 = arith.mulf %77, %81 : vector<32x128xf32>
    %84 = arith.subf %82, %83 : vector<32x128xf32>
    %85 = arith.mulf %75, %81 : vector<32x128xf32>
    %86 = arith.mulf %77, %79 : vector<32x128xf32>
    %87 = arith.addf %85, %86 : vector<32x128xf32>
    %88 = arith.truncf %84 : vector<32x128xf32> to vector<32x128xbf16>
    %89 = arith.truncf %87 : vector<32x128xf32> to vector<32x128xbf16>
    %90 = arith.addf %84, %87 : vector<32x128xf32>
    %91 = arith.truncf %90 : vector<32x128xf32> to vector<32x128xbf16>
    %c0_70 = arith.constant 0 : index
    %c0_71 = arith.constant 0 : index
    %c0_72 = arith.constant 0 : index
    %92 = vector.load %arg10[%c0_70, %c0_71, %c0_72] : memref<3x16x32xbf16, #tpu.memory_space<vmem>>, vector<1x16x32xbf16>
    %93 = vector.shape_cast %92 : vector<1x16x32xbf16> to vector<16x32xbf16>
    %cst_73 = arith.constant dense<0.000000e+00> : vector<16x128xf32>
    %94 = tpu.matmul %93, %88, %cst_73 {dimension_numbers = #tpu.dot_dimension_numbers<[1], [0], [0], [1], [0, 0, 1, 1], [], []>} : vector<16x32xbf16>, vector<32x128xbf16>, vector<16x128xf32> -> vector<16x128xf32>
    %c1_74 = arith.constant 1 : index
    %c0_75 = arith.constant 0 : index
    %c0_76 = arith.constant 0 : index
    %95 = vector.load %arg10[%c1_74, %c0_75, %c0_76] : memref<3x16x32xbf16, #tpu.memory_space<vmem>>, vector<1x16x32xbf16>
    %96 = vector.shape_cast %95 : vector<1x16x32xbf16> to vector<16x32xbf16>
    %cst_77 = arith.constant dense<0.000000e+00> : vector<16x128xf32>
    %97 = tpu.matmul %96, %89, %cst_77 {dimension_numbers = #tpu.dot_dimension_numbers<[1], [0], [0], [1], [0, 0, 1, 1], [], []>} : vector<16x32xbf16>, vector<32x128xbf16>, vector<16x128xf32> -> vector<16x128xf32>
    %c2_78 = arith.constant 2 : index
    %c0_79 = arith.constant 0 : index
    %c0_80 = arith.constant 0 : index
    %98 = vector.load %arg10[%c2_78, %c0_79, %c0_80] : memref<3x16x32xbf16, #tpu.memory_space<vmem>>, vector<1x16x32xbf16>
    %99 = vector.shape_cast %98 : vector<1x16x32xbf16> to vector<16x32xbf16>
    %cst_81 = arith.constant dense<0.000000e+00> : vector<16x128xf32>
    %100 = tpu.matmul %99, %91, %cst_81 {dimension_numbers = #tpu.dot_dimension_numbers<[1], [0], [0], [1], [0, 0, 1, 1], [], []>} : vector<16x32xbf16>, vector<32x128xbf16>, vector<16x128xf32> -> vector<16x128xf32>
    %101 = arith.subf %94, %97 : vector<16x128xf32>
    %102 = arith.subf %100, %94 : vector<16x128xf32>
    %103 = arith.subf %102, %97 : vector<16x128xf32>
    %104 = arith.truncf %101 : vector<16x128xf32> to vector<16x128xbf16>
    %105 = arith.truncf %103 : vector<16x128xf32> to vector<16x128xbf16>
    %106 = arith.addf %101, %103 : vector<16x128xf32>
    %107 = arith.truncf %106 : vector<16x128xf32> to vector<16x128xbf16>
    %c0_82 = arith.constant 0 : index
    %c0_83 = arith.constant 0 : index
    %c0_84 = arith.constant 0 : index
    %108 = vector.load %arg11[%c0_82, %c0_83, %c0_84] : memref<3x128x128xbf16, #tpu.memory_space<vmem>>, vector<1x128x128xbf16>
    %109 = vector.shape_cast %108 : vector<1x128x128xbf16> to vector<128x128xbf16>
    %cst_85 = arith.constant dense<0.000000e+00> : vector<16x128xf32>
    %110 = tpu.matmul %104, %109, %cst_85 {dimension_numbers = #tpu.dot_dimension_numbers<[1], [0], [0], [1], [0, 0, 1, 1], [], []>} : vector<16x128xbf16>, vector<128x128xbf16>, vector<16x128xf32> -> vector<16x128xf32>
    %c1_86 = arith.constant 1 : index
    %c0_87 = arith.constant 0 : index
    %c0_88 = arith.constant 0 : index
    %111 = vector.load %arg11[%c1_86, %c0_87, %c0_88] : memref<3x128x128xbf16, #tpu.memory_space<vmem>>, vector<1x128x128xbf16>
    %112 = vector.shape_cast %111 : vector<1x128x128xbf16> to vector<128x128xbf16>
    %cst_89 = arith.constant dense<0.000000e+00> : vector<16x128xf32>
    %113 = tpu.matmul %105, %112, %cst_89 {dimension_numbers = #tpu.dot_dimension_numbers<[1], [0], [0], [1], [0, 0, 1, 1], [], []>} : vector<16x128xbf16>, vector<128x128xbf16>, vector<16x128xf32> -> vector<16x128xf32>
    %c2_90 = arith.constant 2 : index
    %c0_91 = arith.constant 0 : index
    %c0_92 = arith.constant 0 : index
    %114 = vector.load %arg11[%c2_90, %c0_91, %c0_92] : memref<3x128x128xbf16, #tpu.memory_space<vmem>>, vector<1x128x128xbf16>
    %115 = vector.shape_cast %114 : vector<1x128x128xbf16> to vector<128x128xbf16>
    %cst_93 = arith.constant dense<0.000000e+00> : vector<16x128xf32>
    %116 = tpu.matmul %107, %115, %cst_93 {dimension_numbers = #tpu.dot_dimension_numbers<[1], [0], [0], [1], [0, 0, 1, 1], [], []>} : vector<16x128xbf16>, vector<128x128xbf16>, vector<16x128xf32> -> vector<16x128xf32>
    %117 = arith.subf %110, %113 : vector<16x128xf32>
    %118 = arith.subf %116, %110 : vector<16x128xf32>
    %119 = arith.subf %118, %113 : vector<16x128xf32>
    %c0_94 = arith.constant 0 : index
    %c0_95 = arith.constant 0 : index
    %c0_96 = arith.constant 0 : index
    %c0_97 = arith.constant 0 : index
    %120 = vector.load %arg5[%c0_94, %c0_95, %c0_96, %c0_97] : memref<1x2x16x128xf32, #tpu.memory_space<vmem>>, vector<1x1x16x128xf32>
    %121 = vector.shape_cast %120 : vector<1x1x16x128xf32> to vector<16x128xf32>
    %c0_98 = arith.constant 0 : index
    %c1_99 = arith.constant 1 : index
    %c0_100 = arith.constant 0 : index
    %c0_101 = arith.constant 0 : index
    %122 = vector.load %arg5[%c0_98, %c1_99, %c0_100, %c0_101] : memref<1x2x16x128xf32, #tpu.memory_space<vmem>>, vector<1x1x16x128xf32>
    %123 = vector.shape_cast %122 : vector<1x1x16x128xf32> to vector<16x128xf32>
    %124 = arith.mulf %117, %121 : vector<16x128xf32>
    %125 = arith.mulf %119, %123 : vector<16x128xf32>
    %126 = arith.subf %124, %125 : vector<16x128xf32>
    %127 = arith.mulf %117, %123 : vector<16x128xf32>
    %128 = arith.mulf %119, %121 : vector<16x128xf32>
    %129 = arith.addf %127, %128 : vector<16x128xf32>
    %c0_102 = arith.constant 0 : index
    %c0_103 = arith.constant 0 : index
    %c0_104 = arith.constant 0 : index
    %c0_105 = arith.constant 0 : index
    %c0_106 = arith.constant 0 : index
    %130 = vector.load %arg12[%c0_102, %c0_103, %c0_104, %c0_105, %c0_106] : memref<1x1x2x16x128xf32, #tpu.memory_space<vmem>>, vector<1x1x1x16x128xf32>
    %131 = vector.shape_cast %130 : vector<1x1x1x16x128xf32> to vector<16x128xf32>
    %132 = vector.shape_cast %126 : vector<16x128xf32> to vector<1x1x1x16x128xf32>
    tpu.vector_store %arg12[%c0_102, %c0_103, %c0_104, %c0_105, %c0_106], %132 {strides = array<i32>} : memref<1x1x2x16x128xf32, #tpu.memory_space<vmem>>, vector<1x1x1x16x128xf32>,
    %c0_107 = arith.constant 0 : index
    %c0_108 = arith.constant 0 : index
    %c1_109 = arith.constant 1 : index
    %c0_110 = arith.constant 0 : index
    %c0_111 = arith.constant 0 : index
    %133 = vector.load %arg12[%c0_107, %c0_108, %c1_109, %c0_110, %c0_111] : memref<1x1x2x16x128xf32, #tpu.memory_space<vmem>>, vector<1x1x1x16x128xf32>
    %134 = vector.shape_cast %133 : vector<1x1x1x16x128xf32> to vector<16x128xf32>
    %135 = vector.shape_cast %129 : vector<16x128xf32> to vector<1x1x1x16x128xf32>
    tpu.vector_store %arg12[%c0_107, %c0_108, %c1_109, %c0_110, %c0_111], %135 {strides = array<i32>} : memref<1x1x2x16x128xf32, #tpu.memory_space<vmem>>, vector<1x1x1x16x128xf32>,
    return
  }
  func.func @transform_0(%arg0: i32, %arg1: i32) -> (i32, i32, i32, i32, i32) {
    %c0_i32 = arith.constant 0 : i32
    %c0_i32_0 = arith.constant 0 : i32
    %c0_i32_1 = arith.constant 0 : i32
    %c0_i32_2 = arith.constant 0 : i32
    return %arg1, %arg0, %c0_i32, %c0_i32_0, %c0_i32_1 : i32, i32, i32, i32, i32
  }
  func.func @transform_1(%arg0: i32, %arg1: i32) -> (i32, i32, i32, i32) {
    %c0_i32 = arith.constant 0 : i32
    %c0_i32_0 = arith.constant 0 : i32
    %c0_i32_1 = arith.constant 0 : i32
    %c0_i32_2 = arith.constant 0 : i32
    return %arg0, %c0_i32, %c0_i32_0, %c0_i32_1 : i32, i32, i32, i32
  }
  func.func @transform_2(%arg0: i32, %arg1: i32) -> (i32, i32, i32, i32) {
    %c0_i32 = arith.constant 0 : i32
    %c0_i32_0 = arith.constant 0 : i32
    %c0_i32_1 = arith.constant 0 : i32
    %c0_i32_2 = arith.constant 0 : i32
    return %arg0, %c0_i32, %c0_i32_0, %c0_i32_1 : i32, i32, i32, i32
  }
  func.func @transform_3(%arg0: i32, %arg1: i32) -> (i32, i32, i32, i32) {
    %c0_i32 = arith.constant 0 : i32
    %c0_i32_0 = arith.constant 0 : i32
    %c0_i32_1 = arith.constant 0 : i32
    %c0_i32_2 = arith.constant 0 : i32
    return %arg0, %c0_i32, %c0_i32_0, %c0_i32_1 : i32, i32, i32, i32
  }
  func.func @transform_4(%arg0: i32, %arg1: i32) -> (i32, i32, i32) {
    %c0_i32 = arith.constant 0 : i32
    %c0_i32_0 = arith.constant 0 : i32
    %c0_i32_1 = arith.constant 0 : i32
    %c0_i32_2 = arith.constant 0 : i32
    return %c0_i32, %c0_i32_0, %c0_i32_1 : i32, i32, i32
  }
  func.func @transform_5(%arg0: i32, %arg1: i32) -> (i32, i32, i32) {
    %c0_i32 = arith.constant 0 : i32
    %c0_i32_0 = arith.constant 0 : i32
    %c0_i32_1 = arith.constant 0 : i32
    %c0_i32_2 = arith.constant 0 : i32
    return %c0_i32, %c0_i32_0, %c0_i32_1 : i32, i32, i32
  }
  func.func @transform_6(%arg0: i32, %arg1: i32) -> (i32, i32, i32) {
    %c0_i32 = arith.constant 0 : i32
    %c0_i32_0 = arith.constant 0 : i32
    %c0_i32_1 = arith.constant 0 : i32
    %c0_i32_2 = arith.constant 0 : i32
    return %c0_i32, %c0_i32_0, %c0_i32_1 : i32, i32, i32
  }
  func.func @transform_7(%arg0: i32, %arg1: i32) -> (i32, i32, i32) {
    %c0_i32 = arith.constant 0 : i32
    %c0_i32_0 = arith.constant 0 : i32
    %c0_i32_1 = arith.constant 0 : i32
    %c0_i32_2 = arith.constant 0 : i32
    return %c0_i32, %c0_i32_0, %c0_i32_1 : i32, i32, i32
  }
  func.func @transform_8(%arg0: i32, %arg1: i32) -> (i32, i32, i32) {
    %c0_i32 = arith.constant 0 : i32
    %c0_i32_0 = arith.constant 0 : i32
    %c0_i32_1 = arith.constant 0 : i32
    %c0_i32_2 = arith.constant 0 : i32
    return %c0_i32, %c0_i32_0, %c0_i32_1 : i32, i32, i32
  }
  func.func @transform_9(%arg0: i32, %arg1: i32) -> (i32, i32, i32) {
    %c0_i32 = arith.constant 0 : i32
    %c0_i32_0 = arith.constant 0 : i32
    %c0_i32_1 = arith.constant 0 : i32
    %c0_i32_2 = arith.constant 0 : i32
    return %c0_i32, %c0_i32_0, %c0_i32_1 : i32, i32, i32
  }
  func.func @transform_10(%arg0: i32, %arg1: i32) -> (i32, i32, i32, i32, i32) {
    %c0_i32 = arith.constant 0 : i32
    %c0_i32_0 = arith.constant 0 : i32
    %c0_i32_1 = arith.constant 0 : i32
    %c0_i32_2 = arith.constant 0 : i32
    return %arg1, %arg0, %c0_i32, %c0_i32_0, %c0_i32_1 : i32, i32, i32, i32, i32
  }
}

module attributes {stable_mosaic.version = 11 : i64} {
  func.func @_sas_kernel(%arg0: i32, %arg1: i32, %arg2: memref<1x1x2x32x128xf32, #tpu.memory_space<vmem>>, %arg3: memref<1x2x32x128xf32, #tpu.memory_space<vmem>>, %arg4: memref<1x2x32x128xf32, #tpu.memory_space<vmem>>, %arg5: memref<1x2x16x128xf32, #tpu.memory_space<vmem>>, %arg6: memref<3x32x32xbf16, #tpu.memory_space<vmem>>, %arg7: memref<3x128x128xbf16, #tpu.memory_space<vmem>>, %arg8: memref<3x32x32xbf16, #tpu.memory_space<vmem>>, %arg9: memref<3x128x128xbf16, #tpu.memory_space<vmem>>, %arg10: memref<3x16x32xbf16, #tpu.memory_space<vmem>>, %arg11: memref<3x128x128xbf16, #tpu.memory_space<vmem>>, %arg12: memref<1x1x2x16x128xf32, #tpu.memory_space<vmem>>) attributes {dimension_semantics = [#tpu.dimension_semantics<parallel>, #tpu.dimension_semantics<parallel>], iteration_bounds = array<i64: 3, 2>, scalar_prefetch = 0 : i64, scratch_operands = 0 : i64, tpu.core_type = #tpu.core_type<tc>, window_params = [{transform_indices = @transform_0, window_bounds = array<i64: 1, 1, 2, 32, 128>}, {transform_indices = @transform_1, window_bounds = array<i64: 1, 2, 32, 128>}, {transform_indices = @transform_2, window_bounds = array<i64: 1, 2, 32, 128>}, {transform_indices = @transform_3, window_bounds = array<i64: 1, 2, 16, 128>}, {pipeline_mode = #tpu.pipeline_mode<synchronous>, transform_indices = @transform_4, window_bounds = array<i64: 3, 32, 32>}, {pipeline_mode = #tpu.pipeline_mode<synchronous>, transform_indices = @transform_5, window_bounds = array<i64: 3, 128, 128>}, {pipeline_mode = #tpu.pipeline_mode<synchronous>, transform_indices = @transform_6, window_bounds = array<i64: 3, 32, 32>}, {pipeline_mode = #tpu.pipeline_mode<synchronous>, transform_indices = @transform_7, window_bounds = array<i64: 3, 128, 128>}, {pipeline_mode = #tpu.pipeline_mode<synchronous>, transform_indices = @transform_8, window_bounds = array<i64: 3, 16, 32>}, {pipeline_mode = #tpu.pipeline_mode<synchronous>, transform_indices = @transform_9, window_bounds = array<i64: 3, 128, 128>}, {transform_indices = @transform_10, window_bounds = array<i64: 1, 1, 2, 16, 128>}]} {
    %c0 = arith.constant 0 : index
    %c0_0 = arith.constant 0 : index
    %c0_1 = arith.constant 0 : index
    %c0_2 = arith.constant 0 : index
    %c0_3 = arith.constant 0 : index
    %0 = vector.load %arg2[%c0, %c0_0, %c0_1, %c0_2, %c0_3] : memref<1x1x2x32x128xf32, #tpu.memory_space<vmem>>, vector<1x1x1x32x128xf32>
    %1 = vector.shape_cast %0 : vector<1x1x1x32x128xf32> to vector<32x128xf32>
    %c0_4 = arith.constant 0 : index
    %c0_5 = arith.constant 0 : index
    %c1 = arith.constant 1 : index
    %c0_6 = arith.constant 0 : index
    %c0_7 = arith.constant 0 : index
    %2 = vector.load %arg2[%c0_4, %c0_5, %c1, %c0_6, %c0_7] : memref<1x1x2x32x128xf32, #tpu.memory_space<vmem>>, vector<1x1x1x32x128xf32>
    %3 = vector.shape_cast %2 : vector<1x1x1x32x128xf32> to vector<32x128xf32>
    %4 = arith.truncf %1 : vector<32x128xf32> to vector<32x128xbf16>
    %5 = arith.truncf %3 : vector<32x128xf32> to vector<32x128xbf16>
    %6 = arith.addf %1, %3 : vector<32x128xf32>
    %7 = arith.truncf %6 : vector<32x128xf32> to vector<32x128xbf16>
    %c0_8 = arith.constant 0 : index
    %c0_9 = arith.constant 0 : index
    %c0_10 = arith.constant 0 : index
    %8 = vector.load %arg6[%c0_8, %c0_9, %c0_10] : memref<3x32x32xbf16, #tpu.memory_space<vmem>>, vector<1x32x32xbf16>
    %9 = vector.shape_cast %8 : vector<1x32x32xbf16> to vector<32x32xbf16>
    %cst = arith.constant dense<0.000000e+00> : vector<32x128xf32>
    %10 = tpu.matmul %9, %4, %cst {dimension_numbers = #tpu.dot_dimension_numbers<[1], [0], [0], [1], [0, 0, 1, 1], [], []>} : vector<32x32xbf16>, vector<32x128xbf16>, vector<32x128xf32> -> vector<32x128xf32>
    %c1_11 = arith.constant 1 : index
    %c0_12 = arith.constant 0 : index
    %c0_13 = arith.constant 0 : index
    %11 = vector.load %arg6[%c1_11, %c0_12, %c0_13] : memref<3x32x32xbf16, #tpu.memory_space<vmem>>, vector<1x32x32xbf16>
    %12 = vector.shape_cast %11 : vector<1x32x32xbf16> to vector<32x32xbf16>
    %cst_14 = arith.constant dense<0.000000e+00> : vector<32x128xf32>
    %13 = tpu.matmul %12, %5, %cst_14 {dimension_numbers = #tpu.dot_dimension_numbers<[1], [0], [0], [1], [0, 0, 1, 1], [], []>} : vector<32x32xbf16>, vector<32x128xbf16>, vector<32x128xf32> -> vector<32x128xf32>
    %c2 = arith.constant 2 : index
    %c0_15 = arith.constant 0 : index
    %c0_16 = arith.constant 0 : index
    %14 = vector.load %arg6[%c2, %c0_15, %c0_16] : memref<3x32x32xbf16, #tpu.memory_space<vmem>>, vector<1x32x32xbf16>
    %15 = vector.shape_cast %14 : vector<1x32x32xbf16> to vector<32x32xbf16>
    %cst_17 = arith.constant dense<0.000000e+00> : vector<32x128xf32>
    %16 = tpu.matmul %15, %7, %cst_17 {dimension_numbers = #tpu.dot_dimension_numbers<[1], [0], [0], [1], [0, 0, 1, 1], [], []>} : vector<32x32xbf16>, vector<32x128xbf16>, vector<32x128xf32> -> vector<32x128xf32>
    %17 = arith.subf %10, %13 : vector<32x128xf32>
    %18 = arith.subf %16, %10 : vector<32x128xf32>
    %19 = arith.subf %18, %13 : vector<32x128xf32>
    %20 = arith.truncf %17 : vector<32x128xf32> to vector<32x128xbf16>
    %21 = arith.truncf %19 : vector<32x128xf32> to vector<32x128xbf16>
    %22 = arith.addf %17, %19 : vector<32x128xf32>
    %23 = arith.truncf %22 : vector<32x128xf32> to vector<32x128xbf16>
    %c0_18 = arith.constant 0 : index
    %c0_19 = arith.constant 0 : index
    %c0_20 = arith.constant 0 : index
    %24 = vector.load %arg7[%c0_18, %c0_19, %c0_20] : memref<3x128x128xbf16, #tpu.memory_space<vmem>>, vector<1x128x128xbf16>
    %25 = vector.shape_cast %24 : vector<1x128x128xbf16> to vector<128x128xbf16>
    %cst_21 = arith.constant dense<0.000000e+00> : vector<32x128xf32>
    %26 = tpu.matmul %20, %25, %cst_21 {dimension_numbers = #tpu.dot_dimension_numbers<[1], [0], [0], [1], [0, 0, 1, 1], [], []>} : vector<32x128xbf16>, vector<128x128xbf16>, vector<32x128xf32> -> vector<32x128xf32>
    %c1_22 = arith.constant 1 : index
    %c0_23 = arith.constant 0 : index
    %c0_24 = arith.constant 0 : index
    %27 = vector.load %arg7[%c1_22, %c0_23, %c0_24] : memref<3x128x128xbf16, #tpu.memory_space<vmem>>, vector<1x128x128xbf16>
    %28 = vector.shape_cast %27 : vector<1x128x128xbf16> to vector<128x128xbf16>
    %cst_25 = arith.constant dense<0.000000e+00> : vector<32x128xf32>
    %29 = tpu.matmul %21, %28, %cst_25 {dimension_numbers = #tpu.dot_dimension_numbers<[1], [0], [0], [1], [0, 0, 1, 1], [], []>} : vector<32x128xbf16>, vector<128x128xbf16>, vector<32x128xf32> -> vector<32x128xf32>
    %c2_26 = arith.constant 2 : index
    %c0_27 = arith.constant 0 : index
    %c0_28 = arith.constant 0 : index
    %30 = vector.load %arg7[%c2_26, %c0_27, %c0_28] : memref<3x128x128xbf16, #tpu.memory_space<vmem>>, vector<1x128x128xbf16>
    %31 = vector.shape_cast %30 : vector<1x128x128xbf16> to vector<128x128xbf16>
    %cst_29 = arith.constant dense<0.000000e+00> : vector<32x128xf32>
    %32 = tpu.matmul %23, %31, %cst_29 {dimension_numbers = #tpu.dot_dimension_numbers<[1], [0], [0], [1], [0, 0, 1, 1], [], []>} : vector<32x128xbf16>, vector<128x128xbf16>, vector<32x128xf32> -> vector<32x128xf32>
    %33 = arith.subf %26, %29 : vector<32x128xf32>
    %34 = arith.subf %32, %26 : vector<32x128xf32>
    %35 = arith.subf %34, %29 : vector<32x128xf32>
    %c0_30 = arith.constant 0 : index
    %c0_31 = arith.constant 0 : index
    %c0_32 = arith.constant 0 : index
    %c0_33 = arith.constant 0 : index
    %36 = vector.load %arg3[%c0_30, %c0_31, %c0_32, %c0_33] : memref<1x2x32x128xf32, #tpu.memory_space<vmem>>, vector<1x1x32x128xf32>
    %37 = vector.shape_cast %36 : vector<1x1x32x128xf32> to vector<32x128xf32>
    %c0_34 = arith.constant 0 : index
    %c1_35 = arith.constant 1 : index
    %c0_36 = arith.constant 0 : index
    %c0_37 = arith.constant 0 : index
    %38 = vector.load %arg3[%c0_34, %c1_35, %c0_36, %c0_37] : memref<1x2x32x128xf32, #tpu.memory_space<vmem>>, vector<1x1x32x128xf32>
    %39 = vector.shape_cast %38 : vector<1x1x32x128xf32> to vector<32x128xf32>
    %40 = arith.mulf %33, %37 : vector<32x128xf32>
    %41 = arith.mulf %35, %39 : vector<32x128xf32>
    %42 = arith.subf %40, %41 : vector<32x128xf32>
    %43 = arith.mulf %33, %39 : vector<32x128xf32>
    %44 = arith.mulf %35, %37 : vector<32x128xf32>
    %45 = arith.addf %43, %44 : vector<32x128xf32>
    %46 = arith.truncf %42 : vector<32x128xf32> to vector<32x128xbf16>
    %47 = arith.truncf %45 : vector<32x128xf32> to vector<32x128xbf16>
    %48 = arith.addf %42, %45 : vector<32x128xf32>
    %49 = arith.truncf %48 : vector<32x128xf32> to vector<32x128xbf16>
    %c0_38 = arith.constant 0 : index
    %c0_39 = arith.constant 0 : index
    %c0_40 = arith.constant 0 : index
    %50 = vector.load %arg8[%c0_38, %c0_39, %c0_40] : memref<3x32x32xbf16, #tpu.memory_space<vmem>>, vector<1x32x32xbf16>
    %51 = vector.shape_cast %50 : vector<1x32x32xbf16> to vector<32x32xbf16>
    %cst_41 = arith.constant dense<0.000000e+00> : vector<32x128xf32>
    %52 = tpu.matmul %51, %46, %cst_41 {dimension_numbers = #tpu.dot_dimension_numbers<[1], [0], [0], [1], [0, 0, 1, 1], [], []>} : vector<32x32xbf16>, vector<32x128xbf16>, vector<32x128xf32> -> vector<32x128xf32>
    %c1_42 = arith.constant 1 : index
    %c0_43 = arith.constant 0 : index
    %c0_44 = arith.constant 0 : index
    %53 = vector.load %arg8[%c1_42, %c0_43, %c0_44] : memref<3x32x32xbf16, #tpu.memory_space<vmem>>, vector<1x32x32xbf16>
    %54 = vector.shape_cast %53 : vector<1x32x32xbf16> to vector<32x32xbf16>
    %cst_45 = arith.constant dense<0.000000e+00> : vector<32x128xf32>
    %55 = tpu.matmul %54, %47, %cst_45 {dimension_numbers = #tpu.dot_dimension_numbers<[1], [0], [0], [1], [0, 0, 1, 1], [], []>} : vector<32x32xbf16>, vector<32x128xbf16>, vector<32x128xf32> -> vector<32x128xf32>
    %c2_46 = arith.constant 2 : index
    %c0_47 = arith.constant 0 : index
    %c0_48 = arith.constant 0 : index
    %56 = vector.load %arg8[%c2_46, %c0_47, %c0_48] : memref<3x32x32xbf16, #tpu.memory_space<vmem>>, vector<1x32x32xbf16>
    %57 = vector.shape_cast %56 : vector<1x32x32xbf16> to vector<32x32xbf16>
    %cst_49 = arith.constant dense<0.000000e+00> : vector<32x128xf32>
    %58 = tpu.matmul %57, %49, %cst_49 {dimension_numbers = #tpu.dot_dimension_numbers<[1], [0], [0], [1], [0, 0, 1, 1], [], []>} : vector<32x32xbf16>, vector<32x128xbf16>, vector<32x128xf32> -> vector<32x128xf32>
    %59 = arith.subf %52, %55 : vector<32x128xf32>
    %60 = arith.subf %58, %52 : vector<32x128xf32>
    %61 = arith.subf %60, %55 : vector<32x128xf32>
    %62 = arith.truncf %59 : vector<32x128xf32> to vector<32x128xbf16>
    %63 = arith.truncf %61 : vector<32x128xf32> to vector<32x128xbf16>
    %64 = arith.addf %59, %61 : vector<32x128xf32>
    %65 = arith.truncf %64 : vector<32x128xf32> to vector<32x128xbf16>
    %c0_50 = arith.constant 0 : index
    %c0_51 = arith.constant 0 : index
    %c0_52 = arith.constant 0 : index
    %66 = vector.load %arg9[%c0_50, %c0_51, %c0_52] : memref<3x128x128xbf16, #tpu.memory_space<vmem>>, vector<1x128x128xbf16>
    %67 = vector.shape_cast %66 : vector<1x128x128xbf16> to vector<128x128xbf16>
    %cst_53 = arith.constant dense<0.000000e+00> : vector<32x128xf32>
    %68 = tpu.matmul %62, %67, %cst_53 {dimension_numbers = #tpu.dot_dimension_numbers<[1], [0], [0], [1], [0, 0, 1, 1], [], []>} : vector<32x128xbf16>, vector<128x128xbf16>, vector<32x128xf32> -> vector<32x128xf32>
    %c1_54 = arith.constant 1 : index
    %c0_55 = arith.constant 0 : index
    %c0_56 = arith.constant 0 : index
    %69 = vector.load %arg9[%c1_54, %c0_55, %c0_56] : memref<3x128x128xbf16, #tpu.memory_space<vmem>>, vector<1x128x128xbf16>
    %70 = vector.shape_cast %69 : vector<1x128x128xbf16> to vector<128x128xbf16>
    %cst_57 = arith.constant dense<0.000000e+00> : vector<32x128xf32>
    %71 = tpu.matmul %63, %70, %cst_57 {dimension_numbers = #tpu.dot_dimension_numbers<[1], [0], [0], [1], [0, 0, 1, 1], [], []>} : vector<32x128xbf16>, vector<128x128xbf16>, vector<32x128xf32> -> vector<32x128xf32>
    %c2_58 = arith.constant 2 : index
    %c0_59 = arith.constant 0 : index
    %c0_60 = arith.constant 0 : index
    %72 = vector.load %arg9[%c2_58, %c0_59, %c0_60] : memref<3x128x128xbf16, #tpu.memory_space<vmem>>, vector<1x128x128xbf16>
    %73 = vector.shape_cast %72 : vector<1x128x128xbf16> to vector<128x128xbf16>
    %cst_61 = arith.constant dense<0.000000e+00> : vector<32x128xf32>
    %74 = tpu.matmul %65, %73, %cst_61 {dimension_numbers = #tpu.dot_dimension_numbers<[1], [0], [0], [1], [0, 0, 1, 1], [], []>} : vector<32x128xbf16>, vector<128x128xbf16>, vector<32x128xf32> -> vector<32x128xf32>
    %75 = arith.subf %68, %71 : vector<32x128xf32>
    %76 = arith.subf %74, %68 : vector<32x128xf32>
    %77 = arith.subf %76, %71 : vector<32x128xf32>
    %c0_62 = arith.constant 0 : index
    %c0_63 = arith.constant 0 : index
    %c0_64 = arith.constant 0 : index
    %c0_65 = arith.constant 0 : index
    %78 = vector.load %arg4[%c0_62, %c0_63, %c0_64, %c0_65] : memref<1x2x32x128xf32, #tpu.memory_space<vmem>>, vector<1x1x32x128xf32>
    %79 = vector.shape_cast %78 : vector<1x1x32x128xf32> to vector<32x128xf32>
    %c0_66 = arith.constant 0 : index
    %c1_67 = arith.constant 1 : index
    %c0_68 = arith.constant 0 : index
    %c0_69 = arith.constant 0 : index
    %80 = vector.load %arg4[%c0_66, %c1_67, %c0_68, %c0_69] : memref<1x2x32x128xf32, #tpu.memory_space<vmem>>, vector<1x1x32x128xf32>
    %81 = vector.shape_cast %80 : vector<1x1x32x128xf32> to vector<32x128xf32>
    %82 = arith.mulf %75, %79 : vector<32x128xf32>
    %83 = arith.mulf %77, %81 : vector<32x128xf32>
    %84 = arith.subf %82, %83 : vector<32x128xf32>
    %85 = arith.mulf %75, %81 : vector<32x128xf32>
    %86 = arith.mulf %77, %79 : vector<32x128xf32>
    %87 = arith.addf %85, %86 : vector<32x128xf32>
    %88 = arith.truncf %84 : vector<32x128xf32> to vector<32x128xbf16>
    %89 = arith.truncf %87 : vector<32x128xf32> to vector<32x128xbf16>
    %90 = arith.addf %84, %87 : vector<32x128xf32>
    %91 = arith.truncf %90 : vector<32x128xf32> to vector<32x128xbf16>
    %c0_70 = arith.constant 0 : index
    %c0_71 = arith.constant 0 : index
    %c0_72 = arith.constant 0 : index
    %92 = vector.load %arg10[%c0_70, %c0_71, %c0_72] : memref<3x16x32xbf16, #tpu.memory_space<vmem>>, vector<1x16x32xbf16>
    %93 = vector.shape_cast %92 : vector<1x16x32xbf16> to vector<16x32xbf16>
    %cst_73 = arith.constant dense<0.000000e+00> : vector<16x128xf32>
    %94 = tpu.matmul %93, %88, %cst_73 {dimension_numbers = #tpu.dot_dimension_numbers<[1], [0], [0], [1], [0, 0, 1, 1], [], []>} : vector<16x32xbf16>, vector<32x128xbf16>, vector<16x128xf32> -> vector<16x128xf32>
    %c1_74 = arith.constant 1 : index
    %c0_75 = arith.constant 0 : index
    %c0_76 = arith.constant 0 : index
    %95 = vector.load %arg10[%c1_74, %c0_75, %c0_76] : memref<3x16x32xbf16, #tpu.memory_space<vmem>>, vector<1x16x32xbf16>
    %96 = vector.shape_cast %95 : vector<1x16x32xbf16> to vector<16x32xbf16>
    %cst_77 = arith.constant dense<0.000000e+00> : vector<16x128xf32>
    %97 = tpu.matmul %96, %89, %cst_77 {dimension_numbers = #tpu.dot_dimension_numbers<[1], [0], [0], [1], [0, 0, 1, 1], [], []>} : vector<16x32xbf16>, vector<32x128xbf16>, vector<16x128xf32> -> vector<16x128xf32>
    %c2_78 = arith.constant 2 : index
    %c0_79 = arith.constant 0 : index
    %c0_80 = arith.constant 0 : index
    %98 = vector.load %arg10[%c2_78, %c0_79, %c0_80] : memref<3x16x32xbf16, #tpu.memory_space<vmem>>, vector<1x16x32xbf16>
    %99 = vector.shape_cast %98 : vector<1x16x32xbf16> to vector<16x32xbf16>
    %cst_81 = arith.constant dense<0.000000e+00> : vector<16x128xf32>
    %100 = tpu.matmul %99, %91, %cst_81 {dimension_numbers = #tpu.dot_dimension_numbers<[1], [0], [0], [1], [0, 0, 1, 1], [], []>} : vector<16x32xbf16>, vector<32x128xbf16>, vector<16x128xf32> -> vector<16x128xf32>
    %101 = arith.subf %94, %97 : vector<16x128xf32>
    %102 = arith.subf %100, %94 : vector<16x128xf32>
    %103 = arith.subf %102, %97 : vector<16x128xf32>
    %104 = arith.truncf %101 : vector<16x128xf32> to vector<16x128xbf16>
    %105 = arith.truncf %103 : vector<16x128xf32> to vector<16x128xbf16>
    %106 = arith.addf %101, %103 : vector<16x128xf32>
    %107 = arith.truncf %106 : vector<16x128xf32> to vector<16x128xbf16>
    %c0_82 = arith.constant 0 : index
    %c0_83 = arith.constant 0 : index
    %c0_84 = arith.constant 0 : index
    %108 = vector.load %arg11[%c0_82, %c0_83, %c0_84] : memref<3x128x128xbf16, #tpu.memory_space<vmem>>, vector<1x128x128xbf16>
    %109 = vector.shape_cast %108 : vector<1x128x128xbf16> to vector<128x128xbf16>
    %cst_85 = arith.constant dense<0.000000e+00> : vector<16x128xf32>
    %110 = tpu.matmul %104, %109, %cst_85 {dimension_numbers = #tpu.dot_dimension_numbers<[1], [0], [0], [1], [0, 0, 1, 1], [], []>} : vector<16x128xbf16>, vector<128x128xbf16>, vector<16x128xf32> -> vector<16x128xf32>
    %c1_86 = arith.constant 1 : index
    %c0_87 = arith.constant 0 : index
    %c0_88 = arith.constant 0 : index
    %111 = vector.load %arg11[%c1_86, %c0_87, %c0_88] : memref<3x128x128xbf16, #tpu.memory_space<vmem>>, vector<1x128x128xbf16>
    %112 = vector.shape_cast %111 : vector<1x128x128xbf16> to vector<128x128xbf16>
    %cst_89 = arith.constant dense<0.000000e+00> : vector<16x128xf32>
    %113 = tpu.matmul %105, %112, %cst_89 {dimension_numbers = #tpu.dot_dimension_numbers<[1], [0], [0], [1], [0, 0, 1, 1], [], []>} : vector<16x128xbf16>, vector<128x128xbf16>, vector<16x128xf32> -> vector<16x128xf32>
    %c2_90 = arith.constant 2 : index
    %c0_91 = arith.constant 0 : index
    %c0_92 = arith.constant 0 : index
    %114 = vector.load %arg11[%c2_90, %c0_91, %c0_92] : memref<3x128x128xbf16, #tpu.memory_space<vmem>>, vector<1x128x128xbf16>
    %115 = vector.shape_cast %114 : vector<1x128x128xbf16> to vector<128x128xbf16>
    %cst_93 = arith.constant dense<0.000000e+00> : vector<16x128xf32>
    %116 = tpu.matmul %107, %115, %cst_93 {dimension_numbers = #tpu.dot_dimension_numbers<[1], [0], [0], [1], [0, 0, 1, 1], [], []>} : vector<16x128xbf16>, vector<128x128xbf16>, vector<16x128xf32> -> vector<16x128xf32>
    %117 = arith.subf %110, %113 : vector<16x128xf32>
    %118 = arith.subf %116, %110 : vector<16x128xf32>
    %119 = arith.subf %118, %113 : vector<16x128xf32>
    %c0_94 = arith.constant 0 : index
    %c0_95 = arith.constant 0 : index
    %c0_96 = arith.constant 0 : index
    %c0_97 = arith.constant 0 : index
    %120 = vector.load %arg5[%c0_94, %c0_95, %c0_96, %c0_97] : memref<1x2x16x128xf32, #tpu.memory_space<vmem>>, vector<1x1x16x128xf32>
    %121 = vector.shape_cast %120 : vector<1x1x16x128xf32> to vector<16x128xf32>
    %c0_98 = arith.constant 0 : index
    %c1_99 = arith.constant 1 : index
    %c0_100 = arith.constant 0 : index
    %c0_101 = arith.constant 0 : index
    %122 = vector.load %arg5[%c0_98, %c1_99, %c0_100, %c0_101] : memref<1x2x16x128xf32, #tpu.memory_space<vmem>>, vector<1x1x16x128xf32>
    %123 = vector.shape_cast %122 : vector<1x1x16x128xf32> to vector<16x128xf32>
    %124 = arith.mulf %117, %121 : vector<16x128xf32>
    %125 = arith.mulf %119, %123 : vector<16x128xf32>
    %126 = arith.subf %124, %125 : vector<16x128xf32>
    %127 = arith.mulf %117, %123 : vector<16x128xf32>
    %128 = arith.mulf %119, %121 : vector<16x128xf32>
    %129 = arith.addf %127, %128 : vector<16x128xf32>
    %c0_102 = arith.constant 0 : index
    %c0_103 = arith.constant 0 : index
    %c0_104 = arith.constant 0 : index
    %c0_105 = arith.constant 0 : index
    %c0_106 = arith.constant 0 : index
    %130 = vector.load %arg12[%c0_102, %c0_103, %c0_104, %c0_105, %c0_106] : memref<1x1x2x16x128xf32, #tpu.memory_space<vmem>>, vector<1x1x1x16x128xf32>
    %131 = vector.shape_cast %130 : vector<1x1x1x16x128xf32> to vector<16x128xf32>
    %132 = vector.shape_cast %126 : vector<16x128xf32> to vector<1x1x1x16x128xf32>
    tpu.vector_store %arg12[%c0_102, %c0_103, %c0_104, %c0_105, %c0_106], %132 {strides = array<i32>} : memref<1x1x2x16x128xf32, #tpu.memory_space<vmem>>, vector<1x1x1x16x128xf32>,
    %c0_107 = arith.constant 0 : index
    %c0_108 = arith.constant 0 : index
    %c1_109 = arith.constant 1 : index
    %c0_110 = arith.constant 0 : index
    %c0_111 = arith.constant 0 : index
    %133 = vector.load %arg12[%c0_107, %c0_108, %c1_109, %c0_110, %c0_111] : memref<1x1x2x16x128xf32, #tpu.memory_space<vmem>>, vector<1x1x1x16x128xf32>
    %134 = vector.shape_cast %133 : vector<1x1x1x16x128xf32> to vector<16x128xf32>
    %135 = vector.shape_cast %129 : vector<16x128xf32> to vector<1x1x1x16x128xf32>
    tpu.vector_store %arg12[%c0_107, %c0_108, %c1_109, %c0_110, %c0_111], %135 {strides = array<i32>} : memref<1x1x2x16x128xf32, #tpu.memory_space<vmem>>, vector<1x1x1x16x128xf32>,
    return
  }
  func.func @transform_0(%arg0: i32, %arg1: i32) -> (i32, i32, i32, i32, i32) {
    %c0_i32 = arith.constant 0 : i32
    %c0_i32_0 = arith.constant 0 : i32
    %c0_i32_1 = arith.constant 0 : i32
    %c0_i32_2 = arith.constant 0 : i32
    return %arg1, %arg0, %c0_i32, %c0_i32_0, %c0_i32_1 : i32, i32, i32, i32, i32
  }
  func.func @transform_1(%arg0: i32, %arg1: i32) -> (i32, i32, i32, i32) {
    %c0_i32 = arith.constant 0 : i32
    %c0_i32_0 = arith.constant 0 : i32
    %c0_i32_1 = arith.constant 0 : i32
    %c0_i32_2 = arith.constant 0 : i32
    return %arg0, %c0_i32, %c0_i32_0, %c0_i32_1 : i32, i32, i32, i32
  }
  func.func @transform_2(%arg0: i32, %arg1: i32) -> (i32, i32, i32, i32) {
    %c0_i32 = arith.constant 0 : i32
    %c0_i32_0 = arith.constant 0 : i32
    %c0_i32_1 = arith.constant 0 : i32
    %c0_i32_2 = arith.constant 0 : i32
    return %arg0, %c0_i32, %c0_i32_0, %c0_i32_1 : i32, i32, i32, i32
  }
  func.func @transform_3(%arg0: i32, %arg1: i32) -> (i32, i32, i32, i32) {
    %c0_i32 = arith.constant 0 : i32
    %c0_i32_0 = arith.constant 0 : i32
    %c0_i32_1 = arith.constant 0 : i32
    %c0_i32_2 = arith.constant 0 : i32
    return %arg0, %c0_i32, %c0_i32_0, %c0_i32_1 : i32, i32, i32, i32
  }
  func.func @transform_4(%arg0: i32, %arg1: i32) -> (i32, i32, i32) {
    %c0_i32 = arith.constant 0 : i32
    %c0_i32_0 = arith.constant 0 : i32
    %c0_i32_1 = arith.constant 0 : i32
    %c0_i32_2 = arith.constant 0 : i32
    return %c0_i32, %c0_i32_0, %c0_i32_1 : i32, i32, i32
  }
  func.func @transform_5(%arg0: i32, %arg1: i32) -> (i32, i32, i32) {
    %c0_i32 = arith.constant 0 : i32
    %c0_i32_0 = arith.constant 0 : i32
    %c0_i32_1 = arith.constant 0 : i32
    %c0_i32_2 = arith.constant 0 : i32
    return %c0_i32, %c0_i32_0, %c0_i32_1 : i32, i32, i32
  }
  func.func @transform_6(%arg0: i32, %arg1: i32) -> (i32, i32, i32) {
    %c0_i32 = arith.constant 0 : i32
    %c0_i32_0 = arith.constant 0 : i32
    %c0_i32_1 = arith.constant 0 : i32
    %c0_i32_2 = arith.constant 0 : i32
    return %c0_i32, %c0_i32_0, %c0_i32_1 : i32, i32, i32
  }
  func.func @transform_7(%arg0: i32, %arg1: i32) -> (i32, i32, i32) {
    %c0_i32 = arith.constant 0 : i32
    %c0_i32_0 = arith.constant 0 : i32
    %c0_i32_1 = arith.constant 0 : i32
    %c0_i32_2 = arith.constant 0 : i32
    return %c0_i32, %c0_i32_0, %c0_i32_1 : i32, i32, i32
  }
  func.func @transform_8(%arg0: i32, %arg1: i32) -> (i32, i32, i32) {
    %c0_i32 = arith.constant 0 : i32
    %c0_i32_0 = arith.constant 0 : i32
    %c0_i32_1 = arith.constant 0 : i32
    %c0_i32_2 = arith.constant 0 : i32
    return %c0_i32, %c0_i32_0, %c0_i32_1 : i32, i32, i32
  }
  func.func @transform_9(%arg0: i32, %arg1: i32) -> (i32, i32, i32) {
    %c0_i32 = arith.constant 0 : i32
    %c0_i32_0 = arith.constant 0 : i32
    %c0_i32_1 = arith.constant 0 : i32
    %c0_i32_2 = arith.constant 0 : i32
    return %c0_i32, %c0_i32_0, %c0_i32_1 : i32, i32, i32
  }
  func.func @transform_10(%arg0: i32, %arg1: i32) -> (i32, i32, i32, i32, i32) {
    %c0_i32 = arith.constant 0 : i32
    %c0_i32_0 = arith.constant 0 : i32
    %c0_i32_1 = arith.constant 0 : i32
    %c0_i32_2 = arith.constant 0 : i32
    return %arg1, %arg0, %c0_i32, %c0_i32_0, %c0_i32_1 : i32, i32, i32, i32, i32
  }
}

</mosaic_0001>

<llo_original>
// kernel: tpu_custom_call.1
$region0: #{tpu_custom_call.1}
  #allocation0 [shape = 'u32[]', space=smem, size = 0x4, offset = 0x4, fixed_abs, tag = 'smem constant byte address 0x4 - core index']
  #allocation1 [shape = 'u32[144,128]{1,0:T(1,128)}', space=vmem, size = 0x12000, scoped, tag = 'internal scratch']
  %s0 = inlined_call_operand.hbm [shape: f32[2,3,2,32,128], index: 0, kind: input, shape index: {}]
  %s1 = inlined_call_operand.hbm [shape: f32[3,2,32,128], index: 1, kind: input, shape index: {}]
  %s2 = inlined_call_operand.hbm [shape: f32[3,2,32,128], index: 2, kind: input, shape index: {}]
  %s3 = inlined_call_operand.hbm [shape: f32[3,2,16,128], index: 3, kind: input, shape index: {}]
  %s4 = inlined_call_operand.hbm [shape: bf16[3,32,32], index: 4, kind: input, shape index: {}]
  %s5 = inlined_call_operand.hbm [shape: bf16[3,128,128], index: 5, kind: input, shape index: {}]
  %s6 = inlined_call_operand.hbm [shape: bf16[3,32,32], index: 6, kind: input, shape index: {}]
  %s7 = inlined_call_operand.hbm [shape: bf16[3,128,128], index: 7, kind: input, shape index: {}]
  %s8 = inlined_call_operand.hbm [shape: bf16[3,16,32], index: 8, kind: input, shape index: {}]
  %s9 = inlined_call_operand.hbm [shape: bf16[3,128,128], index: 9, kind: input, shape index: {}]
  %s10 = inlined_call_operand.hbm [shape: f32[2,3,2,16,128], index: 10, kind: output, shape index: {}]
  %s11 = sld [smem:[#allocation0]]
  $region113: #{tpu_custom_call.1} parent=0
    _
  %s13 = ssub.s32 1, %s11
  %s14 = scalar_select 0, %s13, %s11
  $region1: #{tpu_custom_call.1} parent=0
    #allocation2 [shape = 'u8[65536]{0}', space=vmem, size = 0x10000, scoped, tag = 'input window, operand 0']
    #allocation3 [shape = 's32[2]{0}', space=sflag, size = 0x8, scoped, tag = 'scoped memory for tpu_custom_call.1']
    #allocation4 [shape = 's32[2]{0}', space=sflag, size = 0x8, scoped, tag = 'scoped memory for tpu_custom_call.1']
    #allocation5 [shape = 'u8[32768]{0}', space=vmem, size = 0x8000, scoped, tag = 'input window, operand 1, single buffered']
    #allocation6 [shape = 's32[1]{0}', space=sflag, size = 0x4, scoped, tag = 'scoped memory for tpu_custom_call.1']
    #allocation7 [shape = 'u8[32768]{0}', space=vmem, size = 0x8000, scoped, tag = 'input window, operand 2, single buffered']
    #allocation8 [shape = 'u8[16384]{0}', space=vmem, size = 0x4000, scoped, tag = 'input window, operand 3, single buffered']
    #allocation9 [shape = 's32[1]{0}', space=sflag, size = 0x4, scoped, tag = 'scoped memory for tpu_custom_call.1']
    #allocation10 [shape = 'u8[24576]{0}', space=vmem, size = 0x6000, scoped, tag = 'input window, operand 4, single buffered']
    #allocation11 [shape = 'u8[98304]{0}', space=vmem, size = 0x18000, scoped, tag = 'input window, operand 5, single buffered']
    #allocation12 [shape = 's32[1]{0}', space=sflag, size = 0x4, scoped, tag = 'scoped memory for tpu_custom_call.1']
    #allocation13 [shape = 'u8[24576]{0}', space=vmem, size = 0x6000, scoped, tag = 'input window, operand 6, single buffered']
    #allocation14 [shape = 'u8[98304]{0}', space=vmem, size = 0x18000, scoped, tag = 'input window, operand 7, single buffered']
    #allocation15 [shape = 's32[1]{0}', space=sflag, size = 0x4, scoped, tag = 'scoped memory for tpu_custom_call.1']
    #allocation16 [shape = 'u8[12288]{0}', space=vmem, size = 0x3000, scoped, tag = 'input window, operand 8, single buffered']
    #allocation17 [shape = 'u8[98304]{0}', space=vmem, size = 0x18000, scoped, tag = 'input window, operand 9, single buffered']
    #allocation18 [shape = 's32[1]{0}', space=sflag, size = 0x4, scoped, tag = 'scoped memory for tpu_custom_call.1']
    #allocation19 [shape = 'u8[32768]{0}', space=vmem, size = 0x8000, scoped, tag = 'output window, operand 0']
    %15 = vsyncpa [#allocation3], 0
    %s16 = scalar_lea.sflag [#allocation3], 1
    %17 = vsyncpa %s16, 0
    %18 = vsyncpa [#allocation6], 0
    %19 = vsyncpa [#allocation9], 0
    %20 = vsyncpa [#allocation12], 0
    %21 = vsyncpa [#allocation15], 0
    %22 = vsyncpa [#allocation18], 0
    %23 = vsyncpa [#allocation4], 0
    %s24 = scalar_lea.sflag [#allocation4], 1
    %25 = vsyncpa %s24, 0
    loop: start=0, step=1, limit=8
    $region2: #{tpu_custom_call.1} parent=1 // loop_pre_header
      _
    $region3: #{tpu_custom_call.1} parent=1 // loop_header
      %s27 = sphi 0, %s31
      %p28 = scmp.ge.s32.totalorder %s27, 8
      %s34 = sphi 0, %s46
      %s35 = sphi 0, %s42
      %s36 = sphi 0, %s34
      %s37 = sphi 0, %s35
      %s38 = sphi 0, %s36
      %s39 = sphi 0, %s37
      %s51 = sphi 0, %s53
      %s54 = sphi 0, %s51
      %s55 = sphi 0, %s54
      %s71 = sphi 0, %s55
      %s77 = sphi 0, %s79
      %s80 = sphi 0, %s77
      %s81 = sphi 0, %s80
      %s97 = sphi 0, %s81
      %s103 = sphi 0, %s105
      %s106 = sphi 0, %s103
      %s107 = sphi 0, %s106
      %s123 = sphi 0, %s107
      %s129 = sphi 0, %s131
      %s132 = sphi 0, %s129
      %s133 = sphi 0, %s132
      %s149 = sphi 0, %s133
      %s153 = sphi 0, %s153
      %s155 = sphi 0, %s153
      %s156 = sphi 0, %s155
      %s170 = sphi 0, %s156
      %s174 = sphi 0, %s174
      %s176 = sphi 0, %s174
      %s177 = sphi 0, %s176
      %s191 = sphi 0, %s177
      %s195 = sphi 0, %s195
      %s197 = sphi 0, %s195
      %s198 = sphi 0, %s197
      %s212 = sphi 0, %s198
      %s216 = sphi 0, %s216
      %s218 = sphi 0, %s216
      %s219 = sphi 0, %s218
      %s233 = sphi 0, %s219
      %s237 = sphi 0, %s237
      %s239 = sphi 0, %s237
      %s240 = sphi 0, %s239
      %s254 = sphi 0, %s240
      %s258 = sphi 0, %s258
      %s260 = sphi 0, %s258
      %s261 = sphi 0, %s260
      %s275 = sphi 0, %s261
      %s283 = sphi 0, %s285
      %s286 = sphi 0, %s283
      %s287 = sphi 0, %s286
      %s303 = sphi 0, %s287
    $region4: #{tpu_custom_call.1} parent=1 // loop_header_branch
      %30 = sbr.rel (%p28) target = $region8
    $region5: #{tpu_custom_call.1} parent=1 // loop_body
      %s32 = ssub.s32 %s27, 1
      %s33 = ssub.s32 %s27, 2
      %s40 = sadd.s32 1, %s35
      %p41 = scmp.ge.s32.totalorder %s40, 2
      %s42 = scalar_select %p41, 0, %s40
      %s43 = sadd.s32 1, %s34
      %s44 = scalar_select %p41, %s43, %s34
      %p45 = scmp.ge.s32.totalorder %s44, 3
      %s46 = scalar_select %p45, 0, %s44
      %s47 = ssub.s32 %s35, %s42
      %s48 = ssub.s32 %s34, %s46
      %s49 = sor.u32 %s47, %s48
      %p50 = scmp.eq.s32.totalorder %s49, 0
      %s52 = sadd.s32 %s51, 1
      %s53 = scalar_select %p50, %s51, %s52
      %p56 = pneg %p50
      %p57 = scmp.eq.s32.totalorder %s27, 5
      %p58 = por %p56, %p57
      %p59 = scmp.ne.s32.totalorder %s51, %s54
      %p60 = scmp.eq.s32.totalorder %s27, 0
      %p61 = por %p59, %p60
      %p62 = scmp.ne.s32.totalorder %s51, %s54
      %p63 = scmp.eq.s32.totalorder %s32, 5
      %p64 = por %p62, %p63
      %p65 = scmp.ne.s32.totalorder %s54, %s55
      %p66 = scmp.eq.s32.totalorder %s32, 0
      %p67 = por %p65, %p66
      %p68 = scmp.ne.s32.totalorder %s54, %s55
      %p69 = scmp.eq.s32.totalorder %s33, 5
      %p70 = por %p68, %p69
      %p72 = scmp.ne.s32.totalorder %s55, %s71
      %p73 = scmp.eq.s32.totalorder %s33, 0
      %p74 = por %p72, %p73
      %s75 = ssub.s32 %s34, %s46
      %p76 = scmp.eq.s32.totalorder %s75, 0
      %s78 = sadd.s32 %s77, 1
      %s79 = scalar_select %p76, %s77, %s78
      %p82 = pneg %p76
      %p83 = scmp.eq.s32.totalorder %s27, 5
      %p84 = por %p82, %p83
      %p85 = scmp.ne.s32.totalorder %s77, %s80
      %p86 = scmp.eq.s32.totalorder %s27, 0
      %p87 = por %p85, %p86
      %p88 = scmp.ne.s32.totalorder %s77, %s80
      %p89 = scmp.eq.s32.totalorder %s32, 5
      %p90 = por %p88, %p89
      %p91 = scmp.ne.s32.totalorder %s80, %s81
      %p92 = scmp.eq.s32.totalorder %s32, 0
      %p93 = por %p91, %p92
      %p94 = scmp.ne.s32.totalorder %s80, %s81
      %p95 = scmp.eq.s32.totalorder %s33, 5
      %p96 = por %p94, %p95
      %p98 = scmp.ne.s32.totalorder %s81, %s97
      %p99 = scmp.eq.s32.totalorder %s33, 0
      %p100 = por %p98, %p99
      %s101 = ssub.s32 %s34, %s46
      %p102 = scmp.eq.s32.totalorder %s101, 0
      %s104 = sadd.s32 %s103, 1
      %s105 = scalar_select %p102, %s103, %s104
      %p108 = pneg %p102
      %p109 = scmp.eq.s32.totalorder %s27, 5
      %p110 = por %p108, %p109
      %p111 = scmp.ne.s32.totalorder %s103, %s106
      %p112 = scmp.eq.s32.totalorder %s27, 0
      %p113 = por %p111, %p112
      %p114 = scmp.ne.s32.totalorder %s103, %s106
      %p115 = scmp.eq.s32.totalorder %s32, 5
      %p116 = por %p114, %p115
      %p117 = scmp.ne.s32.totalorder %s106, %s107
      %p118 = scmp.eq.s32.totalorder %s32, 0
      %p119 = por %p117, %p118
      %p120 = scmp.ne.s32.totalorder %s106, %s107
      %p121 = scmp.eq.s32.totalorder %s33, 5
      %p122 = por %p120, %p121
      %p124 = scmp.ne.s32.totalorder %s107, %s123
      %p125 = scmp.eq.s32.totalorder %s33, 0
      %p126 = por %p124, %p125
      %s127 = ssub.s32 %s34, %s46
      %p128 = scmp.eq.s32.totalorder %s127, 0
      %s130 = sadd.s32 %s129, 1
      %s131 = scalar_select %p128, %s129, %s130
      %p134 = pneg %p128
      %p135 = scmp.eq.s32.totalorder %s27, 5
      %p136 = por %p134, %p135
      %p137 = scmp.ne.s32.totalorder %s129, %s132
      %p138 = scmp.eq.s32.totalorder %s27, 0
      %p139 = por %p137, %p138
      %p140 = scmp.ne.s32.totalorder %s129, %s132
      %p141 = scmp.eq.s32.totalorder %s32, 5
      %p142 = por %p140, %p141
      %p143 = scmp.ne.s32.totalorder %s132, %s133
      %p144 = scmp.eq.s32.totalorder %s32, 0
      %p145 = por %p143, %p144
      %p146 = scmp.ne.s32.totalorder %s132, %s133
      %p147 = scmp.eq.s32.totalorder %s33, 5
      %p148 = por %p146, %p147
      %p150 = scmp.ne.s32.totalorder %s133, %s149
      %p151 = scmp.eq.s32.totalorder %s33, 0
      %p152 = por %p150, %p151
      %s154 = sadd.s32 %s153, 1
      %p157 = scmp.eq.s32.totalorder %s27, 5
      %p158 = scmp.ne.s32.totalorder %s153, %s155
      %p159 = scmp.eq.s32.totalorder %s27, 0
      %p160 = por %p158, %p159
      %p161 = scmp.ne.s32.totalorder %s153, %s155
      %p162 = scmp.eq.s32.totalorder %s32, 5
      %p163 = por %p161, %p162
      %p164 = scmp.ne.s32.totalorder %s155, %s156
      %p165 = scmp.eq.s32.totalorder %s32, 0
      %p166 = por %p164, %p165
      %p167 = scmp.ne.s32.totalorder %s155, %s156
      %p168 = scmp.eq.s32.totalorder %s33, 5
      %p169 = por %p167, %p168
      %p171 = scmp.ne.s32.totalorder %s156, %s170
      %p172 = scmp.eq.s32.totalorder %s33, 0
      %p173 = por %p171, %p172
      %s175 = sadd.s32 %s174, 1
      %p178 = scmp.eq.s32.totalorder %s27, 5
      %p179 = scmp.ne.s32.totalorder %s174, %s176
      %p180 = scmp.eq.s32.totalorder %s27, 0
      %p181 = por %p179, %p180
      %p182 = scmp.ne.s32.totalorder %s174, %s176
      %p183 = scmp.eq.s32.totalorder %s32, 5
      %p184 = por %p182, %p183
      %p185 = scmp.ne.s32.totalorder %s176, %s177
      %p186 = scmp.eq.s32.totalorder %s32, 0
      %p187 = por %p185, %p186
      %p188 = scmp.ne.s32.totalorder %s176, %s177
      %p189 = scmp.eq.s32.totalorder %s33, 5
      %p190 = por %p188, %p189
      %p192 = scmp.ne.s32.totalorder %s177, %s191
      %p193 = scmp.eq.s32.totalorder %s33, 0
      %p194 = por %p192, %p193
      %s196 = sadd.s32 %s195, 1
      %p199 = scmp.eq.s32.totalorder %s27, 5
      %p200 = scmp.ne.s32.totalorder %s195, %s197
      %p201 = scmp.eq.s32.totalorder %s27, 0
      %p202 = por %p200, %p201
      %p203 = scmp.ne.s32.totalorder %s195, %s197
      %p204 = scmp.eq.s32.totalorder %s32, 5
      %p205 = por %p203, %p204
      %p206 = scmp.ne.s32.totalorder %s197, %s198
      %p207 = scmp.eq.s32.totalorder %s32, 0
      %p208 = por %p206, %p207
      %p209 = scmp.ne.s32.totalorder %s197, %s198
      %p210 = scmp.eq.s32.totalorder %s33, 5
      %p211 = por %p209, %p210
      %p213 = scmp.ne.s32.totalorder %s198, %s212
      %p214 = scmp.eq.s32.totalorder %s33, 0
      %p215 = por %p213, %p214
      %s217 = sadd.s32 %s216, 1
      %p220 = scmp.eq.s32.totalorder %s27, 5
      %p221 = scmp.ne.s32.totalorder %s216, %s218
      %p222 = scmp.eq.s32.totalorder %s27, 0
      %p223 = por %p221, %p222
      %p224 = scmp.ne.s32.totalorder %s216, %s218
      %p225 = scmp.eq.s32.totalorder %s32, 5
      %p226 = por %p224, %p225
      %p227 = scmp.ne.s32.totalorder %s218, %s219
      %p228 = scmp.eq.s32.totalorder %s32, 0
      %p229 = por %p227, %p228
      %p230 = scmp.ne.s32.totalorder %s218, %s219
      %p231 = scmp.eq.s32.totalorder %s33, 5
      %p232 = por %p230, %p231
      %p234 = scmp.ne.s32.totalorder %s219, %s233
      %p235 = scmp.eq.s32.totalorder %s33, 0
      %p236 = por %p234, %p235
      %s238 = sadd.s32 %s237, 1
      %p241 = scmp.eq.s32.totalorder %s27, 5
      %p242 = scmp.ne.s32.totalorder %s237, %s239
      %p243 = scmp.eq.s32.totalorder %s27, 0
      %p244 = por %p242, %p243
      %p245 = scmp.ne.s32.totalorder %s237, %s239
      %p246 = scmp.eq.s32.totalorder %s32, 5
      %p247 = por %p245, %p246
      %p248 = scmp.ne.s32.totalorder %s239, %s240
      %p249 = scmp.eq.s32.totalorder %s32, 0
      %p250 = por %p248, %p249
      %p251 = scmp.ne.s32.totalorder %s239, %s240
      %p252 = scmp.eq.s32.totalorder %s33, 5
      %p253 = por %p251, %p252
      %p255 = scmp.ne.s32.totalorder %s240, %s254
      %p256 = scmp.eq.s32.totalorder %s33, 0
      %p257 = por %p255, %p256
      %s259 = sadd.s32 %s258, 1
      %p262 = scmp.eq.s32.totalorder %s27, 5
      %p263 = scmp.ne.s32.totalorder %s258, %s260
      %p264 = scmp.eq.s32.totalorder %s27, 0
      %p265 = por %p263, %p264
      %p266 = scmp.ne.s32.totalorder %s258, %s260
      %p267 = scmp.eq.s32.totalorder %s32, 5
      %p268 = por %p266, %p267
      %p269 = scmp.ne.s32.totalorder %s260, %s261
      %p270 = scmp.eq.s32.totalorder %s32, 0
      %p271 = por %p269, %p270
      %p272 = scmp.ne.s32.totalorder %s260, %s261
      %p273 = scmp.eq.s32.totalorder %s33, 5
      %p274 = por %p272, %p273
      %p276 = scmp.ne.s32.totalorder %s261, %s275
      %p277 = scmp.eq.s32.totalorder %s33, 0
      %p278 = por %p276, %p277
      %s279 = ssub.s32 %s35, %s42
      %s280 = ssub.s32 %s34, %s46
      %s281 = sor.u32 %s279, %s280
      %p282 = scmp.eq.s32.totalorder %s281, 0
      %s284 = sadd.s32 %s283, 1
      %s285 = scalar_select %p282, %s283, %s284
      %p288 = pneg %p282
      %p289 = scmp.eq.s32.totalorder %s27, 5
      %p290 = por %p288, %p289
      %p291 = scmp.ne.s32.totalorder %s283, %s286
      %p292 = scmp.eq.s32.totalorder %s27, 0
      %p293 = por %p291, %p292
      %p294 = scmp.ne.s32.totalorder %s283, %s286
      %p295 = scmp.eq.s32.totalorder %s32, 5
      %p296 = por %p294, %p295
      %p297 = scmp.ne.s32.totalorder %s286, %s287
      %p298 = scmp.eq.s32.totalorder %s32, 0
      %p299 = por %p297, %p298
      %p300 = scmp.ne.s32.totalorder %s286, %s287
      %p301 = scmp.eq.s32.totalorder %s33, 5
      %p302 = por %p300, %p301
      %p304 = scmp.ne.s32.totalorder %s287, %s303
      %p305 = scmp.eq.s32.totalorder %s33, 0
      %p306 = por %p304, %p305
      %p307 = scmp.le.s32.totalorder 1, %s27
      %p308 = scmp.lt.s32.totalorder %s27, 7
      %p309 = pnand %p307, %p308
      %p310 = pneg %p309
      // Predicated region
      $region9: #{tpu_custom_call.1} parent=5 // pred_check
        _
      $region10: #{tpu_custom_call.1} parent=5 // pred_check_branch
        %312 = sbr.rel (%p309) target = $region12
      $region11: #{tpu_custom_call.1} parent=5 // pred_region
        %s313 = ssub.s32 %s27, 1
        // Predicated region
        $region13: #{tpu_custom_call.1} parent=11 // pred_check
          %p314 = pneg %p93
        $region14: #{tpu_custom_call.1} parent=11 // pred_check_branch
          %316 = sbr.rel (%p314) target = $region16
        $region15: #{tpu_custom_call.1} parent=11 // pred_region
          %s318 = ssub.s32 1024, 1024
          %319 = vsyncadd [#allocation6], %s318
          %s320 = smul.addr %s36, 8
          %s321 = smul.addr %s320, 128
          %s322 = scalar_lea.hbm %s1, %s321
          %s323 = sshll.u32 [#allocation5], 4
          %s324 = int_to_ptr.vmem [resolvable:$true] %s323
          %329 = dma.hbm_to_vmem [thread:$0]  %s322, 1024, %s324, [#allocation6], 128, 128, 8
        $region16: #{tpu_custom_call.1} parent=11 // pred_fallthru
          _
        // Predicated region
        $region17: #{tpu_custom_call.1} parent=11 // pred_check
          %p330 = pneg %p119
        $region18: #{tpu_custom_call.1} parent=11 // pred_check_branch
          %332 = sbr.rel (%p330) target = $region20
        $region19: #{tpu_custom_call.1} parent=11 // pred_region
          %s334 = ssub.s32 1024, 1024
          %335 = vsyncadd [#allocation6], %s334
          %s336 = smul.addr %s36, 8
          %s337 = smul.addr %s336, 128
          %s338 = scalar_lea.hbm %s2, %s337
          %s339 = sshll.u32 [#allocation7], 4
          %s340 = int_to_ptr.vmem [resolvable:$true] %s339
          %345 = dma.hbm_to_vmem [thread:$0]  %s338, 1024, %s340, [#allocation6], 128, 128, 8
        $region20: #{tpu_custom_call.1} parent=11 // pred_fallthru
          _
        // Predicated region
        $region21: #{tpu_custom_call.1} parent=11 // pred_check
          %p346 = pneg %p145
        $region22: #{tpu_custom_call.1} parent=11 // pred_check_branch
          %348 = sbr.rel (%p346) target = $region24
        $region23: #{tpu_custom_call.1} parent=11 // pred_region
          %s350 = ssub.s32 512, 512
          %351 = vsyncadd [#allocation9], %s350
          %s352 = smul.addr %s36, 4
          %s353 = smul.addr %s352, 128
          %s354 = scalar_lea.hbm %s3, %s353
          %s355 = sshll.u32 [#allocation8], 4
          %s356 = int_to_ptr.vmem [resolvable:$true] %s355
          %361 = dma.hbm_to_vmem [thread:$0]  %s354, 512, %s356, [#allocation9], 128, 128, 8
        $region24: #{tpu_custom_call.1} parent=11 // pred_fallthru
          _
        // Predicated region
        $region25: #{tpu_custom_call.1} parent=11 // pred_check
          %p362 = pneg %p166
        $region26: #{tpu_custom_call.1} parent=11 // pred_check_branch
          %364 = sbr.rel (%p362) target = $region28
        $region27: #{tpu_custom_call.1} parent=11 // pred_region
          %s366 = ssub.s32 768, 768
          %367 = vsyncadd [#allocation9], %s366
          %s368 = sshll.u32 [#allocation10], 4
          %s369 = int_to_ptr.vmem [resolvable:$true] %s368
          %374 = dma.hbm_to_vmem [thread:$0]  %s4, 768, %s369, [#allocation9], 64, 64, 4
        $region28: #{tpu_custom_call.1} parent=11 // pred_fallthru
          _
        // Predicated region
        $region29: #{tpu_custom_call.1} parent=11 // pred_check
          %p375 = pneg %p187
        $region30: #{tpu_custom_call.1} parent=11 // pred_check_branch
          %377 = sbr.rel (%p375) target = $region32
        $region31: #{tpu_custom_call.1} parent=11 // pred_region
          %s379 = ssub.s32 3072, 3072
          %380 = vsyncadd [#allocation12], %s379
          %s381 = sshll.u32 [#allocation11], 4
          %s382 = int_to_ptr.vmem [resolvable:$true] %s381
          %387 = dma.hbm_to_vmem [thread:$0]  %s5, 3072, %s382, [#allocation12], 64, 64, 4
        $region32: #{tpu_custom_call.1} parent=11 // pred_fallthru
          _
        // Predicated region
        $region33: #{tpu_custom_call.1} parent=11 // pred_check
          %p388 = pneg %p208
        $region34: #{tpu_custom_call.1} parent=11 // pred_check_branch
          %390 = sbr.rel (%p388) target = $region36
        $region35: #{tpu_custom_call.1} parent=11 // pred_region
          %s392 = ssub.s32 768, 768
          %393 = vsyncadd [#allocation12], %s392
          %s394 = sshll.u32 [#allocation13], 4
          %s395 = int_to_ptr.vmem [resolvable:$true] %s394
          %400 = dma.hbm_to_vmem [thread:$0]  %s6, 768, %s395, [#allocation12], 64, 64, 4
        $region36: #{tpu_custom_call.1} parent=11 // pred_fallthru
          _
        // Predicated region
        $region37: #{tpu_custom_call.1} parent=11 // pred_check
          %p401 = pneg %p229
        $region38: #{tpu_custom_call.1} parent=11 // pred_check_branch
          %403 = sbr.rel (%p401) target = $region40
        $region39: #{tpu_custom_call.1} parent=11 // pred_region
          %s405 = ssub.s32 3072, 3072
          %406 = vsyncadd [#allocation15], %s405
          %s407 = sshll.u32 [#allocation14], 4
          %s408 = int_to_ptr.vmem [resolvable:$true] %s407
          %413 = dma.hbm_to_vmem [thread:$0]  %s7, 3072, %s408, [#allocation15], 64, 64, 4
        $region40: #{tpu_custom_call.1} parent=11 // pred_fallthru
          _
        // Predicated region
        $region41: #{tpu_custom_call.1} parent=11 // pred_check
          %p414 = pneg %p250
        $region42: #{tpu_custom_call.1} parent=11 // pred_check_branch
          %416 = sbr.rel (%p414) target = $region44
        $region43: #{tpu_custom_call.1} parent=11 // pred_region
          %s418 = ssub.s32 384, 384
          %419 = vsyncadd [#allocation15], %s418
          %s420 = sshll.u32 [#allocation16], 4
          %s421 = int_to_ptr.vmem [resolvable:$true] %s420
          %426 = dma.hbm_to_vmem [thread:$0]  %s8, 384, %s421, [#allocation15], 64, 64, 4
        $region44: #{tpu_custom_call.1} parent=11 // pred_fallthru
          _
        // Predicated region
        $region45: #{tpu_custom_call.1} parent=11 // pred_check
          %p427 = pneg %p271
        $region46: #{tpu_custom_call.1} parent=11 // pred_check_branch
          %429 = sbr.rel (%p427) target = $region48
        $region47: #{tpu_custom_call.1} parent=11 // pred_region
          %s431 = ssub.s32 3072, 3072
          %432 = vsyncadd [#allocation18], %s431
          %s433 = sshll.u32 [#allocation17], 4
          %s434 = int_to_ptr.vmem [resolvable:$true] %s433
          %439 = dma.hbm_to_vmem [thread:$0]  %s9, 3072, %s434, [#allocation18], 64, 64, 4
        $region48: #{tpu_custom_call.1} parent=11 // pred_fallthru
          _
      $region12: #{tpu_custom_call.1} parent=5 // pred_fallthru
        _
      %p440 = scmp.lt.s32.totalorder %s27, 6
      // Predicated region
      $region49: #{tpu_custom_call.1} parent=5 // pred_check
        %p441 = pneg %p440
      $region50: #{tpu_custom_call.1} parent=5 // pred_check_branch
        %443 = sbr.rel (%p441) target = $region52
      $region51: #{tpu_custom_call.1} parent=5 // pred_region
        // Predicated region
        $region53: #{tpu_custom_call.1} parent=51 // pred_check
          %p444 = pneg %p61
        $region54: #{tpu_custom_call.1} parent=51 // pred_check_branch
          %446 = sbr.rel (%p444) target = $region56
        $region55: #{tpu_custom_call.1} parent=51 // pred_region
          %s447 = sand.u32 %s51, 1
          %s448 = scalar_lea.sflag [#allocation3], %s447
          %s449 = sand.u32 %s51, 1
          %s450 = smul.addr %s449, 64
          %s451 = scalar_lea.vmem [#allocation2], %s450
          %s453 = ssub.s32 1024, 1024
          %454 = vsyncadd %s448, %s453
          %s455 = smul.addr %s34, 8
          %s456 = smul.addr %s35, 24
          %s457 = sadd.s32 %s455, %s456
          %s458 = smul.addr %s457, 128
          %s459 = scalar_lea.hbm %s0, %s458
          %s460 = sshll.u32 %s451, 4
          %s461 = int_to_ptr.vmem [resolvable:$true] %s460
          %466 = dma.hbm_to_vmem [thread:$0]  %s459, 1024, %s461, %s448, 128, 128, 8
        $region56: #{tpu_custom_call.1} parent=51 // pred_fallthru
          _
      $region52: #{tpu_custom_call.1} parent=5 // pred_fallthru
        _
      %p467 = scmp.le.s32.totalorder 1, %s27
      %p468 = scmp.lt.s32.totalorder %s27, 7
      %p469 = pnand %p467, %p468
      %p470 = pneg %p469
      // Predicated region
      $region57: #{tpu_custom_call.1} parent=5 // pred_check
        _
      $region58: #{tpu_custom_call.1} parent=5 // pred_check_branch
        %472 = sbr.rel (%p469) target = $region60
      $region59: #{tpu_custom_call.1} parent=5 // pred_region
        %s473 = ssub.s32 %s27, 1
        %s474 = sand.u32 %s54, 1
        %s475 = scalar_lea.sflag [#allocation3], %s474
        %s476 = sand.u32 %s54, 1
        %s477 = smul.addr %s476, 64
        %s478 = scalar_lea.vmem [#allocation2], %s477
        // Predicated region
        $region61: #{tpu_custom_call.1} parent=59 // pred_check
          %p479 = pneg %p67
        $region62: #{tpu_custom_call.1} parent=59 // pred_check_branch
          %481 = sbr.rel (%p479) target = $region64
        $region63: #{tpu_custom_call.1} parent=59 // pred_region
          %482 = dma.done %s475, 1024
        $region64: #{tpu_custom_call.1} parent=59 // pred_fallthru
          _
        // Predicated region
        $region65: #{tpu_custom_call.1} parent=59 // pred_check
          %p483 = pneg %p93
        $region66: #{tpu_custom_call.1} parent=59 // pred_check_branch
          %485 = sbr.rel (%p483) target = $region68
        $region67: #{tpu_custom_call.1} parent=59 // pred_region
          %486 = dma.done [#allocation6], 1024
        $region68: #{tpu_custom_call.1} parent=59 // pred_fallthru
          _
        // Predicated region
        $region69: #{tpu_custom_call.1} parent=59 // pred_check
          %p487 = pneg %p119
        $region70: #{tpu_custom_call.1} parent=59 // pred_check_branch
          %489 = sbr.rel (%p487) target = $region72
        $region71: #{tpu_custom_call.1} parent=59 // pred_region
          %490 = dma.done [#allocation6], 1024
        $region72: #{tpu_custom_call.1} parent=59 // pred_fallthru
          _
        // Predicated region
        $region73: #{tpu_custom_call.1} parent=59 // pred_check
          %p491 = pneg %p145
        $region74: #{tpu_custom_call.1} parent=59 // pred_check_branch
          %493 = sbr.rel (%p491) target = $region76
        $region75: #{tpu_custom_call.1} parent=59 // pred_region
          %494 = dma.done [#allocation9], 512
        $region76: #{tpu_custom_call.1} parent=59 // pred_fallthru
          _
        // Predicated region
        $region77: #{tpu_custom_call.1} parent=59 // pred_check
          %p495 = pneg %p166
        $region78: #{tpu_custom_call.1} parent=59 // pred_check_branch
          %497 = sbr.rel (%p495) target = $region80
        $region79: #{tpu_custom_call.1} parent=59 // pred_region
          %498 = dma.done [#allocation9], 768
        $region80: #{tpu_custom_call.1} parent=59 // pred_fallthru
          _
        // Predicated region
        $region81: #{tpu_custom_call.1} parent=59 // pred_check
          %p499 = pneg %p187
        $region82: #{tpu_custom_call.1} parent=59 // pred_check_branch
          %501 = sbr.rel (%p499) target = $region84
        $region83: #{tpu_custom_call.1} parent=59 // pred_region
          %502 = dma.done [#allocation12], 3072
        $region84: #{tpu_custom_call.1} parent=59 // pred_fallthru
          _
        // Predicated region
        $region85: #{tpu_custom_call.1} parent=59 // pred_check
          %p503 = pneg %p208
        $region86: #{tpu_custom_call.1} parent=59 // pred_check_branch
          %505 = sbr.rel (%p503) target = $region88
        $region87: #{tpu_custom_call.1} parent=59 // pred_region
          %506 = dma.done [#allocation12], 768
        $region88: #{tpu_custom_call.1} parent=59 // pred_fallthru
          _
        // Predicated region
        $region89: #{tpu_custom_call.1} parent=59 // pred_check
          %p507 = pneg %p229
        $region90: #{tpu_custom_call.1} parent=59 // pred_check_branch
          %509 = sbr.rel (%p507) target = $region92
        $region91: #{tpu_custom_call.1} parent=59 // pred_region
          %510 = dma.done [#allocation15], 3072
        $region92: #{tpu_custom_call.1} parent=59 // pred_fallthru
          _
        // Predicated region
        $region93: #{tpu_custom_call.1} parent=59 // pred_check
          %p511 = pneg %p250
        $region94: #{tpu_custom_call.1} parent=59 // pred_check_branch
          %513 = sbr.rel (%p511) target = $region96
        $region95: #{tpu_custom_call.1} parent=59 // pred_region
          %514 = dma.done [#allocation15], 384
        $region96: #{tpu_custom_call.1} parent=59 // pred_fallthru
          _
        // Predicated region
        $region97: #{tpu_custom_call.1} parent=59 // pred_check
          %p515 = pneg %p271
        $region98: #{tpu_custom_call.1} parent=59 // pred_check_branch
          %517 = sbr.rel (%p515) target = $region100
        $region99: #{tpu_custom_call.1} parent=59 // pred_region
          %518 = dma.done [#allocation18], 3072
        $region100: #{tpu_custom_call.1} parent=59 // pred_fallthru
          _
        %s519 = sand.u32 %s54, 1
        %s520 = scalar_lea.sflag [#allocation3], %s519
        %s521 = sand.u32 %s54, 1
        %s522 = smul.addr %s521, 64
        %s523 = scalar_lea.vmem [#allocation2], %s522
        %p524 = pneg %p67
        %p525 = pneg %p64
        %p526 = pneg %p93
        %p527 = pneg %p90
        %p528 = pneg %p119
        %p529 = pneg %p116
        %p530 = pneg %p145
        %p531 = pneg %p142
        %p532 = pneg %p166
        %p533 = pneg %p163
        %p534 = pneg %p187
        %p535 = pneg %p184
        %p536 = pneg %p208
        %p537 = pneg %p205
        %p538 = pneg %p229
        %p539 = pneg %p226
        %p540 = pneg %p250
        %p541 = pneg %p247
        %p542 = pneg %p271
        %p543 = pneg %p268
        %p544 = pneg %p299
        %p545 = pneg %p296
        %s546 = sand.u32 %s286, 1
        %s547 = scalar_lea.sflag [#allocation4], %s546
        %s548 = sand.u32 %s286, 1
        %s549 = smul.addr %s548, 32
        %s550 = scalar_lea.vmem [#allocation19], %s549
        %v552 = vld [vmem:[%s478] sm:$0xff]
        %v553 = vld [vmem:[%s478 + $0x8] sm:$0xff]
        %v554 = vld [vmem:[%s478 + $0x10] sm:$0xff]
        %v555 = vld [vmem:[%s478 + $0x18] sm:$0xff]
        %s556 = scalar_lea.vmem %s478, 32 [#allocation2]
        %v557 = vld [vmem:[%s556] sm:$0xff]
        %v558 = vld [vmem:[%s556 + $0x8] sm:$0xff]
        %v559 = vld [vmem:[%s556 + $0x10] sm:$0xff]
        %v560 = vld [vmem:[%s556 + $0x18] sm:$0xff]
        %v561 = vpack.c.bf16 %v553, %v552
        %v562 = vpack.c.bf16 %v555, %v554
        %v563 = vpack.c.bf16 %v558, %v557
        %v564 = vpack.c.bf16 %v560, %v559
        %v565 = vadd.f32 %v552, %v557
        %v566 = vadd.f32 %v553, %v558
        %v567 = vadd.f32 %v554, %v559
        %v568 = vadd.f32 %v555, %v560
        %v569 = vpack.c.bf16 %v566, %v565
        %v570 = vpack.c.bf16 %v568, %v567
        %v571 = vld [vmem:[#allocation10] sm:$0xf]
        %v572 = vld [vmem:[#allocation10 + $0x4] sm:$0xf]
        %v573 = vld [vmem:[#allocation10 + $0x8] sm:$0xf]
        %v574 = vld [vmem:[#allocation10 + $0xc] sm:$0xf]
        %v579 = vunpack.c.l.b16 %v571
        %v580 = vunpack.c.l.b16 %v572
        %v581 = vunpack.c.l.b16 %v573
        %v582 = vunpack.c.l.b16 %v574
        %v583 = vpack.c.b16 %v580, %v579
        %v584 = vpack.c.b16 %v582, %v581
        %vm585 = vcmask 261120
        %v587 = vsel %vm585, %v583, 0
        %v590 = vsel %vm585, %v584, 0
        %592 = vmatprep.subr.bf16.mxu0 0
        %593 = vmatpush1.bf16.msra.mxu0 0
        %594 = vmatprep.subr.bf16.mxu0 0
        %595 = vmatpush1.bf16.msra.mxu0 0
        %596 = vmatprep.subr.bf16.mxu0 0
        %597 = vmatpush1.bf16.msra.mxu0 0
        %598 = vmatprep.subr.bf16.mxu0 0
        %599 = vmatpush1.bf16.msra.mxu0 0
        %600 = vmatprep.subr.bf16.mxu0 0
        %601 = vmatpush1.bf16.msra.mxu0 0
        %602 = vmatprep.subr.bf16.mxu0 0
        %603 = vmatpush1.bf16.msra.mxu0 0
        %604 = vmatprep.subr.bf16.mxu0 0
        %605 = vmatpush1.bf16.msra.mxu0 %v562
        %606 = vmatprep.subr.bf16.mxu0 0
        %607 = vmatpush1.bf16.msra.mxu0 %v561
        %608 = vmatprep.subr.bf16.mxu0 0
        %609 = vmatpush2.bf16.msra.mxu0 0
        %610 = vmatprep.subr.bf16.mxu0 0
        %611 = vmatpush2.bf16.msra.mxu0 0
        %612 = vmatprep.subr.bf16.mxu0 0
        %613 = vmatpush2.bf16.msra.mxu0 0
        %614 = vmatprep.subr.bf16.mxu0 0
        %615 = vmatpush2.bf16.msra.mxu0 0
        %616 = vmatprep.subr.bf16.mxu0 0
        %617 = vmatpush2.bf16.msra.mxu0 0
        %618 = vmatprep.subr.bf16.mxu0 0
        %619 = vmatpush2.bf16.msra.mxu0 0
        %620 = vmatprep.subr.bf16.mxu0 0
        %621 = vmatpush2.bf16.msra.mxu0 0
        %622 = vmatprep.subr.bf16.mxu0 0
        %623 = vmatpush2.bf16.msra.mxu0 0
        %624 = vmatprep.mubr.bf16.mxu0 0
        %625 = vmatmul.mubr.bf16.gmra.mxu0 %v587
        %v626 = vpop.f32.mrf.mxu0
        %v627 = vadd.f32 0.0, %v626
        %v628 = vpop.f32.mrf.mxu0
        %v629 = vpop.f32.mrf.mxu0
        %v630 = vadd.f32 0.0, %v629
        %v631 = vpop.f32.mrf.mxu0
        %632 = vmatprep.mubr.bf16.mxu0 0
        %633 = vmatmul.mubr.bf16.gmra.mxu0 %v590
        %v634 = vpop.f32.mrf.mxu0
        %v635 = vadd.f32 0.0, %v634
        %v636 = vpop.f32.mrf.mxu0
        %v637 = vpop.f32.mrf.mxu0
        %v638 = vadd.f32 0.0, %v637
        %v639 = vpop.f32.mrf.mxu0
        %640 = vdwg.mxu0
        %s641 = scalar_lea.vmem [#allocation10], 16
        %v642 = vld [vmem:[%s641] sm:$0xf]
        %v643 = vld [vmem:[%s641 + $0x4] sm:$0xf]
        %v644 = vld [vmem:[%s641 + $0x8] sm:$0xf]
        %v645 = vld [vmem:[%s641 + $0xc] sm:$0xf]
        %v650 = vunpack.c.l.b16 %v642
        %v651 = vunpack.c.l.b16 %v643
        %v652 = vunpack.c.l.b16 %v644
        %v653 = vunpack.c.l.b16 %v645
        %v654 = vpack.c.b16 %v651, %v650
        %v655 = vpack.c.b16 %v653, %v652
        %v657 = vsel %vm585, %v654, 0
        %v660 = vsel %vm585, %v655, 0
        %662 = vmatprep.subr.bf16.mxu0 0
        %663 = vmatpush1.bf16.msra.mxu0 0
        %664 = vmatprep.subr.bf16.mxu0 0
        %665 = vmatpush1.bf16.msra.mxu0 0
        %666 = vmatprep.subr.bf16.mxu0 0
        %667 = vmatpush1.bf16.msra.mxu0 0
        %668 = vmatprep.subr.bf16.mxu0 0
        %669 = vmatpush1.bf16.msra.mxu0 0
        %670 = vmatprep.subr.bf16.mxu0 0
        %671 = vmatpush1.bf16.msra.mxu0 0
        %672 = vmatprep.subr.bf16.mxu0 0
        %673 = vmatpush1.bf16.msra.mxu0 0
        %674 = vmatprep.subr.bf16.mxu0 0
        %675 = vmatpush1.bf16.msra.mxu0 %v564
        %676 = vmatprep.subr.bf16.mxu0 0
        %677 = vmatpush1.bf16.msra.mxu0 %v563
        %678 = vmatprep.subr.bf16.mxu0 0
        %679 = vmatpush2.bf16.msra.mxu0 0
        %680 = vmatprep.subr.bf16.mxu0 0
        %681 = vmatpush2.bf16.msra.mxu0 0
        %682 = vmatprep.subr.bf16.mxu0 0
        %683 = vmatpush2.bf16.msra.mxu0 0
        %684 = vmatprep.subr.bf16.mxu0 0
        %685 = vmatpush2.bf16.msra.mxu0 0
        %686 = vmatprep.subr.bf16.mxu0 0
        %687 = vmatpush2.bf16.msra.mxu0 0
        %688 = vmatprep.subr.bf16.mxu0 0
        %689 = vmatpush2.bf16.msra.mxu0 0
        %690 = vmatprep.subr.bf16.mxu0 0
        %691 = vmatpush2.bf16.msra.mxu0 0
        %692 = vmatprep.subr.bf16.mxu0 0
        %693 = vmatpush2.bf16.msra.mxu0 0
        %694 = vmatprep.mubr.bf16.mxu0 0
        %695 = vmatmul.mubr.bf16.gmra.mxu0 %v657
        %v696 = vpop.f32.mrf.mxu0
        %v697 = vadd.f32 0.0, %v696
        %v698 = vpop.f32.mrf.mxu0
        %v699 = vpop.f32.mrf.mxu0
        %v700 = vadd.f32 0.0, %v699
        %v701 = vpop.f32.mrf.mxu0
        %702 = vmatprep.mubr.bf16.mxu0 0
        %703 = vmatmul.mubr.bf16.gmra.mxu0 %v660
        %v704 = vpop.f32.mrf.mxu0
        %v705 = vadd.f32 0.0, %v704
        %v706 = vpop.f32.mrf.mxu0
        %v707 = vpop.f32.mrf.mxu0
        %v708 = vadd.f32 0.0, %v707
        %v709 = vpop.f32.mrf.mxu0
        %710 = vdwg.mxu0
        %s711 = scalar_lea.vmem [#allocation10], 32
        %v712 = vld [vmem:[%s711] sm:$0xf]
        %v713 = vld [vmem:[%s711 + $0x4] sm:$0xf]
        %v714 = vld [vmem:[%s711 + $0x8] sm:$0xf]
        %v715 = vld [vmem:[%s711 + $0xc] sm:$0xf]
        %v720 = vunpack.c.l.b16 %v712
        %v721 = vunpack.c.l.b16 %v713
        %v722 = vunpack.c.l.b16 %v714
        %v723 = vunpack.c.l.b16 %v715
        %v724 = vpack.c.b16 %v721, %v720
        %v725 = vpack.c.b16 %v723, %v722
        %v727 = vsel %vm585, %v724, 0
        %v730 = vsel %vm585, %v725, 0
        %732 = vmatprep.subr.bf16.mxu0 0
        %733 = vmatpush1.bf16.msra.mxu0 0
        %734 = vmatprep.subr.bf16.mxu0 0
        %735 = vmatpush1.bf16.msra.mxu0 0
        %736 = vmatprep.subr.bf16.mxu0 0
        %737 = vmatpush1.bf16.msra.mxu0 0
        %738 = vmatprep.subr.bf16.mxu0 0
        %739 = vmatpush1.bf16.msra.mxu0 0
        %740 = vmatprep.subr.bf16.mxu0 0
        %741 = vmatpush1.bf16.msra.mxu0 0
        %742 = vmatprep.subr.bf16.mxu0 0
        %743 = vmatpush1.bf16.msra.mxu0 0
        %744 = vmatprep.subr.bf16.mxu0 0
        %745 = vmatpush1.bf16.msra.mxu0 %v570
        %746 = vmatprep.subr.bf16.mxu0 0
        %747 = vmatpush1.bf16.msra.mxu0 %v569
        %748 = vmatprep.subr.bf16.mxu0 0
        %749 = vmatpush2.bf16.msra.mxu0 0
        %750 = vmatprep.subr.bf16.mxu0 0
        %751 = vmatpush2.bf16.msra.mxu0 0
        %752 = vmatprep.subr.bf16.mxu0 0
        %753 = vmatpush2.bf16.msra.mxu0 0
        %754 = vmatprep.subr.bf16.mxu0 0
        %755 = vmatpush2.bf16.msra.mxu0 0
        %756 = vmatprep.subr.bf16.mxu0 0
        %757 = vmatpush2.bf16.msra.mxu0 0
        %758 = vmatprep.subr.bf16.mxu0 0
        %759 = vmatpush2.bf16.msra.mxu0 0
        %760 = vmatprep.subr.bf16.mxu0 0
        %761 = vmatpush2.bf16.msra.mxu0 0
        %762 = vmatprep.subr.bf16.mxu0 0
        %763 = vmatpush2.bf16.msra.mxu0 0
        %764 = vmatprep.mubr.bf16.mxu0 0
        %765 = vmatmul.mubr.bf16.gmra.mxu0 %v727
        %v766 = vpop.f32.mrf.mxu0
        %v767 = vadd.f32 0.0, %v766
        %v768 = vpop.f32.mrf.mxu0
        %v769 = vpop.f32.mrf.mxu0
        %v770 = vadd.f32 0.0, %v769
        %v771 = vpop.f32.mrf.mxu0
        %772 = vmatprep.mubr.bf16.mxu0 0
        %773 = vmatmul.mubr.bf16.gmra.mxu0 %v730
        %v774 = vpop.f32.mrf.mxu0
        %v775 = vadd.f32 0.0, %v774
        %v776 = vpop.f32.mrf.mxu0
        %v777 = vpop.f32.mrf.mxu0
        %v778 = vadd.f32 0.0, %v777
        %v779 = vpop.f32.mrf.mxu0
        %780 = vdwg.mxu0
        %v781 = vsub.f32 %v627, %v697
        %v782 = vsub.f32 %v630, %v700
        %v783 = vsub.f32 %v635, %v705
        %v784 = vsub.f32 %v638, %v708
        %v785 = vsub.f32 %v767, %v627
        %v786 = vsub.f32 %v770, %v630
        %v787 = vsub.f32 %v775, %v635
        %v788 = vsub.f32 %v778, %v638
        %v789 = vsub.f32 %v785, %v697
        %v790 = vsub.f32 %v786, %v700
        %v791 = vsub.f32 %v787, %v705
        %v792 = vsub.f32 %v788, %v708
        %v793 = vpack.c.bf16 %v782, %v781
        %v794 = vpack.c.bf16 %v784, %v783
        %v795 = vpack.c.bf16 %v790, %v789
        %v796 = vpack.c.bf16 %v792, %v791
        %v797 = vadd.f32 %v781, %v789
        %v798 = vadd.f32 %v782, %v790
        %v799 = vadd.f32 %v783, %v791
        %v800 = vadd.f32 %v784, %v792
        %v801 = vpack.c.bf16 %v798, %v797
        %v802 = vpack.c.bf16 %v800, %v799
        %v803 = vld [vmem:[#allocation11] sm:$0xf]
        %v804 = vld [vmem:[#allocation11 + $0x4] sm:$0xf]
        %v805 = vld [vmem:[#allocation11 + $0x8] sm:$0xf]
        %v806 = vld [vmem:[#allocation11 + $0xc] sm:$0xf]
        %v807 = vld [vmem:[#allocation11 + $0x10] sm:$0xf]
        %v808 = vld [vmem:[#allocation11 + $0x14] sm:$0xf]
        %v809 = vld [vmem:[#allocation11 + $0x18] sm:$0xf]
        %v810 = vld [vmem:[#allocation11 + $0x1c] sm:$0xf]
        %v811 = vld [vmem:[#allocation11 + $0x20] sm:$0xf]
        %v812 = vld [vmem:[#allocation11 + $0x24] sm:$0xf]
        %v813 = vld [vmem:[#allocation11 + $0x28] sm:$0xf]
        %v814 = vld [vmem:[#allocation11 + $0x2c] sm:$0xf]
        %v815 = vld [vmem:[#allocation11 + $0x30] sm:$0xf]
        %v816 = vld [vmem:[#allocation11 + $0x34] sm:$0xf]
        %v817 = vld [vmem:[#allocation11 + $0x38] sm:$0xf]
        %v818 = vld [vmem:[#allocation11 + $0x3c] sm:$0xf]
        %v835 = vunpack.c.l.b16 %v803
        %v836 = vunpack.c.l.b16 %v804
        %v837 = vunpack.c.l.b16 %v805
        %v838 = vunpack.c.l.b16 %v806
        %v839 = vunpack.c.l.b16 %v807
        %v840 = vunpack.c.l.b16 %v808
        %v841 = vunpack.c.l.b16 %v809
        %v842 = vunpack.c.l.b16 %v810
        %v843 = vunpack.c.l.b16 %v811
        %v844 = vunpack.c.l.b16 %v812
        %v845 = vunpack.c.l.b16 %v813
        %v846 = vunpack.c.l.b16 %v814
        %v847 = vunpack.c.l.b16 %v815
        %v848 = vunpack.c.l.b16 %v816
        %v849 = vunpack.c.l.b16 %v817
        %v850 = vunpack.c.l.b16 %v818
        %v851 = vpack.c.b16 %v836, %v835
        %v852 = vpack.c.b16 %v838, %v837
        %v853 = vpack.c.b16 %v840, %v839
        %v854 = vpack.c.b16 %v842, %v841
        %v855 = vpack.c.b16 %v844, %v843
        %v856 = vpack.c.b16 %v846, %v845
        %v857 = vpack.c.b16 %v848, %v847
        %v858 = vpack.c.b16 %v850, %v849
        %867 = vmatprep.subr.bf16.mxu0 0
        %868 = vmatpush1.bf16.msra.mxu0 %v858
        %869 = vmatprep.subr.bf16.mxu0 0
        %870 = vmatpush1.bf16.msra.mxu0 %v857
        %871 = vmatprep.subr.bf16.mxu0 0
        %872 = vmatpush1.bf16.msra.mxu0 %v856
        %873 = vmatprep.subr.bf16.mxu0 0
        %874 = vmatpush1.bf16.msra.mxu0 %v855
        %875 = vmatprep.subr.bf16.mxu0 0
        %876 = vmatpush1.bf16.msra.mxu0 %v854
        %877 = vmatprep.subr.bf16.mxu0 0
        %878 = vmatpush1.bf16.msra.mxu0 %v853
        %879 = vmatprep.subr.bf16.mxu0 0
        %880 = vmatpush1.bf16.msra.mxu0 %v852
        %881 = vmatprep.subr.bf16.mxu0 0
        %882 = vmatpush1.bf16.msra.mxu0 %v851
        %883 = vmatprep.subr.bf16.mxu0 0
        %884 = vmatpush2.bf16.msra.mxu0 0
        %885 = vmatprep.subr.bf16.mxu0 0
        %886 = vmatpush2.bf16.msra.mxu0 0
        %887 = vmatprep.subr.bf16.mxu0 0
        %888 = vmatpush2.bf16.msra.mxu0 0
        %889 = vmatprep.subr.bf16.mxu0 0
        %890 = vmatpush2.bf16.msra.mxu0 0
        %891 = vmatprep.subr.bf16.mxu0 0
        %892 = vmatpush2.bf16.msra.mxu0 0
        %893 = vmatprep.subr.bf16.mxu0 0
        %894 = vmatpush2.bf16.msra.mxu0 0
        %895 = vmatprep.subr.bf16.mxu0 0
        %896 = vmatpush2.bf16.msra.mxu0 0
        %897 = vmatprep.subr.bf16.mxu0 0
        %898 = vmatpush2.bf16.msra.mxu0 0
        %899 = vmatprep.mubr.bf16.mxu0 0
        %900 = vmatmul.mubr.bf16.gmra.mxu0 %v793
        %v901 = vpop.f32.mrf.mxu0
        %v902 = vadd.f32 0.0, %v901
        %v903 = vpop.f32.mrf.mxu0
        %v904 = vpop.f32.mrf.mxu0
        %v905 = vadd.f32 0.0, %v904
        %v906 = vpop.f32.mrf.mxu0
        %907 = vmatprep.mubr.bf16.mxu0 0
        %908 = vmatmul.mubr.bf16.gmra.mxu0 %v794
        %v909 = vpop.f32.mrf.mxu0
        %v910 = vadd.f32 0.0, %v909
        %v911 = vpop.f32.mrf.mxu0
        %v912 = vpop.f32.mrf.mxu0
        %v913 = vadd.f32 0.0, %v912
        %v914 = vpop.f32.mrf.mxu0
        %915 = vdwg.mxu0
        %s916 = scalar_lea.vmem [#allocation11], 64
        %v917 = vld [vmem:[%s916] sm:$0xf]
        %v918 = vld [vmem:[%s916 + $0x4] sm:$0xf]
        %v919 = vld [vmem:[%s916 + $0x8] sm:$0xf]
        %v920 = vld [vmem:[%s916 + $0xc] sm:$0xf]
        %v921 = vld [vmem:[%s916 + $0x10] sm:$0xf]
        %v922 = vld [vmem:[%s916 + $0x14] sm:$0xf]
        %v923 = vld [vmem:[%s916 + $0x18] sm:$0xf]
        %v924 = vld [vmem:[%s916 + $0x1c] sm:$0xf]
        %v925 = vld [vmem:[%s916 + $0x20] sm:$0xf]
        %v926 = vld [vmem:[%s916 + $0x24] sm:$0xf]
        %v927 = vld [vmem:[%s916 + $0x28] sm:$0xf]
        %v928 = vld [vmem:[%s916 + $0x2c] sm:$0xf]
        %v929 = vld [vmem:[%s916 + $0x30] sm:$0xf]
        %v930 = vld [vmem:[%s916 + $0x34] sm:$0xf]
        %v931 = vld [vmem:[%s916 + $0x38] sm:$0xf]
        %v932 = vld [vmem:[%s916 + $0x3c] sm:$0xf]
        %v949 = vunpack.c.l.b16 %v917
        %v950 = vunpack.c.l.b16 %v918
        %v951 = vunpack.c.l.b16 %v919
        %v952 = vunpack.c.l.b16 %v920
        %v953 = vunpack.c.l.b16 %v921
        %v954 = vunpack.c.l.b16 %v922
        %v955 = vunpack.c.l.b16 %v923
        %v956 = vunpack.c.l.b16 %v924
        %v957 = vunpack.c.l.b16 %v925
        %v958 = vunpack.c.l.b16 %v926
        %v959 = vunpack.c.l.b16 %v927
        %v960 = vunpack.c.l.b16 %v928
        %v961 = vunpack.c.l.b16 %v929
        %v962 = vunpack.c.l.b16 %v930
        %v963 = vunpack.c.l.b16 %v931
        %v964 = vunpack.c.l.b16 %v932
        %v965 = vpack.c.b16 %v950, %v949
        %v966 = vpack.c.b16 %v952, %v951
        %v967 = vpack.c.b16 %v954, %v953
        %v968 = vpack.c.b16 %v956, %v955
        %v969 = vpack.c.b16 %v958, %v957
        %v970 = vpack.c.b16 %v960, %v959
        %v971 = vpack.c.b16 %v962, %v961
        %v972 = vpack.c.b16 %v964, %v963
        %981 = vmatprep.subr.bf16.mxu0 0
        %982 = vmatpush1.bf16.msra.mxu0 %v972
        %983 = vmatprep.subr.bf16.mxu0 0
        %984 = vmatpush1.bf16.msra.mxu0 %v971
        %985 = vmatprep.subr.bf16.mxu0 0
        %986 = vmatpush1.bf16.msra.mxu0 %v970
        %987 = vmatprep.subr.bf16.mxu0 0
        %988 = vmatpush1.bf16.msra.mxu0 %v969
        %989 = vmatprep.subr.bf16.mxu0 0
        %990 = vmatpush1.bf16.msra.mxu0 %v968
        %991 = vmatprep.subr.bf16.mxu0 0
        %992 = vmatpush1.bf16.msra.mxu0 %v967
        %993 = vmatprep.subr.bf16.mxu0 0
        %994 = vmatpush1.bf16.msra.mxu0 %v966
        %995 = vmatprep.subr.bf16.mxu0 0
        %996 = vmatpush1.bf16.msra.mxu0 %v965
        %997 = vmatprep.subr.bf16.mxu0 0
        %998 = vmatpush2.bf16.msra.mxu0 0
        %999 = vmatprep.subr.bf16.mxu0 0
        %1000 = vmatpush2.bf16.msra.mxu0 0
        %1001 = vmatprep.subr.bf16.mxu0 0
        %1002 = vmatpush2.bf16.msra.mxu0 0
        %1003 = vmatprep.subr.bf16.mxu0 0
        %1004 = vmatpush2.bf16.msra.mxu0 0
        %1005 = vmatprep.subr.bf16.mxu0 0
        %1006 = vmatpush2.bf16.msra.mxu0 0
        %1007 = vmatprep.subr.bf16.mxu0 0
        %1008 = vmatpush2.bf16.msra.mxu0 0
        %1009 = vmatprep.subr.bf16.mxu0 0
        %1010 = vmatpush2.bf16.msra.mxu0 0
        %1011 = vmatprep.subr.bf16.mxu0 0
        %1012 = vmatpush2.bf16.msra.mxu0 0
        %1013 = vmatprep.mubr.bf16.mxu0 0
        %1014 = vmatmul.mubr.bf16.gmra.mxu0 %v795
        %v1015 = vpop.f32.mrf.mxu0
        %v1016 = vadd.f32 0.0, %v1015
        %v1017 = vpop.f32.mrf.mxu0
        %v1018 = vpop.f32.mrf.mxu0
        %v1019 = vadd.f32 0.0, %v1018
        %v1020 = vpop.f32.mrf.mxu0
        %1021 = vmatprep.mubr.bf16.mxu0 0
        %1022 = vmatmul.mubr.bf16.gmra.mxu0 %v796
        %v1023 = vpop.f32.mrf.mxu0
        %v1024 = vadd.f32 0.0, %v1023
        %v1025 = vpop.f32.mrf.mxu0
        %v1026 = vpop.f32.mrf.mxu0
        %v1027 = vadd.f32 0.0, %v1026
        %v1028 = vpop.f32.mrf.mxu0
        %1029 = vdwg.mxu0
        %s1030 = scalar_lea.vmem [#allocation11], 128
        %v1031 = vld [vmem:[%s1030] sm:$0xf]
        %v1032 = vld [vmem:[%s1030 + $0x4] sm:$0xf]
        %v1033 = vld [vmem:[%s1030 + $0x8] sm:$0xf]
        %v1034 = vld [vmem:[%s1030 + $0xc] sm:$0xf]
        %v1035 = vld [vmem:[%s1030 + $0x10] sm:$0xf]
        %v1036 = vld [vmem:[%s1030 + $0x14] sm:$0xf]
        %v1037 = vld [vmem:[%s1030 + $0x18] sm:$0xf]
        %v1038 = vld [vmem:[%s1030 + $0x1c] sm:$0xf]
        %v1039 = vld [vmem:[%s1030 + $0x20] sm:$0xf]
        %v1040 = vld [vmem:[%s1030 + $0x24] sm:$0xf]
        %v1041 = vld [vmem:[%s1030 + $0x28] sm:$0xf]
        %v1042 = vld [vmem:[%s1030 + $0x2c] sm:$0xf]
        %v1043 = vld [vmem:[%s1030 + $0x30] sm:$0xf]
        %v1044 = vld [vmem:[%s1030 + $0x34] sm:$0xf]
        %v1045 = vld [vmem:[%s1030 + $0x38] sm:$0xf]
        %v1046 = vld [vmem:[%s1030 + $0x3c] sm:$0xf]
        %v1063 = vunpack.c.l.b16 %v1031
        %v1064 = vunpack.c.l.b16 %v1032
        %v1065 = vunpack.c.l.b16 %v1033
        %v1066 = vunpack.c.l.b16 %v1034
        %v1067 = vunpack.c.l.b16 %v1035
        %v1068 = vunpack.c.l.b16 %v1036
        %v1069 = vunpack.c.l.b16 %v1037
        %v1070 = vunpack.c.l.b16 %v1038
        %v1071 = vunpack.c.l.b16 %v1039
        %v1072 = vunpack.c.l.b16 %v1040
        %v1073 = vunpack.c.l.b16 %v1041
        %v1074 = vunpack.c.l.b16 %v1042
        %v1075 = vunpack.c.l.b16 %v1043
        %v1076 = vunpack.c.l.b16 %v1044
        %v1077 = vunpack.c.l.b16 %v1045
        %v1078 = vunpack.c.l.b16 %v1046
        %v1079 = vpack.c.b16 %v1064, %v1063
        %v1080 = vpack.c.b16 %v1066, %v1065
        %v1081 = vpack.c.b16 %v1068, %v1067
        %v1082 = vpack.c.b16 %v1070, %v1069
        %v1083 = vpack.c.b16 %v1072, %v1071
        %v1084 = vpack.c.b16 %v1074, %v1073
        %v1085 = vpack.c.b16 %v1076, %v1075
        %v1086 = vpack.c.b16 %v1078, %v1077
        %1095 = vmatprep.subr.bf16.mxu0 0
        %1096 = vmatpush1.bf16.msra.mxu0 %v1086
        %1097 = vmatprep.subr.bf16.mxu0 0
        %1098 = vmatpush1.bf16.msra.mxu0 %v1085
        %1099 = vmatprep.subr.bf16.mxu0 0
        %1100 = vmatpush1.bf16.msra.mxu0 %v1084
        %1101 = vmatprep.subr.bf16.mxu0 0
        %1102 = vmatpush1.bf16.msra.mxu0 %v1083
        %1103 = vmatprep.subr.bf16.mxu0 0
        %1104 = vmatpush1.bf16.msra.mxu0 %v1082
        %1105 = vmatprep.subr.bf16.mxu0 0
        %1106 = vmatpush1.bf16.msra.mxu0 %v1081
        %1107 = vmatprep.subr.bf16.mxu0 0
        %1108 = vmatpush1.bf16.msra.mxu0 %v1080
        %1109 = vmatprep.subr.bf16.mxu0 0
        %1110 = vmatpush1.bf16.msra.mxu0 %v1079
        %1111 = vmatprep.subr.bf16.mxu0 0
        %1112 = vmatpush2.bf16.msra.mxu0 0
        %1113 = vmatprep.subr.bf16.mxu0 0
        %1114 = vmatpush2.bf16.msra.mxu0 0
        %1115 = vmatprep.subr.bf16.mxu0 0
        %1116 = vmatpush2.bf16.msra.mxu0 0
        %1117 = vmatprep.subr.bf16.mxu0 0
        %1118 = vmatpush2.bf16.msra.mxu0 0
        %1119 = vmatprep.subr.bf16.mxu0 0
        %1120 = vmatpush2.bf16.msra.mxu0 0
        %1121 = vmatprep.subr.bf16.mxu0 0
        %1122 = vmatpush2.bf16.msra.mxu0 0
        %1123 = vmatprep.subr.bf16.mxu0 0
        %1124 = vmatpush2.bf16.msra.mxu0 0
        %1125 = vmatprep.subr.bf16.mxu0 0
        %1126 = vmatpush2.bf16.msra.mxu0 0
        %1127 = vmatprep.mubr.bf16.mxu0 0
        %1128 = vmatmul.mubr.bf16.gmra.mxu0 %v801
        %v1129 = vpop.f32.mrf.mxu0
        %v1130 = vadd.f32 0.0, %v1129
        %v1131 = vpop.f32.mrf.mxu0
        %v1132 = vpop.f32.mrf.mxu0
        %v1133 = vadd.f32 0.0, %v1132
        %v1134 = vpop.f32.mrf.mxu0
        %1135 = vmatprep.mubr.bf16.mxu0 0
        %1136 = vmatmul.mubr.bf16.gmra.mxu0 %v802
        %v1137 = vpop.f32.mrf.mxu0
        %v1138 = vadd.f32 0.0, %v1137
        %v1139 = vpop.f32.mrf.mxu0
        %v1140 = vpop.f32.mrf.mxu0
        %v1141 = vadd.f32 0.0, %v1140
        %v1142 = vpop.f32.mrf.mxu0
        %1143 = vdwg.mxu0
        %v1144 = vsub.f32 %v902, %v1016
        %v1145 = vsub.f32 %v905, %v1019
        %v1146 = vsub.f32 %v910, %v1024
        %v1147 = vsub.f32 %v913, %v1027
        %v1148 = vsub.f32 %v1130, %v902
        %v1149 = vsub.f32 %v1133, %v905
        %v1150 = vsub.f32 %v1138, %v910
        %v1151 = vsub.f32 %v1141, %v913
        %v1152 = vsub.f32 %v1148, %v1016
        %v1153 = vsub.f32 %v1149, %v1019
        %v1154 = vsub.f32 %v1150, %v1024
        %v1155 = vsub.f32 %v1151, %v1027
        %v1156 = vld [vmem:[#allocation5] sm:$0xff]
        %v1157 = vld [vmem:[#allocation5 + $0x8] sm:$0xff]
        %v1158 = vld [vmem:[#allocation5 + $0x10] sm:$0xff]
        %v1159 = vld [vmem:[#allocation5 + $0x18] sm:$0xff]
        %s1160 = scalar_lea.vmem [#allocation5], 32
        %v1161 = vld [vmem:[%s1160] sm:$0xff]
        %v1162 = vld [vmem:[%s1160 + $0x8] sm:$0xff]
        %v1163 = vld [vmem:[%s1160 + $0x10] sm:$0xff]
        %v1164 = vld [vmem:[%s1160 + $0x18] sm:$0xff]
        %v1165 = vmul.f32 %v1144, %v1156
        %v1166 = vmul.f32 %v1145, %v1157
        %v1167 = vmul.f32 %v1146, %v1158
        %v1168 = vmul.f32 %v1147, %v1159
        %v1169 = vmul.f32 %v1152, %v1161
        %v1170 = vmul.f32 %v1153, %v1162
        %v1171 = vmul.f32 %v1154, %v1163
        %v1172 = vmul.f32 %v1155, %v1164
        %v1173 = vsub.f32 %v1165, %v1169
        %v1174 = vsub.f32 %v1166, %v1170
        %v1175 = vsub.f32 %v1167, %v1171
        %v1176 = vsub.f32 %v1168, %v1172
        %v1177 = vmul.f32 %v1144, %v1161
        %v1178 = vmul.f32 %v1145, %v1162
        %v1179 = vmul.f32 %v1146, %v1163
        %v1180 = vmul.f32 %v1147, %v1164
        %v1181 = vmul.f32 %v1152, %v1156
        %v1182 = vmul.f32 %v1153, %v1157
        %v1183 = vmul.f32 %v1154, %v1158
        %v1184 = vmul.f32 %v1155, %v1159
        %v1185 = vadd.f32 %v1177, %v1181
        %v1186 = vadd.f32 %v1178, %v1182
        %v1187 = vadd.f32 %v1179, %v1183
        %v1188 = vadd.f32 %v1180, %v1184
        %v1189 = vpack.c.bf16 %v1174, %v1173
        %v1190 = vpack.c.bf16 %v1176, %v1175
        %v1191 = vpack.c.bf16 %v1186, %v1185
        %v1192 = vpack.c.bf16 %v1188, %v1187
        %v1193 = vadd.f32 %v1173, %v1185
        %v1194 = vadd.f32 %v1174, %v1186
        %v1195 = vadd.f32 %v1175, %v1187
        %v1196 = vadd.f32 %v1176, %v1188
        %v1197 = vpack.c.bf16 %v1194, %v1193
        %v1198 = vpack.c.bf16 %v1196, %v1195
        %v1199 = vld [vmem:[#allocation13] sm:$0xf]
        %v1200 = vld [vmem:[#allocation13 + $0x4] sm:$0xf]
        %v1201 = vld [vmem:[#allocation13 + $0x8] sm:$0xf]
        %v1202 = vld [vmem:[#allocation13 + $0xc] sm:$0xf]
        %v1207 = vunpack.c.l.b16 %v1199
        %v1208 = vunpack.c.l.b16 %v1200
        %v1209 = vunpack.c.l.b16 %v1201
        %v1210 = vunpack.c.l.b16 %v1202
        %v1211 = vpack.c.b16 %v1208, %v1207
        %v1212 = vpack.c.b16 %v1210, %v1209
        %v1214 = vsel %vm585, %v1211, 0
        %v1217 = vsel %vm585, %v1212, 0
        %1219 = vmatprep.subr.bf16.mxu0 0
        %1220 = vmatpush1.bf16.msra.mxu0 0
        %1221 = vmatprep.subr.bf16.mxu0 0
        %1222 = vmatpush1.bf16.msra.mxu0 0
        %1223 = vmatprep.subr.bf16.mxu0 0
        %1224 = vmatpush1.bf16.msra.mxu0 0
        %1225 = vmatprep.subr.bf16.mxu0 0
        %1226 = vmatpush1.bf16.msra.mxu0 0
        %1227 = vmatprep.subr.bf16.mxu0 0
        %1228 = vmatpush1.bf16.msra.mxu0 0
        %1229 = vmatprep.subr.bf16.mxu0 0
        %1230 = vmatpush1.bf16.msra.mxu0 0
        %1231 = vmatprep.subr.bf16.mxu0 0
        %1232 = vmatpush1.bf16.msra.mxu0 %v1190
        %1233 = vmatprep.subr.bf16.mxu0 0
        %1234 = vmatpush1.bf16.msra.mxu0 %v1189
        %1235 = vmatprep.subr.bf16.mxu0 0
        %1236 = vmatpush2.bf16.msra.mxu0 0
        %1237 = vmatprep.subr.bf16.mxu0 0
        %1238 = vmatpush2.bf16.msra.mxu0 0
        %1239 = vmatprep.subr.bf16.mxu0 0
        %1240 = vmatpush2.bf16.msra.mxu0 0
        %1241 = vmatprep.subr.bf16.mxu0 0
        %1242 = vmatpush2.bf16.msra.mxu0 0
        %1243 = vmatprep.subr.bf16.mxu0 0
        %1244 = vmatpush2.bf16.msra.mxu0 0
        %1245 = vmatprep.subr.bf16.mxu0 0
        %1246 = vmatpush2.bf16.msra.mxu0 0
        %1247 = vmatprep.subr.bf16.mxu0 0
        %1248 = vmatpush2.bf16.msra.mxu0 0
        %1249 = vmatprep.subr.bf16.mxu0 0
        %1250 = vmatpush2.bf16.msra.mxu0 0
        %1251 = vmatprep.mubr.bf16.mxu0 0
        %1252 = vmatmul.mubr.bf16.gmra.mxu0 %v1214
        %v1253 = vpop.f32.mrf.mxu0
        %v1254 = vadd.f32 0.0, %v1253
        %v1255 = vpop.f32.mrf.mxu0
        %v1256 = vpop.f32.mrf.mxu0
        %v1257 = vadd.f32 0.0, %v1256
        %v1258 = vpop.f32.mrf.mxu0
        %1259 = vmatprep.mubr.bf16.mxu0 0
        %1260 = vmatmul.mubr.bf16.gmra.mxu0 %v1217
        %v1261 = vpop.f32.mrf.mxu0
        %v1262 = vadd.f32 0.0, %v1261
        %v1263 = vpop.f32.mrf.mxu0
        %v1264 = vpop.f32.mrf.mxu0
        %v1265 = vadd.f32 0.0, %v1264
        %v1266 = vpop.f32.mrf.mxu0
        %1267 = vdwg.mxu0
        %s1268 = scalar_lea.vmem [#allocation13], 16
        %v1269 = vld [vmem:[%s1268] sm:$0xf]
        %v1270 = vld [vmem:[%s1268 + $0x4] sm:$0xf]
        %v1271 = vld [vmem:[%s1268 + $0x8] sm:$0xf]
        %v1272 = vld [vmem:[%s1268 + $0xc] sm:$0xf]
        %v1277 = vunpack.c.l.b16 %v1269
        %v1278 = vunpack.c.l.b16 %v1270
        %v1279 = vunpack.c.l.b16 %v1271
        %v1280 = vunpack.c.l.b16 %v1272
        %v1281 = vpack.c.b16 %v1278, %v1277
        %v1282 = vpack.c.b16 %v1280, %v1279
        %v1284 = vsel %vm585, %v1281, 0
        %v1287 = vsel %vm585, %v1282, 0
        %1289 = vmatprep.subr.bf16.mxu0 0
        %1290 = vmatpush1.bf16.msra.mxu0 0
        %1291 = vmatprep.subr.bf16.mxu0 0
        %1292 = vmatpush1.bf16.msra.mxu0 0
        %1293 = vmatprep.subr.bf16.mxu0 0
        %1294 = vmatpush1.bf16.msra.mxu0 0
        %1295 = vmatprep.subr.bf16.mxu0 0
        %1296 = vmatpush1.bf16.msra.mxu0 0
        %1297 = vmatprep.subr.bf16.mxu0 0
        %1298 = vmatpush1.bf16.msra.mxu0 0
        %1299 = vmatprep.subr.bf16.mxu0 0
        %1300 = vmatpush1.bf16.msra.mxu0 0
        %1301 = vmatprep.subr.bf16.mxu0 0
        %1302 = vmatpush1.bf16.msra.mxu0 %v1192
        %1303 = vmatprep.subr.bf16.mxu0 0
        %1304 = vmatpush1.bf16.msra.mxu0 %v1191
        %1305 = vmatprep.subr.bf16.mxu0 0
        %1306 = vmatpush2.bf16.msra.mxu0 0
        %1307 = vmatprep.subr.bf16.mxu0 0
        %1308 = vmatpush2.bf16.msra.mxu0 0
        %1309 = vmatprep.subr.bf16.mxu0 0
        %1310 = vmatpush2.bf16.msra.mxu0 0
        %1311 = vmatprep.subr.bf16.mxu0 0
        %1312 = vmatpush2.bf16.msra.mxu0 0
        %1313 = vmatprep.subr.bf16.mxu0 0
        %1314 = vmatpush2.bf16.msra.mxu0 0
        %1315 = vmatprep.subr.bf16.mxu0 0
        %1316 = vmatpush2.bf16.msra.mxu0 0
        %1317 = vmatprep.subr.bf16.mxu0 0
        %1318 = vmatpush2.bf16.msra.mxu0 0
        %1319 = vmatprep.subr.bf16.mxu0 0
        %1320 = vmatpush2.bf16.msra.mxu0 0
        %1321 = vmatprep.mubr.bf16.mxu0 0
        %1322 = vmatmul.mubr.bf16.gmra.mxu0 %v1284
        %v1323 = vpop.f32.mrf.mxu0
        %v1324 = vadd.f32 0.0, %v1323
        %v1325 = vpop.f32.mrf.mxu0
        %v1326 = vpop.f32.mrf.mxu0
        %v1327 = vadd.f32 0.0, %v1326
        %v1328 = vpop.f32.mrf.mxu0
        %1329 = vmatprep.mubr.bf16.mxu0 0
        %1330 = vmatmul.mubr.bf16.gmra.mxu0 %v1287
        %v1331 = vpop.f32.mrf.mxu0
        %v1332 = vadd.f32 0.0, %v1331
        %v1333 = vpop.f32.mrf.mxu0
        %v1334 = vpop.f32.mrf.mxu0
        %v1335 = vadd.f32 0.0, %v1334
        %v1336 = vpop.f32.mrf.mxu0
        %1337 = vdwg.mxu0
        %s1338 = scalar_lea.vmem [#allocation13], 32
        %v1339 = vld [vmem:[%s1338] sm:$0xf]
        %v1340 = vld [vmem:[%s1338 + $0x4] sm:$0xf]
        %v1341 = vld [vmem:[%s1338 + $0x8] sm:$0xf]
        %v1342 = vld [vmem:[%s1338 + $0xc] sm:$0xf]
        %v1347 = vunpack.c.l.b16 %v1339
        %v1348 = vunpack.c.l.b16 %v1340
        %v1349 = vunpack.c.l.b16 %v1341
        %v1350 = vunpack.c.l.b16 %v1342
        %v1351 = vpack.c.b16 %v1348, %v1347
        %v1352 = vpack.c.b16 %v1350, %v1349
        %v1354 = vsel %vm585, %v1351, 0
        %v1357 = vsel %vm585, %v1352, 0
        %1359 = vmatprep.subr.bf16.mxu0 0
        %1360 = vmatpush1.bf16.msra.mxu0 0
        %1361 = vmatprep.subr.bf16.mxu0 0
        %1362 = vmatpush1.bf16.msra.mxu0 0
        %1363 = vmatprep.subr.bf16.mxu0 0
        %1364 = vmatpush1.bf16.msra.mxu0 0
        %1365 = vmatprep.subr.bf16.mxu0 0
        %1366 = vmatpush1.bf16.msra.mxu0 0
        %1367 = vmatprep.subr.bf16.mxu0 0
        %1368 = vmatpush1.bf16.msra.mxu0 0
        %1369 = vmatprep.subr.bf16.mxu0 0
        %1370 = vmatpush1.bf16.msra.mxu0 0
        %1371 = vmatprep.subr.bf16.mxu0 0
        %1372 = vmatpush1.bf16.msra.mxu0 %v1198
        %1373 = vmatprep.subr.bf16.mxu0 0
        %1374 = vmatpush1.bf16.msra.mxu0 %v1197
        %1375 = vmatprep.subr.bf16.mxu0 0
        %1376 = vmatpush2.bf16.msra.mxu0 0
        %1377 = vmatprep.subr.bf16.mxu0 0
        %1378 = vmatpush2.bf16.msra.mxu0 0
        %1379 = vmatprep.subr.bf16.mxu0 0
        %1380 = vmatpush2.bf16.msra.mxu0 0
        %1381 = vmatprep.subr.bf16.mxu0 0
        %1382 = vmatpush2.bf16.msra.mxu0 0
        %1383 = vmatprep.subr.bf16.mxu0 0
        %1384 = vmatpush2.bf16.msra.mxu0 0
        %1385 = vmatprep.subr.bf16.mxu0 0
        %1386 = vmatpush2.bf16.msra.mxu0 0
        %1387 = vmatprep.subr.bf16.mxu0 0
        %1388 = vmatpush2.bf16.msra.mxu0 0
        %1389 = vmatprep.subr.bf16.mxu0 0
        %1390 = vmatpush2.bf16.msra.mxu0 0
        %1391 = vmatprep.mubr.bf16.mxu0 0
        %1392 = vmatmul.mubr.bf16.gmra.mxu0 %v1354
        %v1393 = vpop.f32.mrf.mxu0
        %v1394 = vadd.f32 0.0, %v1393
        %v1395 = vpop.f32.mrf.mxu0
        %v1396 = vpop.f32.mrf.mxu0
        %v1397 = vadd.f32 0.0, %v1396
        %v1398 = vpop.f32.mrf.mxu0
        %1399 = vmatprep.mubr.bf16.mxu0 0
        %1400 = vmatmul.mubr.bf16.gmra.mxu0 %v1357
        %v1401 = vpop.f32.mrf.mxu0
        %v1402 = vadd.f32 0.0, %v1401
        %v1403 = vpop.f32.mrf.mxu0
        %v1404 = vpop.f32.mrf.mxu0
        %v1405 = vadd.f32 0.0, %v1404
        %v1406 = vpop.f32.mrf.mxu0
        %1407 = vdwg.mxu0
        %v1408 = vsub.f32 %v1254, %v1324
        %v1409 = vsub.f32 %v1257, %v1327
        %v1410 = vsub.f32 %v1262, %v1332
        %v1411 = vsub.f32 %v1265, %v1335
        %v1412 = vsub.f32 %v1394, %v1254
        %v1413 = vsub.f32 %v1397, %v1257
        %v1414 = vsub.f32 %v1402, %v1262
        %v1415 = vsub.f32 %v1405, %v1265
        %v1416 = vsub.f32 %v1412, %v1324
        %v1417 = vsub.f32 %v1413, %v1327
        %v1418 = vsub.f32 %v1414, %v1332
        %v1419 = vsub.f32 %v1415, %v1335
        %v1420 = vpack.c.bf16 %v1409, %v1408
        %v1421 = vpack.c.bf16 %v1411, %v1410
        %v1422 = vpack.c.bf16 %v1417, %v1416
        %v1423 = vpack.c.bf16 %v1419, %v1418
        %v1424 = vadd.f32 %v1408, %v1416
        %v1425 = vadd.f32 %v1409, %v1417
        %v1426 = vadd.f32 %v1410, %v1418
        %v1427 = vadd.f32 %v1411, %v1419
        %v1428 = vpack.c.bf16 %v1425, %v1424
        %v1429 = vpack.c.bf16 %v1427, %v1426
        %v1430 = vld [vmem:[#allocation14] sm:$0xf]
        %v1431 = vld [vmem:[#allocation14 + $0x4] sm:$0xf]
        %v1432 = vld [vmem:[#allocation14 + $0x8] sm:$0xf]
        %v1433 = vld [vmem:[#allocation14 + $0xc] sm:$0xf]
        %v1434 = vld [vmem:[#allocation14 + $0x10] sm:$0xf]
        %v1435 = vld [vmem:[#allocation14 + $0x14] sm:$0xf]
        %v1436 = vld [vmem:[#allocation14 + $0x18] sm:$0xf]
        %v1437 = vld [vmem:[#allocation14 + $0x1c] sm:$0xf]
        %v1438 = vld [vmem:[#allocation14 + $0x20] sm:$0xf]
        %v1439 = vld [vmem:[#allocation14 + $0x24] sm:$0xf]
        %v1440 = vld [vmem:[#allocation14 + $0x28] sm:$0xf]
        %v1441 = vld [vmem:[#allocation14 + $0x2c] sm:$0xf]
        %v1442 = vld [vmem:[#allocation14 + $0x30] sm:$0xf]
        %v1443 = vld [vmem:[#allocation14 + $0x34] sm:$0xf]
        %v1444 = vld [vmem:[#allocation14 + $0x38] sm:$0xf]
        %v1445 = vld [vmem:[#allocation14 + $0x3c] sm:$0xf]
        %v1462 = vunpack.c.l.b16 %v1430
        %v1463 = vunpack.c.l.b16 %v1431
        %v1464 = vunpack.c.l.b16 %v1432
        %v1465 = vunpack.c.l.b16 %v1433
        %v1466 = vunpack.c.l.b16 %v1434
        %v1467 = vunpack.c.l.b16 %v1435
        %v1468 = vunpack.c.l.b16 %v1436
        %v1469 = vunpack.c.l.b16 %v1437
        %v1470 = vunpack.c.l.b16 %v1438
        %v1471 = vunpack.c.l.b16 %v1439
        %v1472 = vunpack.c.l.b16 %v1440
        %v1473 = vunpack.c.l.b16 %v1441
        %v1474 = vunpack.c.l.b16 %v1442
        %v1475 = vunpack.c.l.b16 %v1443
        %v1476 = vunpack.c.l.b16 %v1444
        %v1477 = vunpack.c.l.b16 %v1445
        %v1478 = vpack.c.b16 %v1463, %v1462
        %v1479 = vpack.c.b16 %v1465, %v1464
        %v1480 = vpack.c.b16 %v1467, %v1466
        %v1481 = vpack.c.b16 %v1469, %v1468
        %v1482 = vpack.c.b16 %v1471, %v1470
        %v1483 = vpack.c.b16 %v1473, %v1472
        %v1484 = vpack.c.b16 %v1475, %v1474
        %v1485 = vpack.c.b16 %v1477, %v1476
        %1494 = vmatprep.subr.bf16.mxu0 0
        %1495 = vmatpush1.bf16.msra.mxu0 %v1485
        %1496 = vmatprep.subr.bf16.mxu0 0
        %1497 = vmatpush1.bf16.msra.mxu0 %v1484
        %1498 = vmatprep.subr.bf16.mxu0 0
        %1499 = vmatpush1.bf16.msra.mxu0 %v1483
        %1500 = vmatprep.subr.bf16.mxu0 0
        %1501 = vmatpush1.bf16.msra.mxu0 %v1482
        %1502 = vmatprep.subr.bf16.mxu0 0
        %1503 = vmatpush1.bf16.msra.mxu0 %v1481
        %1504 = vmatprep.subr.bf16.mxu0 0
        %1505 = vmatpush1.bf16.msra.mxu0 %v1480
        %1506 = vmatprep.subr.bf16.mxu0 0
        %1507 = vmatpush1.bf16.msra.mxu0 %v1479
        %1508 = vmatprep.subr.bf16.mxu0 0
        %1509 = vmatpush1.bf16.msra.mxu0 %v1478
        %1510 = vmatprep.subr.bf16.mxu0 0
        %1511 = vmatpush2.bf16.msra.mxu0 0
        %1512 = vmatprep.subr.bf16.mxu0 0
        %1513 = vmatpush2.bf16.msra.mxu0 0
        %1514 = vmatprep.subr.bf16.mxu0 0
        %1515 = vmatpush2.bf16.msra.mxu0 0
        %1516 = vmatprep.subr.bf16.mxu0 0
        %1517 = vmatpush2.bf16.msra.mxu0 0
        %1518 = vmatprep.subr.bf16.mxu0 0
        %1519 = vmatpush2.bf16.msra.mxu0 0
        %1520 = vmatprep.subr.bf16.mxu0 0
        %1521 = vmatpush2.bf16.msra.mxu0 0
        %1522 = vmatprep.subr.bf16.mxu0 0
        %1523 = vmatpush2.bf16.msra.mxu0 0
        %1524 = vmatprep.subr.bf16.mxu0 0
        %1525 = vmatpush2.bf16.msra.mxu0 0
        %1526 = vmatprep.mubr.bf16.mxu0 0
        %1527 = vmatmul.mubr.bf16.gmra.mxu0 %v1420
        %v1528 = vpop.f32.mrf.mxu0
        %v1529 = vadd.f32 0.0, %v1528
        %v1530 = vpop.f32.mrf.mxu0
        %v1531 = vpop.f32.mrf.mxu0
        %v1532 = vadd.f32 0.0, %v1531
        %v1533 = vpop.f32.mrf.mxu0
        %1534 = vmatprep.mubr.bf16.mxu0 0
        %1535 = vmatmul.mubr.bf16.gmra.mxu0 %v1421
        %v1536 = vpop.f32.mrf.mxu0
        %v1537 = vadd.f32 0.0, %v1536
        %v1538 = vpop.f32.mrf.mxu0
        %v1539 = vpop.f32.mrf.mxu0
        %v1540 = vadd.f32 0.0, %v1539
        %v1541 = vpop.f32.mrf.mxu0
        %1542 = vdwg.mxu0
        %s1543 = scalar_lea.vmem [#allocation14], 64
        %v1544 = vld [vmem:[%s1543] sm:$0xf]
        %v1545 = vld [vmem:[%s1543 + $0x4] sm:$0xf]
        %v1546 = vld [vmem:[%s1543 + $0x8] sm:$0xf]
        %v1547 = vld [vmem:[%s1543 + $0xc] sm:$0xf]
        %v1548 = vld [vmem:[%s1543 + $0x10] sm:$0xf]
        %v1549 = vld [vmem:[%s1543 + $0x14] sm:$0xf]
        %v1550 = vld [vmem:[%s1543 + $0x18] sm:$0xf]
        %v1551 = vld [vmem:[%s1543 + $0x1c] sm:$0xf]
        %v1552 = vld [vmem:[%s1543 + $0x20] sm:$0xf]
        %v1553 = vld [vmem:[%s1543 + $0x24] sm:$0xf]
        %v1554 = vld [vmem:[%s1543 + $0x28] sm:$0xf]
        %v1555 = vld [vmem:[%s1543 + $0x2c] sm:$0xf]
        %v1556 = vld [vmem:[%s1543 + $0x30] sm:$0xf]
        %v1557 = vld [vmem:[%s1543 + $0x34] sm:$0xf]
        %v1558 = vld [vmem:[%s1543 + $0x38] sm:$0xf]
        %v1559 = vld [vmem:[%s1543 + $0x3c] sm:$0xf]
        %v1576 = vunpack.c.l.b16 %v1544
        %v1577 = vunpack.c.l.b16 %v1545
        %v1578 = vunpack.c.l.b16 %v1546
        %v1579 = vunpack.c.l.b16 %v1547
        %v1580 = vunpack.c.l.b16 %v1548
        %v1581 = vunpack.c.l.b16 %v1549
        %v1582 = vunpack.c.l.b16 %v1550
        %v1583 = vunpack.c.l.b16 %v1551
        %v1584 = vunpack.c.l.b16 %v1552
        %v1585 = vunpack.c.l.b16 %v1553
        %v1586 = vunpack.c.l.b16 %v1554
        %v1587 = vunpack.c.l.b16 %v1555
        %v1588 = vunpack.c.l.b16 %v1556
        %v1589 = vunpack.c.l.b16 %v1557
        %v1590 = vunpack.c.l.b16 %v1558
        %v1591 = vunpack.c.l.b16 %v1559
        %v1592 = vpack.c.b16 %v1577, %v1576
        %v1593 = vpack.c.b16 %v1579, %v1578
        %v1594 = vpack.c.b16 %v1581, %v1580
        %v1595 = vpack.c.b16 %v1583, %v1582
        %v1596 = vpack.c.b16 %v1585, %v1584
        %v1597 = vpack.c.b16 %v1587, %v1586
        %v1598 = vpack.c.b16 %v1589, %v1588
        %v1599 = vpack.c.b16 %v1591, %v1590
        %1608 = vmatprep.subr.bf16.mxu0 0
        %1609 = vmatpush1.bf16.msra.mxu0 %v1599
        %1610 = vmatprep.subr.bf16.mxu0 0
        %1611 = vmatpush1.bf16.msra.mxu0 %v1598
        %1612 = vmatprep.subr.bf16.mxu0 0
        %1613 = vmatpush1.bf16.msra.mxu0 %v1597
        %1614 = vmatprep.subr.bf16.mxu0 0
        %1615 = vmatpush1.bf16.msra.mxu0 %v1596
        %1616 = vmatprep.subr.bf16.mxu0 0
        %1617 = vmatpush1.bf16.msra.mxu0 %v1595
        %1618 = vmatprep.subr.bf16.mxu0 0
        %1619 = vmatpush1.bf16.msra.mxu0 %v1594
        %1620 = vmatprep.subr.bf16.mxu0 0
        %1621 = vmatpush1.bf16.msra.mxu0 %v1593
        %1622 = vmatprep.subr.bf16.mxu0 0
        %1623 = vmatpush1.bf16.msra.mxu0 %v1592
        %1624 = vmatprep.subr.bf16.mxu0 0
        %1625 = vmatpush2.bf16.msra.mxu0 0
        %1626 = vmatprep.subr.bf16.mxu0 0
        %1627 = vmatpush2.bf16.msra.mxu0 0
        %1628 = vmatprep.subr.bf16.mxu0 0
        %1629 = vmatpush2.bf16.msra.mxu0 0
        %1630 = vmatprep.subr.bf16.mxu0 0
        %1631 = vmatpush2.bf16.msra.mxu0 0
        %1632 = vmatprep.subr.bf16.mxu0 0
        %1633 = vmatpush2.bf16.msra.mxu0 0
        %1634 = vmatprep.subr.bf16.mxu0 0
        %1635 = vmatpush2.bf16.msra.mxu0 0
        %1636 = vmatprep.subr.bf16.mxu0 0
        %1637 = vmatpush2.bf16.msra.mxu0 0
        %1638 = vmatprep.subr.bf16.mxu0 0
        %1639 = vmatpush2.bf16.msra.mxu0 0
        %1640 = vmatprep.mubr.bf16.mxu0 0
        %1641 = vmatmul.mubr.bf16.gmra.mxu0 %v1422
        %v1642 = vpop.f32.mrf.mxu0
        %v1643 = vadd.f32 0.0, %v1642
        %v1644 = vpop.f32.mrf.mxu0
        %v1645 = vpop.f32.mrf.mxu0
        %v1646 = vadd.f32 0.0, %v1645
        %v1647 = vpop.f32.mrf.mxu0
        %1648 = vmatprep.mubr.bf16.mxu0 0
        %1649 = vmatmul.mubr.bf16.gmra.mxu0 %v1423
        %v1650 = vpop.f32.mrf.mxu0
        %v1651 = vadd.f32 0.0, %v1650
        %v1652 = vpop.f32.mrf.mxu0
        %v1653 = vpop.f32.mrf.mxu0
        %v1654 = vadd.f32 0.0, %v1653
        %v1655 = vpop.f32.mrf.mxu0
        %1656 = vdwg.mxu0
        %s1657 = scalar_lea.vmem [#allocation14], 128
        %v1658 = vld [vmem:[%s1657] sm:$0xf]
        %v1659 = vld [vmem:[%s1657 + $0x4] sm:$0xf]
        %v1660 = vld [vmem:[%s1657 + $0x8] sm:$0xf]
        %v1661 = vld [vmem:[%s1657 + $0xc] sm:$0xf]
        %v1662 = vld [vmem:[%s1657 + $0x10] sm:$0xf]
        %v1663 = vld [vmem:[%s1657 + $0x14] sm:$0xf]
        %v1664 = vld [vmem:[%s1657 + $0x18] sm:$0xf]
        %v1665 = vld [vmem:[%s1657 + $0x1c] sm:$0xf]
        %v1666 = vld [vmem:[%s1657 + $0x20] sm:$0xf]
        %v1667 = vld [vmem:[%s1657 + $0x24] sm:$0xf]
        %v1668 = vld [vmem:[%s1657 + $0x28] sm:$0xf]
        %v1669 = vld [vmem:[%s1657 + $0x2c] sm:$0xf]
        %v1670 = vld [vmem:[%s1657 + $0x30] sm:$0xf]
        %v1671 = vld [vmem:[%s1657 + $0x34] sm:$0xf]
        %v1672 = vld [vmem:[%s1657 + $0x38] sm:$0xf]
        %v1673 = vld [vmem:[%s1657 + $0x3c] sm:$0xf]
        %v1690 = vunpack.c.l.b16 %v1658
        %v1691 = vunpack.c.l.b16 %v1659
        %v1692 = vunpack.c.l.b16 %v1660
        %v1693 = vunpack.c.l.b16 %v1661
        %v1694 = vunpack.c.l.b16 %v1662
        %v1695 = vunpack.c.l.b16 %v1663
        %v1696 = vunpack.c.l.b16 %v1664
        %v1697 = vunpack.c.l.b16 %v1665
        %v1698 = vunpack.c.l.b16 %v1666
        %v1699 = vunpack.c.l.b16 %v1667
        %v1700 = vunpack.c.l.b16 %v1668
        %v1701 = vunpack.c.l.b16 %v1669
        %v1702 = vunpack.c.l.b16 %v1670
        %v1703 = vunpack.c.l.b16 %v1671
        %v1704 = vunpack.c.l.b16 %v1672
        %v1705 = vunpack.c.l.b16 %v1673
        %v1706 = vpack.c.b16 %v1691, %v1690
        %v1707 = vpack.c.b16 %v1693, %v1692
        %v1708 = vpack.c.b16 %v1695, %v1694
        %v1709 = vpack.c.b16 %v1697, %v1696
        %v1710 = vpack.c.b16 %v1699, %v1698
        %v1711 = vpack.c.b16 %v1701, %v1700
        %v1712 = vpack.c.b16 %v1703, %v1702
        %v1713 = vpack.c.b16 %v1705, %v1704
        %1722 = vmatprep.subr.bf16.mxu0 0
        %1723 = vmatpush1.bf16.msra.mxu0 %v1713
        %1724 = vmatprep.subr.bf16.mxu0 0
        %1725 = vmatpush1.bf16.msra.mxu0 %v1712
        %1726 = vmatprep.subr.bf16.mxu0 0
        %1727 = vmatpush1.bf16.msra.mxu0 %v1711
        %1728 = vmatprep.subr.bf16.mxu0 0
        %1729 = vmatpush1.bf16.msra.mxu0 %v1710
        %1730 = vmatprep.subr.bf16.mxu0 0
        %1731 = vmatpush1.bf16.msra.mxu0 %v1709
        %1732 = vmatprep.subr.bf16.mxu0 0
        %1733 = vmatpush1.bf16.msra.mxu0 %v1708
        %1734 = vmatprep.subr.bf16.mxu0 0
        %1735 = vmatpush1.bf16.msra.mxu0 %v1707
        %1736 = vmatprep.subr.bf16.mxu0 0
        %1737 = vmatpush1.bf16.msra.mxu0 %v1706
        %1738 = vmatprep.subr.bf16.mxu0 0
        %1739 = vmatpush2.bf16.msra.mxu0 0
        %1740 = vmatprep.subr.bf16.mxu0 0
        %1741 = vmatpush2.bf16.msra.mxu0 0
        %1742 = vmatprep.subr.bf16.mxu0 0
        %1743 = vmatpush2.bf16.msra.mxu0 0
        %1744 = vmatprep.subr.bf16.mxu0 0
        %1745 = vmatpush2.bf16.msra.mxu0 0
        %1746 = vmatprep.subr.bf16.mxu0 0
        %1747 = vmatpush2.bf16.msra.mxu0 0
        %1748 = vmatprep.subr.bf16.mxu0 0
        %1749 = vmatpush2.bf16.msra.mxu0 0
        %1750 = vmatprep.subr.bf16.mxu0 0
        %1751 = vmatpush2.bf16.msra.mxu0 0
        %1752 = vmatprep.subr.bf16.mxu0 0
        %1753 = vmatpush2.bf16.msra.mxu0 0
        %1754 = vmatprep.mubr.bf16.mxu0 0
        %1755 = vmatmul.mubr.bf16.gmra.mxu0 %v1428
        %v1756 = vpop.f32.mrf.mxu0
        %v1757 = vadd.f32 0.0, %v1756
        %v1758 = vpop.f32.mrf.mxu0
        %v1759 = vpop.f32.mrf.mxu0
        %v1760 = vadd.f32 0.0, %v1759
        %v1761 = vpop.f32.mrf.mxu0
        %1762 = vmatprep.mubr.bf16.mxu0 0
        %1763 = vmatmul.mubr.bf16.gmra.mxu0 %v1429
        %v1764 = vpop.f32.mrf.mxu0
        %v1765 = vadd.f32 0.0, %v1764
        %v1766 = vpop.f32.mrf.mxu0
        %v1767 = vpop.f32.mrf.mxu0
        %v1768 = vadd.f32 0.0, %v1767
        %v1769 = vpop.f32.mrf.mxu0
        %1770 = vdwg.mxu0
        %v1771 = vsub.f32 %v1529, %v1643
        %v1772 = vsub.f32 %v1532, %v1646
        %v1773 = vsub.f32 %v1537, %v1651
        %v1774 = vsub.f32 %v1540, %v1654
        %v1775 = vsub.f32 %v1757, %v1529
        %v1776 = vsub.f32 %v1760, %v1532
        %v1777 = vsub.f32 %v1765, %v1537
        %v1778 = vsub.f32 %v1768, %v1540
        %v1779 = vsub.f32 %v1775, %v1643
        %v1780 = vsub.f32 %v1776, %v1646
        %v1781 = vsub.f32 %v1777, %v1651
        %v1782 = vsub.f32 %v1778, %v1654
        %v1783 = vld [vmem:[#allocation7] sm:$0xff]
        %v1784 = vld [vmem:[#allocation7 + $0x8] sm:$0xff]
        %v1785 = vld [vmem:[#allocation7 + $0x10] sm:$0xff]
        %v1786 = vld [vmem:[#allocation7 + $0x18] sm:$0xff]
        %s1787 = scalar_lea.vmem [#allocation7], 32
        %v1788 = vld [vmem:[%s1787] sm:$0xff]
        %v1789 = vld [vmem:[%s1787 + $0x8] sm:$0xff]
        %v1790 = vld [vmem:[%s1787 + $0x10] sm:$0xff]
        %v1791 = vld [vmem:[%s1787 + $0x18] sm:$0xff]
        %v1792 = vmul.f32 %v1771, %v1783
        %v1793 = vmul.f32 %v1772, %v1784
        %v1794 = vmul.f32 %v1773, %v1785
        %v1795 = vmul.f32 %v1774, %v1786
        %v1796 = vmul.f32 %v1779, %v1788
        %v1797 = vmul.f32 %v1780, %v1789
        %v1798 = vmul.f32 %v1781, %v1790
        %v1799 = vmul.f32 %v1782, %v1791
        %v1800 = vsub.f32 %v1792, %v1796
        %v1801 = vsub.f32 %v1793, %v1797
        %v1802 = vsub.f32 %v1794, %v1798
        %v1803 = vsub.f32 %v1795, %v1799
        %v1804 = vmul.f32 %v1771, %v1788
        %v1805 = vmul.f32 %v1772, %v1789
        %v1806 = vmul.f32 %v1773, %v1790
        %v1807 = vmul.f32 %v1774, %v1791
        %v1808 = vmul.f32 %v1779, %v1783
        %v1809 = vmul.f32 %v1780, %v1784
        %v1810 = vmul.f32 %v1781, %v1785
        %v1811 = vmul.f32 %v1782, %v1786
        %v1812 = vadd.f32 %v1804, %v1808
        %v1813 = vadd.f32 %v1805, %v1809
        %v1814 = vadd.f32 %v1806, %v1810
        %v1815 = vadd.f32 %v1807, %v1811
        %v1816 = vpack.c.bf16 %v1801, %v1800
        %v1817 = vpack.c.bf16 %v1803, %v1802
        %v1818 = vpack.c.bf16 %v1813, %v1812
        %v1819 = vpack.c.bf16 %v1815, %v1814
        %v1820 = vadd.f32 %v1800, %v1812
        %v1821 = vadd.f32 %v1801, %v1813
        %v1822 = vadd.f32 %v1802, %v1814
        %v1823 = vadd.f32 %v1803, %v1815
        %v1824 = vpack.c.bf16 %v1821, %v1820
        %v1825 = vpack.c.bf16 %v1823, %v1822
        %v1826 = vld [vmem:[#allocation16] sm:$0xf]
        %v1827 = vld [vmem:[#allocation16 + $0x4] sm:$0xf]
        %v1830 = vunpack.c.l.b16 %v1826
        %v1831 = vunpack.c.l.b16 %v1827
        %v1832 = vpack.c.b16 %v1831, %v1830
        %v1834 = vsel %vm585, %v1832, 0
        %1836 = vmatprep.subr.bf16.mxu0 0
        %1837 = vmatpush1.bf16.msra.mxu0 0
        %1838 = vmatprep.subr.bf16.mxu0 0
        %1839 = vmatpush1.bf16.msra.mxu0 0
        %1840 = vmatprep.subr.bf16.mxu0 0
        %1841 = vmatpush1.bf16.msra.mxu0 0
        %1842 = vmatprep.subr.bf16.mxu0 0
        %1843 = vmatpush1.bf16.msra.mxu0 0
        %1844 = vmatprep.subr.bf16.mxu0 0
        %1845 = vmatpush1.bf16.msra.mxu0 0
        %1846 = vmatprep.subr.bf16.mxu0 0
        %1847 = vmatpush1.bf16.msra.mxu0 0
        %1848 = vmatprep.subr.bf16.mxu0 0
        %1849 = vmatpush1.bf16.msra.mxu0 %v1817
        %1850 = vmatprep.subr.bf16.mxu0 0
        %1851 = vmatpush1.bf16.msra.mxu0 %v1816
        %1852 = vmatprep.subr.bf16.mxu0 0
        %1853 = vmatpush2.bf16.msra.mxu0 0
        %1854 = vmatprep.subr.bf16.mxu0 0
        %1855 = vmatpush2.bf16.msra.mxu0 0
        %1856 = vmatprep.subr.bf16.mxu0 0
        %1857 = vmatpush2.bf16.msra.mxu0 0
        %1858 = vmatprep.subr.bf16.mxu0 0
        %1859 = vmatpush2.bf16.msra.mxu0 0
        %1860 = vmatprep.subr.bf16.mxu0 0
        %1861 = vmatpush2.bf16.msra.mxu0 0
        %1862 = vmatprep.subr.bf16.mxu0 0
        %1863 = vmatpush2.bf16.msra.mxu0 0
        %1864 = vmatprep.subr.bf16.mxu0 0
        %1865 = vmatpush2.bf16.msra.mxu0 0
        %1866 = vmatprep.subr.bf16.mxu0 0
        %1867 = vmatpush2.bf16.msra.mxu0 0
        %1868 = vmatprep.mubr.bf16.mxu0 0
        %1869 = vmatmul.mubr.bf16.gmra.mxu0 %v1834
        %v1870 = vpop.f32.mrf.mxu0
        %v1871 = vadd.f32 0.0, %v1870
        %v1872 = vpop.f32.mrf.mxu0
        %v1873 = vpop.f32.mrf.mxu0
        %v1874 = vadd.f32 0.0, %v1873
        %v1875 = vpop.f32.mrf.mxu0
        %1876 = vdwg.mxu0
        %s1877 = scalar_lea.vmem [#allocation16], 8
        %v1878 = vld [vmem:[%s1877] sm:$0xf]
        %v1879 = vld [vmem:[%s1877 + $0x4] sm:$0xf]
        %v1882 = vunpack.c.l.b16 %v1878
        %v1883 = vunpack.c.l.b16 %v1879
        %v1884 = vpack.c.b16 %v1883, %v1882
        %v1886 = vsel %vm585, %v1884, 0
        %1888 = vmatprep.subr.bf16.mxu0 0
        %1889 = vmatpush1.bf16.msra.mxu0 0
        %1890 = vmatprep.subr.bf16.mxu0 0
        %1891 = vmatpush1.bf16.msra.mxu0 0
        %1892 = vmatprep.subr.bf16.mxu0 0
        %1893 = vmatpush1.bf16.msra.mxu0 0
        %1894 = vmatprep.subr.bf16.mxu0 0
        %1895 = vmatpush1.bf16.msra.mxu0 0
        %1896 = vmatprep.subr.bf16.mxu0 0
        %1897 = vmatpush1.bf16.msra.mxu0 0
        %1898 = vmatprep.subr.bf16.mxu0 0
        %1899 = vmatpush1.bf16.msra.mxu0 0
        %1900 = vmatprep.subr.bf16.mxu0 0
        %1901 = vmatpush1.bf16.msra.mxu0 %v1819
        %1902 = vmatprep.subr.bf16.mxu0 0
        %1903 = vmatpush1.bf16.msra.mxu0 %v1818
        %1904 = vmatprep.subr.bf16.mxu0 0
        %1905 = vmatpush2.bf16.msra.mxu0 0
        %1906 = vmatprep.subr.bf16.mxu0 0
        %1907 = vmatpush2.bf16.msra.mxu0 0
        %1908 = vmatprep.subr.bf16.mxu0 0
        %1909 = vmatpush2.bf16.msra.mxu0 0
        %1910 = vmatprep.subr.bf16.mxu0 0
        %1911 = vmatpush2.bf16.msra.mxu0 0
        %1912 = vmatprep.subr.bf16.mxu0 0
        %1913 = vmatpush2.bf16.msra.mxu0 0
        %1914 = vmatprep.subr.bf16.mxu0 0
        %1915 = vmatpush2.bf16.msra.mxu0 0
        %1916 = vmatprep.subr.bf16.mxu0 0
        %1917 = vmatpush2.bf16.msra.mxu0 0
        %1918 = vmatprep.subr.bf16.mxu0 0
        %1919 = vmatpush2.bf16.msra.mxu0 0
        %1920 = vmatprep.mubr.bf16.mxu0 0
        %1921 = vmatmul.mubr.bf16.gmra.mxu0 %v1886
        %v1922 = vpop.f32.mrf.mxu0
        %v1923 = vadd.f32 0.0, %v1922
        %v1924 = vpop.f32.mrf.mxu0
        %v1925 = vpop.f32.mrf.mxu0
        %v1926 = vadd.f32 0.0, %v1925
        %v1927 = vpop.f32.mrf.mxu0
        %1928 = vdwg.mxu0
        %s1929 = scalar_lea.vmem [#allocation16], 16
        %v1930 = vld [vmem:[%s1929] sm:$0xf]
        %v1931 = vld [vmem:[%s1929 + $0x4] sm:$0xf]
        %v1934 = vunpack.c.l.b16 %v1930
        %v1935 = vunpack.c.l.b16 %v1931
        %v1936 = vpack.c.b16 %v1935, %v1934
        %v1938 = vsel %vm585, %v1936, 0
        %1940 = vmatprep.subr.bf16.mxu0 0
        %1941 = vmatpush1.bf16.msra.mxu0 0
        %1942 = vmatprep.subr.bf16.mxu0 0
        %1943 = vmatpush1.bf16.msra.mxu0 0
        %1944 = vmatprep.subr.bf16.mxu0 0
        %1945 = vmatpush1.bf16.msra.mxu0 0
        %1946 = vmatprep.subr.bf16.mxu0 0
        %1947 = vmatpush1.bf16.msra.mxu0 0
        %1948 = vmatprep.subr.bf16.mxu0 0
        %1949 = vmatpush1.bf16.msra.mxu0 0
        %1950 = vmatprep.subr.bf16.mxu0 0
        %1951 = vmatpush1.bf16.msra.mxu0 0
        %1952 = vmatprep.subr.bf16.mxu0 0
        %1953 = vmatpush1.bf16.msra.mxu0 %v1825
        %1954 = vmatprep.subr.bf16.mxu0 0
        %1955 = vmatpush1.bf16.msra.mxu0 %v1824
        %1956 = vmatprep.subr.bf16.mxu0 0
        %1957 = vmatpush2.bf16.msra.mxu0 0
        %1958 = vmatprep.subr.bf16.mxu0 0
        %1959 = vmatpush2.bf16.msra.mxu0 0
        %1960 = vmatprep.subr.bf16.mxu0 0
        %1961 = vmatpush2.bf16.msra.mxu0 0
        %1962 = vmatprep.subr.bf16.mxu0 0
        %1963 = vmatpush2.bf16.msra.mxu0 0
        %1964 = vmatprep.subr.bf16.mxu0 0
        %1965 = vmatpush2.bf16.msra.mxu0 0
        %1966 = vmatprep.subr.bf16.mxu0 0
        %1967 = vmatpush2.bf16.msra.mxu0 0
        %1968 = vmatprep.subr.bf16.mxu0 0
        %1969 = vmatpush2.bf16.msra.mxu0 0
        %1970 = vmatprep.subr.bf16.mxu0 0
        %1971 = vmatpush2.bf16.msra.mxu0 0
        %1972 = vmatprep.mubr.bf16.mxu0 0
        %1973 = vmatmul.mubr.bf16.gmra.mxu0 %v1938
        %v1974 = vpop.f32.mrf.mxu0
        %v1975 = vadd.f32 0.0, %v1974
        %v1976 = vpop.f32.mrf.mxu0
        %v1977 = vpop.f32.mrf.mxu0
        %v1978 = vadd.f32 0.0, %v1977
        %v1979 = vpop.f32.mrf.mxu0
        %1980 = vdwg.mxu0
        %v1981 = vsub.f32 %v1871, %v1923
        %v1982 = vsub.f32 %v1874, %v1926
        %v1983 = vsub.f32 %v1975, %v1871
        %v1984 = vsub.f32 %v1978, %v1874
        %v1985 = vsub.f32 %v1983, %v1923
        %v1986 = vsub.f32 %v1984, %v1926
        %v1987 = vpack.c.bf16 %v1982, %v1981
        %v1988 = vpack.c.bf16 %v1986, %v1985
        %v1989 = vadd.f32 %v1981, %v1985
        %v1990 = vadd.f32 %v1982, %v1986
        %v1991 = vpack.c.bf16 %v1990, %v1989
        %v1992 = vld [vmem:[#allocation17] sm:$0xf]
        %v1993 = vld [vmem:[#allocation17 + $0x4] sm:$0xf]
        %v1994 = vld [vmem:[#allocation17 + $0x8] sm:$0xf]
        %v1995 = vld [vmem:[#allocation17 + $0xc] sm:$0xf]
        %v1996 = vld [vmem:[#allocation17 + $0x10] sm:$0xf]
        %v1997 = vld [vmem:[#allocation17 + $0x14] sm:$0xf]
        %v1998 = vld [vmem:[#allocation17 + $0x18] sm:$0xf]
        %v1999 = vld [vmem:[#allocation17 + $0x1c] sm:$0xf]
        %v2000 = vld [vmem:[#allocation17 + $0x20] sm:$0xf]
        %v2001 = vld [vmem:[#allocation17 + $0x24] sm:$0xf]
        %v2002 = vld [vmem:[#allocation17 + $0x28] sm:$0xf]
        %v2003 = vld [vmem:[#allocation17 + $0x2c] sm:$0xf]
        %v2004 = vld [vmem:[#allocation17 + $0x30] sm:$0xf]
        %v2005 = vld [vmem:[#allocation17 + $0x34] sm:$0xf]
        %v2006 = vld [vmem:[#allocation17 + $0x38] sm:$0xf]
        %v2007 = vld [vmem:[#allocation17 + $0x3c] sm:$0xf]
        %v2024 = vunpack.c.l.b16 %v1992
        %v2025 = vunpack.c.l.b16 %v1993
        %v2026 = vunpack.c.l.b16 %v1994
        %v2027 = vunpack.c.l.b16 %v1995
        %v2028 = vunpack.c.l.b16 %v1996
        %v2029 = vunpack.c.l.b16 %v1997
        %v2030 = vunpack.c.l.b16 %v1998
        %v2031 = vunpack.c.l.b16 %v1999
        %v2032 = vunpack.c.l.b16 %v2000
        %v2033 = vunpack.c.l.b16 %v2001
        %v2034 = vunpack.c.l.b16 %v2002
        %v2035 = vunpack.c.l.b16 %v2003
        %v2036 = vunpack.c.l.b16 %v2004
        %v2037 = vunpack.c.l.b16 %v2005
        %v2038 = vunpack.c.l.b16 %v2006
        %v2039 = vunpack.c.l.b16 %v2007
        %v2040 = vpack.c.b16 %v2025, %v2024
        %v2041 = vpack.c.b16 %v2027, %v2026
        %v2042 = vpack.c.b16 %v2029, %v2028
        %v2043 = vpack.c.b16 %v2031, %v2030
        %v2044 = vpack.c.b16 %v2033, %v2032
        %v2045 = vpack.c.b16 %v2035, %v2034
        %v2046 = vpack.c.b16 %v2037, %v2036
        %v2047 = vpack.c.b16 %v2039, %v2038
        %2056 = vmatprep.subr.bf16.mxu0 0
        %2057 = vmatpush1.bf16.msra.mxu0 %v2047
        %2058 = vmatprep.subr.bf16.mxu0 0
        %2059 = vmatpush1.bf16.msra.mxu0 %v2046
        %2060 = vmatprep.subr.bf16.mxu0 0
        %2061 = vmatpush1.bf16.msra.mxu0 %v2045
        %2062 = vmatprep.subr.bf16.mxu0 0
        %2063 = vmatpush1.bf16.msra.mxu0 %v2044
        %2064 = vmatprep.subr.bf16.mxu0 0
        %2065 = vmatpush1.bf16.msra.mxu0 %v2043
        %2066 = vmatprep.subr.bf16.mxu0 0
        %2067 = vmatpush1.bf16.msra.mxu0 %v2042
        %2068 = vmatprep.subr.bf16.mxu0 0
        %2069 = vmatpush1.bf16.msra.mxu0 %v2041
        %2070 = vmatprep.subr.bf16.mxu0 0
        %2071 = vmatpush1.bf16.msra.mxu0 %v2040
        %2072 = vmatprep.subr.bf16.mxu0 0
        %2073 = vmatpush2.bf16.msra.mxu0 0
        %2074 = vmatprep.subr.bf16.mxu0 0
        %2075 = vmatpush2.bf16.msra.mxu0 0
        %2076 = vmatprep.subr.bf16.mxu0 0
        %2077 = vmatpush2.bf16.msra.mxu0 0
        %2078 = vmatprep.subr.bf16.mxu0 0
        %2079 = vmatpush2.bf16.msra.mxu0 0
        %2080 = vmatprep.subr.bf16.mxu0 0
        %2081 = vmatpush2.bf16.msra.mxu0 0
        %2082 = vmatprep.subr.bf16.mxu0 0
        %2083 = vmatpush2.bf16.msra.mxu0 0
        %2084 = vmatprep.subr.bf16.mxu0 0
        %2085 = vmatpush2.bf16.msra.mxu0 0
        %2086 = vmatprep.subr.bf16.mxu0 0
        %2087 = vmatpush2.bf16.msra.mxu0 0
        %2088 = vmatprep.mubr.bf16.mxu0 0
        %2089 = vmatmul.mubr.bf16.gmra.mxu0 %v1987
        %v2090 = vpop.f32.mrf.mxu0
        %v2091 = vadd.f32 0.0, %v2090
        %v2092 = vpop.f32.mrf.mxu0
        %v2093 = vpop.f32.mrf.mxu0
        %v2094 = vadd.f32 0.0, %v2093
        %v2095 = vpop.f32.mrf.mxu0
        %2096 = vdwg.mxu0
        %s2097 = scalar_lea.vmem [#allocation17], 64
        %v2098 = vld [vmem:[%s2097] sm:$0xf]
        %v2099 = vld [vmem:[%s2097 + $0x4] sm:$0xf]
        %v2100 = vld [vmem:[%s2097 + $0x8] sm:$0xf]
        %v2101 = vld [vmem:[%s2097 + $0xc] sm:$0xf]
        %v2102 = vld [vmem:[%s2097 + $0x10] sm:$0xf]
        %v2103 = vld [vmem:[%s2097 + $0x14] sm:$0xf]
        %v2104 = vld [vmem:[%s2097 + $0x18] sm:$0xf]
        %v2105 = vld [vmem:[%s2097 + $0x1c] sm:$0xf]
        %v2106 = vld [vmem:[%s2097 + $0x20] sm:$0xf]
        %v2107 = vld [vmem:[%s2097 + $0x24] sm:$0xf]
        %v2108 = vld [vmem:[%s2097 + $0x28] sm:$0xf]
        %v2109 = vld [vmem:[%s2097 + $0x2c] sm:$0xf]
        %v2110 = vld [vmem:[%s2097 + $0x30] sm:$0xf]
        %v2111 = vld [vmem:[%s2097 + $0x34] sm:$0xf]
        %v2112 = vld [vmem:[%s2097 + $0x38] sm:$0xf]
        %v2113 = vld [vmem:[%s2097 + $0x3c] sm:$0xf]
        %v2130 = vunpack.c.l.b16 %v2098
        %v2131 = vunpack.c.l.b16 %v2099
        %v2132 = vunpack.c.l.b16 %v2100
        %v2133 = vunpack.c.l.b16 %v2101
        %v2134 = vunpack.c.l.b16 %v2102
        %v2135 = vunpack.c.l.b16 %v2103
        %v2136 = vunpack.c.l.b16 %v2104
        %v2137 = vunpack.c.l.b16 %v2105
        %v2138 = vunpack.c.l.b16 %v2106
        %v2139 = vunpack.c.l.b16 %v2107
        %v2140 = vunpack.c.l.b16 %v2108
        %v2141 = vunpack.c.l.b16 %v2109
        %v2142 = vunpack.c.l.b16 %v2110
        %v2143 = vunpack.c.l.b16 %v2111
        %v2144 = vunpack.c.l.b16 %v2112
        %v2145 = vunpack.c.l.b16 %v2113
        %v2146 = vpack.c.b16 %v2131, %v2130
        %v2147 = vpack.c.b16 %v2133, %v2132
        %v2148 = vpack.c.b16 %v2135, %v2134
        %v2149 = vpack.c.b16 %v2137, %v2136
        %v2150 = vpack.c.b16 %v2139, %v2138
        %v2151 = vpack.c.b16 %v2141, %v2140
        %v2152 = vpack.c.b16 %v2143, %v2142
        %v2153 = vpack.c.b16 %v2145, %v2144
        %2162 = vmatprep.subr.bf16.mxu0 0
        %2163 = vmatpush1.bf16.msra.mxu0 %v2153
        %2164 = vmatprep.subr.bf16.mxu0 0
        %2165 = vmatpush1.bf16.msra.mxu0 %v2152
        %2166 = vmatprep.subr.bf16.mxu0 0
        %2167 = vmatpush1.bf16.msra.mxu0 %v2151
        %2168 = vmatprep.subr.bf16.mxu0 0
        %2169 = vmatpush1.bf16.msra.mxu0 %v2150
        %2170 = vmatprep.subr.bf16.mxu0 0
        %2171 = vmatpush1.bf16.msra.mxu0 %v2149
        %2172 = vmatprep.subr.bf16.mxu0 0
        %2173 = vmatpush1.bf16.msra.mxu0 %v2148
        %2174 = vmatprep.subr.bf16.mxu0 0
        %2175 = vmatpush1.bf16.msra.mxu0 %v2147
        %2176 = vmatprep.subr.bf16.mxu0 0
        %2177 = vmatpush1.bf16.msra.mxu0 %v2146
        %2178 = vmatprep.subr.bf16.mxu0 0
        %2179 = vmatpush2.bf16.msra.mxu0 0
        %2180 = vmatprep.subr.bf16.mxu0 0
        %2181 = vmatpush2.bf16.msra.mxu0 0
        %2182 = vmatprep.subr.bf16.mxu0 0
        %2183 = vmatpush2.bf16.msra.mxu0 0
        %2184 = vmatprep.subr.bf16.mxu0 0
        %2185 = vmatpush2.bf16.msra.mxu0 0
        %2186 = vmatprep.subr.bf16.mxu0 0
        %2187 = vmatpush2.bf16.msra.mxu0 0
        %2188 = vmatprep.subr.bf16.mxu0 0
        %2189 = vmatpush2.bf16.msra.mxu0 0
        %2190 = vmatprep.subr.bf16.mxu0 0
        %2191 = vmatpush2.bf16.msra.mxu0 0
        %2192 = vmatprep.subr.bf16.mxu0 0
        %2193 = vmatpush2.bf16.msra.mxu0 0
        %2194 = vmatprep.mubr.bf16.mxu0 0
        %2195 = vmatmul.mubr.bf16.gmra.mxu0 %v1988
        %v2196 = vpop.f32.mrf.mxu0
        %v2197 = vadd.f32 0.0, %v2196
        %v2198 = vpop.f32.mrf.mxu0
        %v2199 = vpop.f32.mrf.mxu0
        %v2200 = vadd.f32 0.0, %v2199
        %v2201 = vpop.f32.mrf.mxu0
        %2202 = vdwg.mxu0
        %s2203 = scalar_lea.vmem [#allocation17], 128
        %v2204 = vld [vmem:[%s2203] sm:$0xf]
        %v2205 = vld [vmem:[%s2203 + $0x4] sm:$0xf]
        %v2206 = vld [vmem:[%s2203 + $0x8] sm:$0xf]
        %v2207 = vld [vmem:[%s2203 + $0xc] sm:$0xf]
        %v2208 = vld [vmem:[%s2203 + $0x10] sm:$0xf]
        %v2209 = vld [vmem:[%s2203 + $0x14] sm:$0xf]
        %v2210 = vld [vmem:[%s2203 + $0x18] sm:$0xf]
        %v2211 = vld [vmem:[%s2203 + $0x1c] sm:$0xf]
        %v2212 = vld [vmem:[%s2203 + $0x20] sm:$0xf]
        %v2213 = vld [vmem:[%s2203 + $0x24] sm:$0xf]
        %v2214 = vld [vmem:[%s2203 + $0x28] sm:$0xf]
        %v2215 = vld [vmem:[%s2203 + $0x2c] sm:$0xf]
        %v2216 = vld [vmem:[%s2203 + $0x30] sm:$0xf]
        %v2217 = vld [vmem:[%s2203 + $0x34] sm:$0xf]
        %v2218 = vld [vmem:[%s2203 + $0x38] sm:$0xf]
        %v2219 = vld [vmem:[%s2203 + $0x3c] sm:$0xf]
        %v2236 = vunpack.c.l.b16 %v2204
        %v2237 = vunpack.c.l.b16 %v2205
        %v2238 = vunpack.c.l.b16 %v2206
        %v2239 = vunpack.c.l.b16 %v2207
        %v2240 = vunpack.c.l.b16 %v2208
        %v2241 = vunpack.c.l.b16 %v2209
        %v2242 = vunpack.c.l.b16 %v2210
        %v2243 = vunpack.c.l.b16 %v2211
        %v2244 = vunpack.c.l.b16 %v2212
        %v2245 = vunpack.c.l.b16 %v2213
        %v2246 = vunpack.c.l.b16 %v2214
        %v2247 = vunpack.c.l.b16 %v2215
        %v2248 = vunpack.c.l.b16 %v2216
        %v2249 = vunpack.c.l.b16 %v2217
        %v2250 = vunpack.c.l.b16 %v2218
        %v2251 = vunpack.c.l.b16 %v2219
        %v2252 = vpack.c.b16 %v2237, %v2236
        %v2253 = vpack.c.b16 %v2239, %v2238
        %v2254 = vpack.c.b16 %v2241, %v2240
        %v2255 = vpack.c.b16 %v2243, %v2242
        %v2256 = vpack.c.b16 %v2245, %v2244
        %v2257 = vpack.c.b16 %v2247, %v2246
        %v2258 = vpack.c.b16 %v2249, %v2248
        %v2259 = vpack.c.b16 %v2251, %v2250
        %2268 = vmatprep.subr.bf16.mxu0 0
        %2269 = vmatpush1.bf16.msra.mxu0 %v2259
        %2270 = vmatprep.subr.bf16.mxu0 0
        %2271 = vmatpush1.bf16.msra.mxu0 %v2258
        %2272 = vmatprep.subr.bf16.mxu0 0
        %2273 = vmatpush1.bf16.msra.mxu0 %v2257
        %2274 = vmatprep.subr.bf16.mxu0 0
        %2275 = vmatpush1.bf16.msra.mxu0 %v2256
        %2276 = vmatprep.subr.bf16.mxu0 0
        %2277 = vmatpush1.bf16.msra.mxu0 %v2255
        %2278 = vmatprep.subr.bf16.mxu0 0
        %2279 = vmatpush1.bf16.msra.mxu0 %v2254
        %2280 = vmatprep.subr.bf16.mxu0 0
        %2281 = vmatpush1.bf16.msra.mxu0 %v2253
        %2282 = vmatprep.subr.bf16.mxu0 0
        %2283 = vmatpush1.bf16.msra.mxu0 %v2252
        %2284 = vmatprep.subr.bf16.mxu0 0
        %2285 = vmatpush2.bf16.msra.mxu0 0
        %2286 = vmatprep.subr.bf16.mxu0 0
        %2287 = vmatpush2.bf16.msra.mxu0 0
        %2288 = vmatprep.subr.bf16.mxu0 0
        %2289 = vmatpush2.bf16.msra.mxu0 0
        %2290 = vmatprep.subr.bf16.mxu0 0
        %2291 = vmatpush2.bf16.msra.mxu0 0
        %2292 = vmatprep.subr.bf16.mxu0 0
        %2293 = vmatpush2.bf16.msra.mxu0 0
        %2294 = vmatprep.subr.bf16.mxu0 0
        %2295 = vmatpush2.bf16.msra.mxu0 0
        %2296 = vmatprep.subr.bf16.mxu0 0
        %2297 = vmatpush2.bf16.msra.mxu0 0
        %2298 = vmatprep.subr.bf16.mxu0 0
        %2299 = vmatpush2.bf16.msra.mxu0 0
        %2300 = vmatprep.mubr.bf16.mxu0 0
        %2301 = vmatmul.mubr.bf16.gmra.mxu0 %v1991
        %v2302 = vpop.f32.mrf.mxu0
        %v2303 = vadd.f32 0.0, %v2302
        %v2304 = vpop.f32.mrf.mxu0
        %v2305 = vpop.f32.mrf.mxu0
        %v2306 = vadd.f32 0.0, %v2305
        %v2307 = vpop.f32.mrf.mxu0
        %2308 = vdwg.mxu0
        %v2309 = vsub.f32 %v2091, %v2197
        %v2310 = vsub.f32 %v2094, %v2200
        %v2311 = vsub.f32 %v2303, %v2091
        %v2312 = vsub.f32 %v2306, %v2094
        %v2313 = vsub.f32 %v2311, %v2197
        %v2314 = vsub.f32 %v2312, %v2200
        %v2315 = vld [vmem:[#allocation8] sm:$0xff]
        %v2316 = vld [vmem:[#allocation8 + $0x8] sm:$0xff]
        %s2317 = scalar_lea.vmem [#allocation8], 16
        %v2318 = vld [vmem:[%s2317] sm:$0xff]
        %v2319 = vld [vmem:[%s2317 + $0x8] sm:$0xff]
        %v2320 = vmul.f32 %v2309, %v2315
        %v2321 = vmul.f32 %v2310, %v2316
        %v2322 = vmul.f32 %v2313, %v2318
        %v2323 = vmul.f32 %v2314, %v2319
        %v2324 = vsub.f32 %v2320, %v2322
        %v2325 = vsub.f32 %v2321, %v2323
        %v2326 = vmul.f32 %v2309, %v2318
        %v2327 = vmul.f32 %v2310, %v2319
        %v2328 = vmul.f32 %v2313, %v2315
        %v2329 = vmul.f32 %v2314, %v2316
        %v2330 = vadd.f32 %v2326, %v2328
        %v2331 = vadd.f32 %v2327, %v2329
        %2332 = vst [vmem:[%s550] sm:$0xff] %v2324
        %2333 = vst [vmem:[%s550 + $0x8] sm:$0xff] %v2325
        %s2334 = scalar_lea.vmem %s550, 16 [#allocation19]
        %2335 = vst [vmem:[%s2334] sm:$0xff] %v2330
        %2336 = vst [vmem:[%s2334 + $0x8] sm:$0xff] %v2331
        %s2337 = sand.u32 %s286, 1
        %s2338 = scalar_lea.sflag [#allocation4], %s2337
        %s2339 = sand.u32 %s286, 1
        %s2340 = smul.addr %s2339, 32
        %s2341 = scalar_lea.vmem [#allocation19], %s2340
        // Predicated region
        $region101: #{tpu_custom_call.1} parent=59 // pred_check
          %p2342 = pneg %p296
        $region102: #{tpu_custom_call.1} parent=59 // pred_check_branch
          %2344 = sbr.rel (%p2342) target = $region104
        $region103: #{tpu_custom_call.1} parent=59 // pred_region
          %s2346 = ssub.s32 512, 512
          %2347 = vsyncadd %s2338, %s2346
          %s2348 = smul.addr %s36, 4
          %s2349 = smul.addr %s37, 12
          %s2350 = sadd.s32 %s2348, %s2349
          %s2351 = smul.addr %s2350, 128
          %s2352 = scalar_lea.hbm %s10, %s2351
          %s2353 = sshll.u32 %s2341, 4
          %s2354 = int_to_ptr.vmem [resolvable:$true] %s2353
          %2359 = dma.vmem_to_hbm [thread:$0]  %s2354, 512, %s2352, %s2338, 128, 128, 8
        $region104: #{tpu_custom_call.1} parent=59 // pred_fallthru
          _
      $region60: #{tpu_custom_call.1} parent=5 // pred_fallthru
        _
      %p2360 = scmp.le.s32.totalorder 2, %s27
      // Predicated region
      $region105: #{tpu_custom_call.1} parent=5 // pred_check
        %p2361 = pneg %p2360
      $region106: #{tpu_custom_call.1} parent=5 // pred_check_branch
        %2363 = sbr.rel (%p2361) target = $region108
      $region107: #{tpu_custom_call.1} parent=5 // pred_region
        %s2364 = ssub.s32 %s27, 2
        // Predicated region
        $region109: #{tpu_custom_call.1} parent=107 // pred_check
          %p2365 = pneg %p302
        $region110: #{tpu_custom_call.1} parent=107 // pred_check_branch
          %2367 = sbr.rel (%p2365) target = $region112
        $region111: #{tpu_custom_call.1} parent=107 // pred_region
          %s2368 = sand.u32 %s287, 1
          %s2369 = scalar_lea.sflag [#allocation4], %s2368
          %s2370 = sand.u32 %s287, 1
          %s2371 = smul.addr %s2370, 32
          %s2372 = scalar_lea.vmem [#allocation19], %s2371
          %2373 = dma.done %s2369, 512
        $region112: #{tpu_custom_call.1} parent=107 // pred_fallthru
          _
      $region108: #{tpu_custom_call.1} parent=5 // pred_fallthru
        _
    $region6: #{tpu_custom_call.1} parent=1 // loop_footer
      %s31 = sadd.s32 1, %s27
    $region7: #{tpu_custom_call.1} parent=1 // loop_footer_branch
      %26 = sbr.rel target = $region3
    $region8: #{tpu_custom_call.1} parent=1 // loop_exit
      _
    %2374 = vsyncpa [#allocation3], 1
    %s2375 = scalar_lea.sflag [#allocation3], 1
    %2376 = vsyncpa %s2375, 1
    %2377 = vsyncpa [#allocation6], 1
    %2378 = vsyncpa [#allocation9], 1
    %2379 = vsyncpa [#allocation12], 1
    %2380 = vsyncpa [#allocation15], 1
    %2381 = vsyncpa [#allocation18], 1
    %2382 = vsyncpa [#allocation4], 1
    %s2383 = scalar_lea.sflag [#allocation4], 1
    %2384 = vsyncpa %s2383, 1

// kernel: tpu_custom_call.1
$region0: #{tpu_custom_call.1}
  #allocation0 [shape = 'u32[]', space=smem, size = 0x4, offset = 0x4, fixed_abs, tag = 'smem constant byte address 0x4 - core index']
  #allocation1 [shape = 'u32[144,128]{1,0:T(1,128)}', space=vmem, size = 0x12000, scoped, tag = 'internal scratch']
  %s0 = inlined_call_operand.hbm [shape: f32[2,3,2,32,128], index: 0, kind: input, shape index: {}]
  %s1 = inlined_call_operand.hbm [shape: f32[3,2,32,128], index: 1, kind: input, shape index: {}]
  %s2 = inlined_call_operand.hbm [shape: f32[3,2,32,128], index: 2, kind: input, shape index: {}]
  %s3 = inlined_call_operand.hbm [shape: f32[3,2,16,128], index: 3, kind: input, shape index: {}]
  %s4 = inlined_call_operand.hbm [shape: bf16[3,32,32], index: 4, kind: input, shape index: {}]
  %s5 = inlined_call_operand.hbm [shape: bf16[3,128,128], index: 5, kind: input, shape index: {}]
  %s6 = inlined_call_operand.hbm [shape: bf16[3,32,32], index: 6, kind: input, shape index: {}]
  %s7 = inlined_call_operand.hbm [shape: bf16[3,128,128], index: 7, kind: input, shape index: {}]
  %s8 = inlined_call_operand.hbm [shape: bf16[3,16,32], index: 8, kind: input, shape index: {}]
  %s9 = inlined_call_operand.hbm [shape: bf16[3,128,128], index: 9, kind: input, shape index: {}]
  %s10 = inlined_call_operand.hbm [shape: f32[2,3,2,16,128], index: 10, kind: output, shape index: {}]
  %s11 = sld [smem:[#allocation0]]
  $region113: #{tpu_custom_call.1} parent=0
    _
  %s13 = ssub.s32 1, %s11
  %s14 = scalar_select 0, %s13, %s11
  $region1: #{tpu_custom_call.1} parent=0
    #allocation2 [shape = 'u8[65536]{0}', space=vmem, size = 0x10000, scoped, tag = 'input window, operand 0']
    #allocation3 [shape = 's32[2]{0}', space=sflag, size = 0x8, scoped, tag = 'scoped memory for tpu_custom_call.1']
    #allocation4 [shape = 's32[2]{0}', space=sflag, size = 0x8, scoped, tag = 'scoped memory for tpu_custom_call.1']
    #allocation5 [shape = 'u8[65536]{0}', space=vmem, size = 0x10000, scoped, tag = 'input window, operand 1']
    #allocation6 [shape = 's32[2]{0}', space=sflag, size = 0x8, scoped, tag = 'scoped memory for tpu_custom_call.1']
    #allocation7 [shape = 'u8[65536]{0}', space=vmem, size = 0x10000, scoped, tag = 'input window, operand 2']
    #allocation8 [shape = 'u8[32768]{0}', space=vmem, size = 0x8000, scoped, tag = 'input window, operand 3']
    #allocation9 [shape = 's32[2]{0}', space=sflag, size = 0x8, scoped, tag = 'scoped memory for tpu_custom_call.1']
    #allocation10 [shape = 'u8[24576]{0}', space=vmem, size = 0x6000, scoped, tag = 'input window, operand 4, single buffered']
    #allocation11 [shape = 'u8[98304]{0}', space=vmem, size = 0x18000, scoped, tag = 'input window, operand 5, single buffered']
    #allocation12 [shape = 's32[1]{0}', space=sflag, size = 0x4, scoped, tag = 'scoped memory for tpu_custom_call.1']
    #allocation13 [shape = 'u8[24576]{0}', space=vmem, size = 0x6000, scoped, tag = 'input window, operand 6, single buffered']
    #allocation14 [shape = 'u8[98304]{0}', space=vmem, size = 0x18000, scoped, tag = 'input window, operand 7, single buffered']
    #allocation15 [shape = 's32[1]{0}', space=sflag, size = 0x4, scoped, tag = 'scoped memory for tpu_custom_call.1']
    #allocation16 [shape = 'u8[12288]{0}', space=vmem, size = 0x3000, scoped, tag = 'input window, operand 8, single buffered']
    #allocation17 [shape = 'u8[98304]{0}', space=vmem, size = 0x18000, scoped, tag = 'input window, operand 9, single buffered']
    #allocation18 [shape = 's32[1]{0}', space=sflag, size = 0x4, scoped, tag = 'scoped memory for tpu_custom_call.1']
    #allocation19 [shape = 'u8[32768]{0}', space=vmem, size = 0x8000, scoped, tag = 'output window, operand 0']
    %15 = vsyncpa [#allocation3], 0
    %s16 = scalar_lea.sflag [#allocation3], 1
    %17 = vsyncpa %s16, 0
    %18 = vsyncpa [#allocation6], 0
    %s19 = scalar_lea.sflag [#allocation6], 1
    %20 = vsyncpa %s19, 0
    %21 = vsyncpa [#allocation9], 0
    %s22 = scalar_lea.sflag [#allocation9], 1
    %23 = vsyncpa %s22, 0
    %24 = vsyncpa [#allocation12], 0
    %25 = vsyncpa [#allocation15], 0
    %26 = vsyncpa [#allocation18], 0
    %27 = vsyncpa [#allocation4], 0
    %s28 = scalar_lea.sflag [#allocation4], 1
    %29 = vsyncpa %s28, 0
    loop: start=0, step=1, limit=8
    $region2: #{tpu_custom_call.1} parent=1 // loop_pre_header
      _
    $region3: #{tpu_custom_call.1} parent=1 // loop_header
      %s31 = sphi 0, %s35
      %p32 = scmp.ge.s32.totalorder %s31, 8
      %s38 = sphi 0, %s50
      %s39 = sphi 0, %s46
      %s40 = sphi 0, %s38
      %s41 = sphi 0, %s39
      %s42 = sphi 0, %s40
      %s43 = sphi 0, %s41
      %s55 = sphi 0, %s57
      %s58 = sphi 0, %s55
      %s59 = sphi 0, %s58
      %s75 = sphi 0, %s59
      %s81 = sphi 0, %s83
      %s84 = sphi 0, %s81
      %s85 = sphi 0, %s84
      %s101 = sphi 0, %s85
      %s107 = sphi 0, %s109
      %s110 = sphi 0, %s107
      %s111 = sphi 0, %s110
      %s127 = sphi 0, %s111
      %s133 = sphi 0, %s135
      %s136 = sphi 0, %s133
      %s137 = sphi 0, %s136
      %s153 = sphi 0, %s137
      %s157 = sphi 0, %s157
      %s159 = sphi 0, %s157
      %s160 = sphi 0, %s159
      %s174 = sphi 0, %s160
      %s178 = sphi 0, %s178
      %s180 = sphi 0, %s178
      %s181 = sphi 0, %s180
      %s195 = sphi 0, %s181
      %s199 = sphi 0, %s199
      %s201 = sphi 0, %s199
      %s202 = sphi 0, %s201
      %s216 = sphi 0, %s202
      %s220 = sphi 0, %s220
      %s222 = sphi 0, %s220
      %s223 = sphi 0, %s222
      %s237 = sphi 0, %s223
      %s241 = sphi 0, %s241
      %s243 = sphi 0, %s241
      %s244 = sphi 0, %s243
      %s258 = sphi 0, %s244
      %s262 = sphi 0, %s262
      %s264 = sphi 0, %s262
      %s265 = sphi 0, %s264
      %s279 = sphi 0, %s265
      %s287 = sphi 0, %s289
      %s290 = sphi 0, %s287
      %s291 = sphi 0, %s290
      %s307 = sphi 0, %s291
    $region4: #{tpu_custom_call.1} parent=1 // loop_header_branch
      %34 = sbr.rel (%p32) target = $region8
    $region5: #{tpu_custom_call.1} parent=1 // loop_body
      %s36 = ssub.s32 %s31, 1
      %s37 = ssub.s32 %s31, 2
      %s44 = sadd.s32 1, %s39
      %p45 = scmp.ge.s32.totalorder %s44, 2
      %s46 = scalar_select %p45, 0, %s44
      %s47 = sadd.s32 1, %s38
      %s48 = scalar_select %p45, %s47, %s38
      %p49 = scmp.ge.s32.totalorder %s48, 3
      %s50 = scalar_select %p49, 0, %s48
      %s51 = ssub.s32 %s39, %s46
      %s52 = ssub.s32 %s38, %s50
      %s53 = sor.u32 %s51, %s52
      %p54 = scmp.eq.s32.totalorder %s53, 0
      %s56 = sadd.s32 %s55, 1
      %s57 = scalar_select %p54, %s55, %s56
      %p60 = pneg %p54
      %p61 = scmp.eq.s32.totalorder %s31, 5
      %p62 = por %p60, %p61
      %p63 = scmp.ne.s32.totalorder %s55, %s58
      %p64 = scmp.eq.s32.totalorder %s31, 0
      %p65 = por %p63, %p64
      %p66 = scmp.ne.s32.totalorder %s55, %s58
      %p67 = scmp.eq.s32.totalorder %s36, 5
      %p68 = por %p66, %p67
      %p69 = scmp.ne.s32.totalorder %s58, %s59
      %p70 = scmp.eq.s32.totalorder %s36, 0
      %p71 = por %p69, %p70
      %p72 = scmp.ne.s32.totalorder %s58, %s59
      %p73 = scmp.eq.s32.totalorder %s37, 5
      %p74 = por %p72, %p73
      %p76 = scmp.ne.s32.totalorder %s59, %s75
      %p77 = scmp.eq.s32.totalorder %s37, 0
      %p78 = por %p76, %p77
      %s79 = ssub.s32 %s38, %s50
      %p80 = scmp.eq.s32.totalorder %s79, 0
      %s82 = sadd.s32 %s81, 1
      %s83 = scalar_select %p80, %s81, %s82
      %p86 = pneg %p80
      %p87 = scmp.eq.s32.totalorder %s31, 5
      %p88 = por %p86, %p87
      %p89 = scmp.ne.s32.totalorder %s81, %s84
      %p90 = scmp.eq.s32.totalorder %s31, 0
      %p91 = por %p89, %p90
      %p92 = scmp.ne.s32.totalorder %s81, %s84
      %p93 = scmp.eq.s32.totalorder %s36, 5
      %p94 = por %p92, %p93
      %p95 = scmp.ne.s32.totalorder %s84, %s85
      %p96 = scmp.eq.s32.totalorder %s36, 0
      %p97 = por %p95, %p96
      %p98 = scmp.ne.s32.totalorder %s84, %s85
      %p99 = scmp.eq.s32.totalorder %s37, 5
      %p100 = por %p98, %p99
      %p102 = scmp.ne.s32.totalorder %s85, %s101
      %p103 = scmp.eq.s32.totalorder %s37, 0
      %p104 = por %p102, %p103
      %s105 = ssub.s32 %s38, %s50
      %p106 = scmp.eq.s32.totalorder %s105, 0
      %s108 = sadd.s32 %s107, 1
      %s109 = scalar_select %p106, %s107, %s108
      %p112 = pneg %p106
      %p113 = scmp.eq.s32.totalorder %s31, 5
      %p114 = por %p112, %p113
      %p115 = scmp.ne.s32.totalorder %s107, %s110
      %p116 = scmp.eq.s32.totalorder %s31, 0
      %p117 = por %p115, %p116
      %p118 = scmp.ne.s32.totalorder %s107, %s110
      %p119 = scmp.eq.s32.totalorder %s36, 5
      %p120 = por %p118, %p119
      %p121 = scmp.ne.s32.totalorder %s110, %s111
      %p122 = scmp.eq.s32.totalorder %s36, 0
      %p123 = por %p121, %p122
      %p124 = scmp.ne.s32.totalorder %s110, %s111
      %p125 = scmp.eq.s32.totalorder %s37, 5
      %p126 = por %p124, %p125
      %p128 = scmp.ne.s32.totalorder %s111, %s127
      %p129 = scmp.eq.s32.totalorder %s37, 0
      %p130 = por %p128, %p129
      %s131 = ssub.s32 %s38, %s50
      %p132 = scmp.eq.s32.totalorder %s131, 0
      %s134 = sadd.s32 %s133, 1
      %s135 = scalar_select %p132, %s133, %s134
      %p138 = pneg %p132
      %p139 = scmp.eq.s32.totalorder %s31, 5
      %p140 = por %p138, %p139
      %p141 = scmp.ne.s32.totalorder %s133, %s136
      %p142 = scmp.eq.s32.totalorder %s31, 0
      %p143 = por %p141, %p142
      %p144 = scmp.ne.s32.totalorder %s133, %s136
      %p145 = scmp.eq.s32.totalorder %s36, 5
      %p146 = por %p144, %p145
      %p147 = scmp.ne.s32.totalorder %s136, %s137
      %p148 = scmp.eq.s32.totalorder %s36, 0
      %p149 = por %p147, %p148
      %p150 = scmp.ne.s32.totalorder %s136, %s137
      %p151 = scmp.eq.s32.totalorder %s37, 5
      %p152 = por %p150, %p151
      %p154 = scmp.ne.s32.totalorder %s137, %s153
      %p155 = scmp.eq.s32.totalorder %s37, 0
      %p156 = por %p154, %p155
      %s158 = sadd.s32 %s157, 1
      %p161 = scmp.eq.s32.totalorder %s31, 5
      %p162 = scmp.ne.s32.totalorder %s157, %s159
      %p163 = scmp.eq.s32.totalorder %s31, 0
      %p164 = por %p162, %p163
      %p165 = scmp.ne.s32.totalorder %s157, %s159
      %p166 = scmp.eq.s32.totalorder %s36, 5
      %p167 = por %p165, %p166
      %p168 = scmp.ne.s32.totalorder %s159, %s160
      %p169 = scmp.eq.s32.totalorder %s36, 0
      %p170 = por %p168, %p169
      %p171 = scmp.ne.s32.totalorder %s159, %s160
      %p172 = scmp.eq.s32.totalorder %s37, 5
      %p173 = por %p171, %p172
      %p175 = scmp.ne.s32.totalorder %s160, %s174
      %p176 = scmp.eq.s32.totalorder %s37, 0
      %p177 = por %p175, %p176
      %s179 = sadd.s32 %s178, 1
      %p182 = scmp.eq.s32.totalorder %s31, 5
      %p183 = scmp.ne.s32.totalorder %s178, %s180
      %p184 = scmp.eq.s32.totalorder %s31, 0
      %p185 = por %p183, %p184
      %p186 = scmp.ne.s32.totalorder %s178, %s180
      %p187 = scmp.eq.s32.totalorder %s36, 5
      %p188 = por %p186, %p187
      %p189 = scmp.ne.s32.totalorder %s180, %s181
      %p190 = scmp.eq.s32.totalorder %s36, 0
      %p191 = por %p189, %p190
      %p192 = scmp.ne.s32.totalorder %s180, %s181
      %p193 = scmp.eq.s32.totalorder %s37, 5
      %p194 = por %p192, %p193
      %p196 = scmp.ne.s32.totalorder %s181, %s195
      %p197 = scmp.eq.s32.totalorder %s37, 0
      %p198 = por %p196, %p197
      %s200 = sadd.s32 %s199, 1
      %p203 = scmp.eq.s32.totalorder %s31, 5
      %p204 = scmp.ne.s32.totalorder %s199, %s201
      %p205 = scmp.eq.s32.totalorder %s31, 0
      %p206 = por %p204, %p205
      %p207 = scmp.ne.s32.totalorder %s199, %s201
      %p208 = scmp.eq.s32.totalorder %s36, 5
      %p209 = por %p207, %p208
      %p210 = scmp.ne.s32.totalorder %s201, %s202
      %p211 = scmp.eq.s32.totalorder %s36, 0
      %p212 = por %p210, %p211
      %p213 = scmp.ne.s32.totalorder %s201, %s202
      %p214 = scmp.eq.s32.totalorder %s37, 5
      %p215 = por %p213, %p214
      %p217 = scmp.ne.s32.totalorder %s202, %s216
      %p218 = scmp.eq.s32.totalorder %s37, 0
      %p219 = por %p217, %p218
      %s221 = sadd.s32 %s220, 1
      %p224 = scmp.eq.s32.totalorder %s31, 5
      %p225 = scmp.ne.s32.totalorder %s220, %s222
      %p226 = scmp.eq.s32.totalorder %s31, 0
      %p227 = por %p225, %p226
      %p228 = scmp.ne.s32.totalorder %s220, %s222
      %p229 = scmp.eq.s32.totalorder %s36, 5
      %p230 = por %p228, %p229
      %p231 = scmp.ne.s32.totalorder %s222, %s223
      %p232 = scmp.eq.s32.totalorder %s36, 0
      %p233 = por %p231, %p232
      %p234 = scmp.ne.s32.totalorder %s222, %s223
      %p235 = scmp.eq.s32.totalorder %s37, 5
      %p236 = por %p234, %p235
      %p238 = scmp.ne.s32.totalorder %s223, %s237
      %p239 = scmp.eq.s32.totalorder %s37, 0
      %p240 = por %p238, %p239
      %s242 = sadd.s32 %s241, 1
      %p245 = scmp.eq.s32.totalorder %s31, 5
      %p246 = scmp.ne.s32.totalorder %s241, %s243
      %p247 = scmp.eq.s32.totalorder %s31, 0
      %p248 = por %p246, %p247
      %p249 = scmp.ne.s32.totalorder %s241, %s243
      %p250 = scmp.eq.s32.totalorder %s36, 5
      %p251 = por %p249, %p250
      %p252 = scmp.ne.s32.totalorder %s243, %s244
      %p253 = scmp.eq.s32.totalorder %s36, 0
      %p254 = por %p252, %p253
      %p255 = scmp.ne.s32.totalorder %s243, %s244
      %p256 = scmp.eq.s32.totalorder %s37, 5
      %p257 = por %p255, %p256
      %p259 = scmp.ne.s32.totalorder %s244, %s258
      %p260 = scmp.eq.s32.totalorder %s37, 0
      %p261 = por %p259, %p260
      %s263 = sadd.s32 %s262, 1
      %p266 = scmp.eq.s32.totalorder %s31, 5
      %p267 = scmp.ne.s32.totalorder %s262, %s264
      %p268 = scmp.eq.s32.totalorder %s31, 0
      %p269 = por %p267, %p268
      %p270 = scmp.ne.s32.totalorder %s262, %s264
      %p271 = scmp.eq.s32.totalorder %s36, 5
      %p272 = por %p270, %p271
      %p273 = scmp.ne.s32.totalorder %s264, %s265
      %p274 = scmp.eq.s32.totalorder %s36, 0
      %p275 = por %p273, %p274
      %p276 = scmp.ne.s32.totalorder %s264, %s265
      %p277 = scmp.eq.s32.totalorder %s37, 5
      %p278 = por %p276, %p277
      %p280 = scmp.ne.s32.totalorder %s265, %s279
      %p281 = scmp.eq.s32.totalorder %s37, 0
      %p282 = por %p280, %p281
      %s283 = ssub.s32 %s39, %s46
      %s284 = ssub.s32 %s38, %s50
      %s285 = sor.u32 %s283, %s284
      %p286 = scmp.eq.s32.totalorder %s285, 0
      %s288 = sadd.s32 %s287, 1
      %s289 = scalar_select %p286, %s287, %s288
      %p292 = pneg %p286
      %p293 = scmp.eq.s32.totalorder %s31, 5
      %p294 = por %p292, %p293
      %p295 = scmp.ne.s32.totalorder %s287, %s290
      %p296 = scmp.eq.s32.totalorder %s31, 0
      %p297 = por %p295, %p296
      %p298 = scmp.ne.s32.totalorder %s287, %s290
      %p299 = scmp.eq.s32.totalorder %s36, 5
      %p300 = por %p298, %p299
      %p301 = scmp.ne.s32.totalorder %s290, %s291
      %p302 = scmp.eq.s32.totalorder %s36, 0
      %p303 = por %p301, %p302
      %p304 = scmp.ne.s32.totalorder %s290, %s291
      %p305 = scmp.eq.s32.totalorder %s37, 5
      %p306 = por %p304, %p305
      %p308 = scmp.ne.s32.totalorder %s291, %s307
      %p309 = scmp.eq.s32.totalorder %s37, 0
      %p310 = por %p308, %p309
      %p311 = scmp.le.s32.totalorder 1, %s31
      %p312 = scmp.lt.s32.totalorder %s31, 7
      %p313 = pnand %p311, %p312
      %p314 = pneg %p313
      // Predicated region
      $region9: #{tpu_custom_call.1} parent=5 // pred_check
        _
      $region10: #{tpu_custom_call.1} parent=5 // pred_check_branch
        %316 = sbr.rel (%p313) target = $region12
      $region11: #{tpu_custom_call.1} parent=5 // pred_region
        %s317 = ssub.s32 %s31, 1
        // Predicated region
        $region13: #{tpu_custom_call.1} parent=11 // pred_check
          %p318 = pneg %p170
        $region14: #{tpu_custom_call.1} parent=11 // pred_check_branch
          %320 = sbr.rel (%p318) target = $region16
        $region15: #{tpu_custom_call.1} parent=11 // pred_region
          %s322 = ssub.s32 768, 768
          %323 = vsyncadd [#allocation9], %s322
          %s324 = sshll.u32 [#allocation10], 4
          %s325 = int_to_ptr.vmem [resolvable:$true] %s324
          %330 = dma.hbm_to_vmem [thread:$0]  %s4, 768, %s325, [#allocation9], 64, 64, 4
        $region16: #{tpu_custom_call.1} parent=11 // pred_fallthru
          _
        // Predicated region
        $region17: #{tpu_custom_call.1} parent=11 // pred_check
          %p331 = pneg %p191
        $region18: #{tpu_custom_call.1} parent=11 // pred_check_branch
          %333 = sbr.rel (%p331) target = $region20
        $region19: #{tpu_custom_call.1} parent=11 // pred_region
          %s335 = ssub.s32 3072, 3072
          %336 = vsyncadd [#allocation12], %s335
          %s337 = sshll.u32 [#allocation11], 4
          %s338 = int_to_ptr.vmem [resolvable:$true] %s337
          %343 = dma.hbm_to_vmem [thread:$0]  %s5, 3072, %s338, [#allocation12], 64, 64, 4
        $region20: #{tpu_custom_call.1} parent=11 // pred_fallthru
          _
        // Predicated region
        $region21: #{tpu_custom_call.1} parent=11 // pred_check
          %p344 = pneg %p212
        $region22: #{tpu_custom_call.1} parent=11 // pred_check_branch
          %346 = sbr.rel (%p344) target = $region24
        $region23: #{tpu_custom_call.1} parent=11 // pred_region
          %s348 = ssub.s32 768, 768
          %349 = vsyncadd [#allocation12], %s348
          %s350 = sshll.u32 [#allocation13], 4
          %s351 = int_to_ptr.vmem [resolvable:$true] %s350
          %356 = dma.hbm_to_vmem [thread:$0]  %s6, 768, %s351, [#allocation12], 64, 64, 4
        $region24: #{tpu_custom_call.1} parent=11 // pred_fallthru
          _
        // Predicated region
        $region25: #{tpu_custom_call.1} parent=11 // pred_check
          %p357 = pneg %p233
        $region26: #{tpu_custom_call.1} parent=11 // pred_check_branch
          %359 = sbr.rel (%p357) target = $region28
        $region27: #{tpu_custom_call.1} parent=11 // pred_region
          %s361 = ssub.s32 3072, 3072
          %362 = vsyncadd [#allocation15], %s361
          %s363 = sshll.u32 [#allocation14], 4
          %s364 = int_to_ptr.vmem [resolvable:$true] %s363
          %369 = dma.hbm_to_vmem [thread:$0]  %s7, 3072, %s364, [#allocation15], 64, 64, 4
        $region28: #{tpu_custom_call.1} parent=11 // pred_fallthru
          _
        // Predicated region
        $region29: #{tpu_custom_call.1} parent=11 // pred_check
          %p370 = pneg %p254
        $region30: #{tpu_custom_call.1} parent=11 // pred_check_branch
          %372 = sbr.rel (%p370) target = $region32
        $region31: #{tpu_custom_call.1} parent=11 // pred_region
          %s374 = ssub.s32 384, 384
          %375 = vsyncadd [#allocation15], %s374
          %s376 = sshll.u32 [#allocation16], 4
          %s377 = int_to_ptr.vmem [resolvable:$true] %s376
          %382 = dma.hbm_to_vmem [thread:$0]  %s8, 384, %s377, [#allocation15], 64, 64, 4
        $region32: #{tpu_custom_call.1} parent=11 // pred_fallthru
          _
        // Predicated region
        $region33: #{tpu_custom_call.1} parent=11 // pred_check
          %p383 = pneg %p275
        $region34: #{tpu_custom_call.1} parent=11 // pred_check_branch
          %385 = sbr.rel (%p383) target = $region36
        $region35: #{tpu_custom_call.1} parent=11 // pred_region
          %s387 = ssub.s32 3072, 3072
          %388 = vsyncadd [#allocation18], %s387
          %s389 = sshll.u32 [#allocation17], 4
          %s390 = int_to_ptr.vmem [resolvable:$true] %s389
          %395 = dma.hbm_to_vmem [thread:$0]  %s9, 3072, %s390, [#allocation18], 64, 64, 4
        $region36: #{tpu_custom_call.1} parent=11 // pred_fallthru
          _
      $region12: #{tpu_custom_call.1} parent=5 // pred_fallthru
        _
      %p396 = scmp.lt.s32.totalorder %s31, 6
      // Predicated region
      $region37: #{tpu_custom_call.1} parent=5 // pred_check
        %p397 = pneg %p396
      $region38: #{tpu_custom_call.1} parent=5 // pred_check_branch
        %399 = sbr.rel (%p397) target = $region40
      $region39: #{tpu_custom_call.1} parent=5 // pred_region
        // Predicated region
        $region41: #{tpu_custom_call.1} parent=39 // pred_check
          %p400 = pneg %p65
        $region42: #{tpu_custom_call.1} parent=39 // pred_check_branch
          %402 = sbr.rel (%p400) target = $region44
        $region43: #{tpu_custom_call.1} parent=39 // pred_region
          %s403 = sand.u32 %s55, 1
          %s404 = scalar_lea.sflag [#allocation3], %s403
          %s405 = sand.u32 %s55, 1
          %s406 = smul.addr %s405, 64
          %s407 = scalar_lea.vmem [#allocation2], %s406
          %s409 = ssub.s32 1024, 1024
          %410 = vsyncadd %s404, %s409
          %s411 = smul.addr %s38, 8
          %s412 = smul.addr %s39, 24
          %s413 = sadd.s32 %s411, %s412
          %s414 = smul.addr %s413, 128
          %s415 = scalar_lea.hbm %s0, %s414
          %s416 = sshll.u32 %s407, 4
          %s417 = int_to_ptr.vmem [resolvable:$true] %s416
          %422 = dma.hbm_to_vmem [thread:$0]  %s415, 1024, %s417, %s404, 128, 128, 8
        $region44: #{tpu_custom_call.1} parent=39 // pred_fallthru
          _
        // Predicated region
        $region45: #{tpu_custom_call.1} parent=39 // pred_check
          %p423 = pneg %p91
        $region46: #{tpu_custom_call.1} parent=39 // pred_check_branch
          %425 = sbr.rel (%p423) target = $region48
        $region47: #{tpu_custom_call.1} parent=39 // pred_region
          %s426 = sand.u32 %s31, 1
          %s427 = scalar_lea.sflag [#allocation6], %s426
          %s428 = sand.u32 %s81, 1
          %s429 = smul.addr %s428, 64
          %s430 = scalar_lea.vmem [#allocation5], %s429
          %s432 = ssub.s32 1024, 1024
          %433 = vsyncadd %s427, %s432
          %s434 = smul.addr %s38, 8
          %s435 = smul.addr %s434, 128
          %s436 = scalar_lea.hbm %s1, %s435
          %s437 = sshll.u32 %s430, 4
          %s438 = int_to_ptr.vmem [resolvable:$true] %s437
          %443 = dma.hbm_to_vmem [thread:$0]  %s436, 1024, %s438, %s427, 128, 128, 8
        $region48: #{tpu_custom_call.1} parent=39 // pred_fallthru
          _
        // Predicated region
        $region49: #{tpu_custom_call.1} parent=39 // pred_check
          %p444 = pneg %p117
        $region50: #{tpu_custom_call.1} parent=39 // pred_check_branch
          %446 = sbr.rel (%p444) target = $region52
        $region51: #{tpu_custom_call.1} parent=39 // pred_region
          %s447 = sand.u32 %s31, 1
          %s448 = scalar_lea.sflag [#allocation6], %s447
          %s449 = sand.u32 %s107, 1
          %s450 = smul.addr %s449, 64
          %s451 = scalar_lea.vmem [#allocation7], %s450
          %s453 = ssub.s32 1024, 1024
          %454 = vsyncadd %s448, %s453
          %s455 = smul.addr %s38, 8
          %s456 = smul.addr %s455, 128
          %s457 = scalar_lea.hbm %s2, %s456
          %s458 = sshll.u32 %s451, 4
          %s459 = int_to_ptr.vmem [resolvable:$true] %s458
          %464 = dma.hbm_to_vmem [thread:$0]  %s457, 1024, %s459, %s448, 128, 128, 8
        $region52: #{tpu_custom_call.1} parent=39 // pred_fallthru
          _
        // Predicated region
        $region53: #{tpu_custom_call.1} parent=39 // pred_check
          %p465 = pneg %p143
        $region54: #{tpu_custom_call.1} parent=39 // pred_check_branch
          %467 = sbr.rel (%p465) target = $region56
        $region55: #{tpu_custom_call.1} parent=39 // pred_region
          %s468 = sand.u32 %s31, 1
          %s469 = scalar_lea.sflag [#allocation9], %s468
          %s470 = sand.u32 %s133, 1
          %s471 = smul.addr %s470, 32
          %s472 = scalar_lea.vmem [#allocation8], %s471
          %s474 = ssub.s32 512, 512
          %475 = vsyncadd %s469, %s474
          %s476 = smul.addr %s38, 4
          %s477 = smul.addr %s476, 128
          %s478 = scalar_lea.hbm %s3, %s477
          %s479 = sshll.u32 %s472, 4
          %s480 = int_to_ptr.vmem [resolvable:$true] %s479
          %485 = dma.hbm_to_vmem [thread:$0]  %s478, 512, %s480, %s469, 128, 128, 8
        $region56: #{tpu_custom_call.1} parent=39 // pred_fallthru
          _
      $region40: #{tpu_custom_call.1} parent=5 // pred_fallthru
        _
      %p486 = scmp.le.s32.totalorder 1, %s31
      %p487 = scmp.lt.s32.totalorder %s31, 7
      %p488 = pnand %p486, %p487
      %p489 = pneg %p488
      // Predicated region
      $region57: #{tpu_custom_call.1} parent=5 // pred_check
        _
      $region58: #{tpu_custom_call.1} parent=5 // pred_check_branch
        %491 = sbr.rel (%p488) target = $region60
      $region59: #{tpu_custom_call.1} parent=5 // pred_region
        %s492 = ssub.s32 %s31, 1
        %s493 = sand.u32 %s58, 1
        %s494 = scalar_lea.sflag [#allocation3], %s493
        %s495 = sand.u32 %s58, 1
        %s496 = smul.addr %s495, 64
        %s497 = scalar_lea.vmem [#allocation2], %s496
        // Predicated region
        $region61: #{tpu_custom_call.1} parent=59 // pred_check
          %p498 = pneg %p71
        $region62: #{tpu_custom_call.1} parent=59 // pred_check_branch
          %500 = sbr.rel (%p498) target = $region64
        $region63: #{tpu_custom_call.1} parent=59 // pred_region
          %501 = dma.done %s494, 1024
        $region64: #{tpu_custom_call.1} parent=59 // pred_fallthru
          _
        %s502 = sand.u32 %s36, 1
        %s503 = scalar_lea.sflag [#allocation6], %s502
        %s504 = sand.u32 %s84, 1
        %s505 = smul.addr %s504, 64
        %s506 = scalar_lea.vmem [#allocation5], %s505
        // Predicated region
        $region65: #{tpu_custom_call.1} parent=59 // pred_check
          %p507 = pneg %p97
        $region66: #{tpu_custom_call.1} parent=59 // pred_check_branch
          %509 = sbr.rel (%p507) target = $region68
        $region67: #{tpu_custom_call.1} parent=59 // pred_region
          %510 = dma.done %s503, 1024
        $region68: #{tpu_custom_call.1} parent=59 // pred_fallthru
          _
        %s511 = sand.u32 %s36, 1
        %s512 = scalar_lea.sflag [#allocation6], %s511
        %s513 = sand.u32 %s110, 1
        %s514 = smul.addr %s513, 64
        %s515 = scalar_lea.vmem [#allocation7], %s514
        // Predicated region
        $region69: #{tpu_custom_call.1} parent=59 // pred_check
          %p516 = pneg %p123
        $region70: #{tpu_custom_call.1} parent=59 // pred_check_branch
          %518 = sbr.rel (%p516) target = $region72
        $region71: #{tpu_custom_call.1} parent=59 // pred_region
          %519 = dma.done %s512, 1024
        $region72: #{tpu_custom_call.1} parent=59 // pred_fallthru
          _
        %s520 = sand.u32 %s36, 1
        %s521 = scalar_lea.sflag [#allocation9], %s520
        %s522 = sand.u32 %s136, 1
        %s523 = smul.addr %s522, 32
        %s524 = scalar_lea.vmem [#allocation8], %s523
        // Predicated region
        $region73: #{tpu_custom_call.1} parent=59 // pred_check
          %p525 = pneg %p149
        $region74: #{tpu_custom_call.1} parent=59 // pred_check_branch
          %527 = sbr.rel (%p525) target = $region76
        $region75: #{tpu_custom_call.1} parent=59 // pred_region
          %528 = dma.done %s521, 512
        $region76: #{tpu_custom_call.1} parent=59 // pred_fallthru
          _
        // Predicated region
        $region77: #{tpu_custom_call.1} parent=59 // pred_check
          %p529 = pneg %p170
        $region78: #{tpu_custom_call.1} parent=59 // pred_check_branch
          %531 = sbr.rel (%p529) target = $region80
        $region79: #{tpu_custom_call.1} parent=59 // pred_region
          %532 = dma.done [#allocation9], 768
        $region80: #{tpu_custom_call.1} parent=59 // pred_fallthru
          _
        // Predicated region
        $region81: #{tpu_custom_call.1} parent=59 // pred_check
          %p533 = pneg %p191
        $region82: #{tpu_custom_call.1} parent=59 // pred_check_branch
          %535 = sbr.rel (%p533) target = $region84
        $region83: #{tpu_custom_call.1} parent=59 // pred_region
          %536 = dma.done [#allocation12], 3072
        $region84: #{tpu_custom_call.1} parent=59 // pred_fallthru
          _
        // Predicated region
        $region85: #{tpu_custom_call.1} parent=59 // pred_check
          %p537 = pneg %p212
        $region86: #{tpu_custom_call.1} parent=59 // pred_check_branch
          %539 = sbr.rel (%p537) target = $region88
        $region87: #{tpu_custom_call.1} parent=59 // pred_region
          %540 = dma.done [#allocation12], 768
        $region88: #{tpu_custom_call.1} parent=59 // pred_fallthru
          _
        // Predicated region
        $region89: #{tpu_custom_call.1} parent=59 // pred_check
          %p541 = pneg %p233
        $region90: #{tpu_custom_call.1} parent=59 // pred_check_branch
          %543 = sbr.rel (%p541) target = $region92
        $region91: #{tpu_custom_call.1} parent=59 // pred_region
          %544 = dma.done [#allocation15], 3072
        $region92: #{tpu_custom_call.1} parent=59 // pred_fallthru
          _
        // Predicated region
        $region93: #{tpu_custom_call.1} parent=59 // pred_check
          %p545 = pneg %p254
        $region94: #{tpu_custom_call.1} parent=59 // pred_check_branch
          %547 = sbr.rel (%p545) target = $region96
        $region95: #{tpu_custom_call.1} parent=59 // pred_region
          %548 = dma.done [#allocation15], 384
        $region96: #{tpu_custom_call.1} parent=59 // pred_fallthru
          _
        // Predicated region
        $region97: #{tpu_custom_call.1} parent=59 // pred_check
          %p549 = pneg %p275
        $region98: #{tpu_custom_call.1} parent=59 // pred_check_branch
          %551 = sbr.rel (%p549) target = $region100
        $region99: #{tpu_custom_call.1} parent=59 // pred_region
          %552 = dma.done [#allocation18], 3072
        $region100: #{tpu_custom_call.1} parent=59 // pred_fallthru
          _
        %s553 = sand.u32 %s58, 1
        %s554 = scalar_lea.sflag [#allocation3], %s553
        %s555 = sand.u32 %s58, 1
        %s556 = smul.addr %s555, 64
        %s557 = scalar_lea.vmem [#allocation2], %s556
        %p558 = pneg %p71
        %p559 = pneg %p68
        %s560 = sand.u32 %s36, 1
        %s561 = scalar_lea.sflag [#allocation6], %s560
        %s562 = sand.u32 %s84, 1
        %s563 = smul.addr %s562, 64
        %s564 = scalar_lea.vmem [#allocation5], %s563
        %p565 = pneg %p97
        %p566 = pneg %p94
        %s567 = sand.u32 %s36, 1
        %s568 = scalar_lea.sflag [#allocation6], %s567
        %s569 = sand.u32 %s110, 1
        %s570 = smul.addr %s569, 64
        %s571 = scalar_lea.vmem [#allocation7], %s570
        %p572 = pneg %p123
        %p573 = pneg %p120
        %s574 = sand.u32 %s36, 1
        %s575 = scalar_lea.sflag [#allocation9], %s574
        %s576 = sand.u32 %s136, 1
        %s577 = smul.addr %s576, 32
        %s578 = scalar_lea.vmem [#allocation8], %s577
        %p579 = pneg %p149
        %p580 = pneg %p146
        %p581 = pneg %p170
        %p582 = pneg %p167
        %p583 = pneg %p191
        %p584 = pneg %p188
        %p585 = pneg %p212
        %p586 = pneg %p209
        %p587 = pneg %p233
        %p588 = pneg %p230
        %p589 = pneg %p254
        %p590 = pneg %p251
        %p591 = pneg %p275
        %p592 = pneg %p272
        %p593 = pneg %p303
        %p594 = pneg %p300
        %s595 = sand.u32 %s290, 1
        %s596 = scalar_lea.sflag [#allocation4], %s595
        %s597 = sand.u32 %s290, 1
        %s598 = smul.addr %s597, 32
        %s599 = scalar_lea.vmem [#allocation19], %s598
        %v601 = vld [vmem:[%s497] sm:$0xff]
        %v602 = vld [vmem:[%s497 + $0x8] sm:$0xff]
        %v603 = vld [vmem:[%s497 + $0x10] sm:$0xff]
        %v604 = vld [vmem:[%s497 + $0x18] sm:$0xff]
        %s605 = scalar_lea.vmem %s497, 32 [#allocation2]
        %v606 = vld [vmem:[%s605] sm:$0xff]
        %v607 = vld [vmem:[%s605 + $0x8] sm:$0xff]
        %v608 = vld [vmem:[%s605 + $0x10] sm:$0xff]
        %v609 = vld [vmem:[%s605 + $0x18] sm:$0xff]
        %v610 = vpack.c.bf16 %v602, %v601
        %v611 = vpack.c.bf16 %v604, %v603
        %v612 = vpack.c.bf16 %v607, %v606
        %v613 = vpack.c.bf16 %v609, %v608
        %v614 = vadd.f32 %v601, %v606
        %v615 = vadd.f32 %v602, %v607
        %v616 = vadd.f32 %v603, %v608
        %v617 = vadd.f32 %v604, %v609
        %v618 = vpack.c.bf16 %v615, %v614
        %v619 = vpack.c.bf16 %v617, %v616
        %v620 = vld [vmem:[#allocation10] sm:$0xf]
        %v621 = vld [vmem:[#allocation10 + $0x4] sm:$0xf]
        %v622 = vld [vmem:[#allocation10 + $0x8] sm:$0xf]
        %v623 = vld [vmem:[#allocation10 + $0xc] sm:$0xf]
        %v628 = vunpack.c.l.b16 %v620
        %v629 = vunpack.c.l.b16 %v621
        %v630 = vunpack.c.l.b16 %v622
        %v631 = vunpack.c.l.b16 %v623
        %v632 = vpack.c.b16 %v629, %v628
        %v633 = vpack.c.b16 %v631, %v630
        %vm634 = vcmask 261120
        %v636 = vsel %vm634, %v632, 0
        %v639 = vsel %vm634, %v633, 0
        %641 = vmatprep.subr.bf16.mxu0 0
        %642 = vmatpush1.bf16.msra.mxu0 0
        %643 = vmatprep.subr.bf16.mxu0 0
        %644 = vmatpush1.bf16.msra.mxu0 0
        %645 = vmatprep.subr.bf16.mxu0 0
        %646 = vmatpush1.bf16.msra.mxu0 0
        %647 = vmatprep.subr.bf16.mxu0 0
        %648 = vmatpush1.bf16.msra.mxu0 0
        %649 = vmatprep.subr.bf16.mxu0 0
        %650 = vmatpush1.bf16.msra.mxu0 0
        %651 = vmatprep.subr.bf16.mxu0 0
        %652 = vmatpush1.bf16.msra.mxu0 0
        %653 = vmatprep.subr.bf16.mxu0 0
        %654 = vmatpush1.bf16.msra.mxu0 %v611
        %655 = vmatprep.subr.bf16.mxu0 0
        %656 = vmatpush1.bf16.msra.mxu0 %v610
        %657 = vmatprep.subr.bf16.mxu0 0
        %658 = vmatpush2.bf16.msra.mxu0 0
        %659 = vmatprep.subr.bf16.mxu0 0
        %660 = vmatpush2.bf16.msra.mxu0 0
        %661 = vmatprep.subr.bf16.mxu0 0
        %662 = vmatpush2.bf16.msra.mxu0 0
        %663 = vmatprep.subr.bf16.mxu0 0
        %664 = vmatpush2.bf16.msra.mxu0 0
        %665 = vmatprep.subr.bf16.mxu0 0
        %666 = vmatpush2.bf16.msra.mxu0 0
        %667 = vmatprep.subr.bf16.mxu0 0
        %668 = vmatpush2.bf16.msra.mxu0 0
        %669 = vmatprep.subr.bf16.mxu0 0
        %670 = vmatpush2.bf16.msra.mxu0 0
        %671 = vmatprep.subr.bf16.mxu0 0
        %672 = vmatpush2.bf16.msra.mxu0 0
        %673 = vmatprep.mubr.bf16.mxu0 0
        %674 = vmatmul.mubr.bf16.gmra.mxu0 %v636
        %v675 = vpop.f32.mrf.mxu0
        %v676 = vadd.f32 0.0, %v675
        %v677 = vpop.f32.mrf.mxu0
        %v678 = vpop.f32.mrf.mxu0
        %v679 = vadd.f32 0.0, %v678
        %v680 = vpop.f32.mrf.mxu0
        %681 = vmatprep.mubr.bf16.mxu0 0
        %682 = vmatmul.mubr.bf16.gmra.mxu0 %v639
        %v683 = vpop.f32.mrf.mxu0
        %v684 = vadd.f32 0.0, %v683
        %v685 = vpop.f32.mrf.mxu0
        %v686 = vpop.f32.mrf.mxu0
        %v687 = vadd.f32 0.0, %v686
        %v688 = vpop.f32.mrf.mxu0
        %689 = vdwg.mxu0
        %s690 = scalar_lea.vmem [#allocation10], 16
        %v691 = vld [vmem:[%s690] sm:$0xf]
        %v692 = vld [vmem:[%s690 + $0x4] sm:$0xf]
        %v693 = vld [vmem:[%s690 + $0x8] sm:$0xf]
        %v694 = vld [vmem:[%s690 + $0xc] sm:$0xf]
        %v699 = vunpack.c.l.b16 %v691
        %v700 = vunpack.c.l.b16 %v692
        %v701 = vunpack.c.l.b16 %v693
        %v702 = vunpack.c.l.b16 %v694
        %v703 = vpack.c.b16 %v700, %v699
        %v704 = vpack.c.b16 %v702, %v701
        %v706 = vsel %vm634, %v703, 0
        %v709 = vsel %vm634, %v704, 0
        %711 = vmatprep.subr.bf16.mxu0 0
        %712 = vmatpush1.bf16.msra.mxu0 0
        %713 = vmatprep.subr.bf16.mxu0 0
        %714 = vmatpush1.bf16.msra.mxu0 0
        %715 = vmatprep.subr.bf16.mxu0 0
        %716 = vmatpush1.bf16.msra.mxu0 0
        %717 = vmatprep.subr.bf16.mxu0 0
        %718 = vmatpush1.bf16.msra.mxu0 0
        %719 = vmatprep.subr.bf16.mxu0 0
        %720 = vmatpush1.bf16.msra.mxu0 0
        %721 = vmatprep.subr.bf16.mxu0 0
        %722 = vmatpush1.bf16.msra.mxu0 0
        %723 = vmatprep.subr.bf16.mxu0 0
        %724 = vmatpush1.bf16.msra.mxu0 %v613
        %725 = vmatprep.subr.bf16.mxu0 0
        %726 = vmatpush1.bf16.msra.mxu0 %v612
        %727 = vmatprep.subr.bf16.mxu0 0
        %728 = vmatpush2.bf16.msra.mxu0 0
        %729 = vmatprep.subr.bf16.mxu0 0
        %730 = vmatpush2.bf16.msra.mxu0 0
        %731 = vmatprep.subr.bf16.mxu0 0
        %732 = vmatpush2.bf16.msra.mxu0 0
        %733 = vmatprep.subr.bf16.mxu0 0
        %734 = vmatpush2.bf16.msra.mxu0 0
        %735 = vmatprep.subr.bf16.mxu0 0
        %736 = vmatpush2.bf16.msra.mxu0 0
        %737 = vmatprep.subr.bf16.mxu0 0
        %738 = vmatpush2.bf16.msra.mxu0 0
        %739 = vmatprep.subr.bf16.mxu0 0
        %740 = vmatpush2.bf16.msra.mxu0 0
        %741 = vmatprep.subr.bf16.mxu0 0
        %742 = vmatpush2.bf16.msra.mxu0 0
        %743 = vmatprep.mubr.bf16.mxu0 0
        %744 = vmatmul.mubr.bf16.gmra.mxu0 %v706
        %v745 = vpop.f32.mrf.mxu0
        %v746 = vadd.f32 0.0, %v745
        %v747 = vpop.f32.mrf.mxu0
        %v748 = vpop.f32.mrf.mxu0
        %v749 = vadd.f32 0.0, %v748
        %v750 = vpop.f32.mrf.mxu0
        %751 = vmatprep.mubr.bf16.mxu0 0
        %752 = vmatmul.mubr.bf16.gmra.mxu0 %v709
        %v753 = vpop.f32.mrf.mxu0
        %v754 = vadd.f32 0.0, %v753
        %v755 = vpop.f32.mrf.mxu0
        %v756 = vpop.f32.mrf.mxu0
        %v757 = vadd.f32 0.0, %v756
        %v758 = vpop.f32.mrf.mxu0
        %759 = vdwg.mxu0
        %s760 = scalar_lea.vmem [#allocation10], 32
        %v761 = vld [vmem:[%s760] sm:$0xf]
        %v762 = vld [vmem:[%s760 + $0x4] sm:$0xf]
        %v763 = vld [vmem:[%s760 + $0x8] sm:$0xf]
        %v764 = vld [vmem:[%s760 + $0xc] sm:$0xf]
        %v769 = vunpack.c.l.b16 %v761
        %v770 = vunpack.c.l.b16 %v762
        %v771 = vunpack.c.l.b16 %v763
        %v772 = vunpack.c.l.b16 %v764
        %v773 = vpack.c.b16 %v770, %v769
        %v774 = vpack.c.b16 %v772, %v771
        %v776 = vsel %vm634, %v773, 0
        %v779 = vsel %vm634, %v774, 0
        %781 = vmatprep.subr.bf16.mxu0 0
        %782 = vmatpush1.bf16.msra.mxu0 0
        %783 = vmatprep.subr.bf16.mxu0 0
        %784 = vmatpush1.bf16.msra.mxu0 0
        %785 = vmatprep.subr.bf16.mxu0 0
        %786 = vmatpush1.bf16.msra.mxu0 0
        %787 = vmatprep.subr.bf16.mxu0 0
        %788 = vmatpush1.bf16.msra.mxu0 0
        %789 = vmatprep.subr.bf16.mxu0 0
        %790 = vmatpush1.bf16.msra.mxu0 0
        %791 = vmatprep.subr.bf16.mxu0 0
        %792 = vmatpush1.bf16.msra.mxu0 0
        %793 = vmatprep.subr.bf16.mxu0 0
        %794 = vmatpush1.bf16.msra.mxu0 %v619
        %795 = vmatprep.subr.bf16.mxu0 0
        %796 = vmatpush1.bf16.msra.mxu0 %v618
        %797 = vmatprep.subr.bf16.mxu0 0
        %798 = vmatpush2.bf16.msra.mxu0 0
        %799 = vmatprep.subr.bf16.mxu0 0
        %800 = vmatpush2.bf16.msra.mxu0 0
        %801 = vmatprep.subr.bf16.mxu0 0
        %802 = vmatpush2.bf16.msra.mxu0 0
        %803 = vmatprep.subr.bf16.mxu0 0
        %804 = vmatpush2.bf16.msra.mxu0 0
        %805 = vmatprep.subr.bf16.mxu0 0
        %806 = vmatpush2.bf16.msra.mxu0 0
        %807 = vmatprep.subr.bf16.mxu0 0
        %808 = vmatpush2.bf16.msra.mxu0 0
        %809 = vmatprep.subr.bf16.mxu0 0
        %810 = vmatpush2.bf16.msra.mxu0 0
        %811 = vmatprep.subr.bf16.mxu0 0
        %812 = vmatpush2.bf16.msra.mxu0 0
        %813 = vmatprep.mubr.bf16.mxu0 0
        %814 = vmatmul.mubr.bf16.gmra.mxu0 %v776
        %v815 = vpop.f32.mrf.mxu0
        %v816 = vadd.f32 0.0, %v815
        %v817 = vpop.f32.mrf.mxu0
        %v818 = vpop.f32.mrf.mxu0
        %v819 = vadd.f32 0.0, %v818
        %v820 = vpop.f32.mrf.mxu0
        %821 = vmatprep.mubr.bf16.mxu0 0
        %822 = vmatmul.mubr.bf16.gmra.mxu0 %v779
        %v823 = vpop.f32.mrf.mxu0
        %v824 = vadd.f32 0.0, %v823
        %v825 = vpop.f32.mrf.mxu0
        %v826 = vpop.f32.mrf.mxu0
        %v827 = vadd.f32 0.0, %v826
        %v828 = vpop.f32.mrf.mxu0
        %829 = vdwg.mxu0
        %v830 = vsub.f32 %v676, %v746
        %v831 = vsub.f32 %v679, %v749
        %v832 = vsub.f32 %v684, %v754
        %v833 = vsub.f32 %v687, %v757
        %v834 = vsub.f32 %v816, %v676
        %v835 = vsub.f32 %v819, %v679
        %v836 = vsub.f32 %v824, %v684
        %v837 = vsub.f32 %v827, %v687
        %v838 = vsub.f32 %v834, %v746
        %v839 = vsub.f32 %v835, %v749
        %v840 = vsub.f32 %v836, %v754
        %v841 = vsub.f32 %v837, %v757
        %v842 = vpack.c.bf16 %v831, %v830
        %v843 = vpack.c.bf16 %v833, %v832
        %v844 = vpack.c.bf16 %v839, %v838
        %v845 = vpack.c.bf16 %v841, %v840
        %v846 = vadd.f32 %v830, %v838
        %v847 = vadd.f32 %v831, %v839
        %v848 = vadd.f32 %v832, %v840
        %v849 = vadd.f32 %v833, %v841
        %v850 = vpack.c.bf16 %v847, %v846
        %v851 = vpack.c.bf16 %v849, %v848
        %v852 = vld [vmem:[#allocation11] sm:$0xf]
        %v853 = vld [vmem:[#allocation11 + $0x4] sm:$0xf]
        %v854 = vld [vmem:[#allocation11 + $0x8] sm:$0xf]
        %v855 = vld [vmem:[#allocation11 + $0xc] sm:$0xf]
        %v856 = vld [vmem:[#allocation11 + $0x10] sm:$0xf]
        %v857 = vld [vmem:[#allocation11 + $0x14] sm:$0xf]
        %v858 = vld [vmem:[#allocation11 + $0x18] sm:$0xf]
        %v859 = vld [vmem:[#allocation11 + $0x1c] sm:$0xf]
        %v860 = vld [vmem:[#allocation11 + $0x20] sm:$0xf]
        %v861 = vld [vmem:[#allocation11 + $0x24] sm:$0xf]
        %v862 = vld [vmem:[#allocation11 + $0x28] sm:$0xf]
        %v863 = vld [vmem:[#allocation11 + $0x2c] sm:$0xf]
        %v864 = vld [vmem:[#allocation11 + $0x30] sm:$0xf]
        %v865 = vld [vmem:[#allocation11 + $0x34] sm:$0xf]
        %v866 = vld [vmem:[#allocation11 + $0x38] sm:$0xf]
        %v867 = vld [vmem:[#allocation11 + $0x3c] sm:$0xf]
        %v884 = vunpack.c.l.b16 %v852
        %v885 = vunpack.c.l.b16 %v853
        %v886 = vunpack.c.l.b16 %v854
        %v887 = vunpack.c.l.b16 %v855
        %v888 = vunpack.c.l.b16 %v856
        %v889 = vunpack.c.l.b16 %v857
        %v890 = vunpack.c.l.b16 %v858
        %v891 = vunpack.c.l.b16 %v859
        %v892 = vunpack.c.l.b16 %v860
        %v893 = vunpack.c.l.b16 %v861
        %v894 = vunpack.c.l.b16 %v862
        %v895 = vunpack.c.l.b16 %v863
        %v896 = vunpack.c.l.b16 %v864
        %v897 = vunpack.c.l.b16 %v865
        %v898 = vunpack.c.l.b16 %v866
        %v899 = vunpack.c.l.b16 %v867
        %v900 = vpack.c.b16 %v885, %v884
        %v901 = vpack.c.b16 %v887, %v886
        %v902 = vpack.c.b16 %v889, %v888
        %v903 = vpack.c.b16 %v891, %v890
        %v904 = vpack.c.b16 %v893, %v892
        %v905 = vpack.c.b16 %v895, %v894
        %v906 = vpack.c.b16 %v897, %v896
        %v907 = vpack.c.b16 %v899, %v898
        %916 = vmatprep.subr.bf16.mxu0 0
        %917 = vmatpush1.bf16.msra.mxu0 %v907
        %918 = vmatprep.subr.bf16.mxu0 0
        %919 = vmatpush1.bf16.msra.mxu0 %v906
        %920 = vmatprep.subr.bf16.mxu0 0
        %921 = vmatpush1.bf16.msra.mxu0 %v905
        %922 = vmatprep.subr.bf16.mxu0 0
        %923 = vmatpush1.bf16.msra.mxu0 %v904
        %924 = vmatprep.subr.bf16.mxu0 0
        %925 = vmatpush1.bf16.msra.mxu0 %v903
        %926 = vmatprep.subr.bf16.mxu0 0
        %927 = vmatpush1.bf16.msra.mxu0 %v902
        %928 = vmatprep.subr.bf16.mxu0 0
        %929 = vmatpush1.bf16.msra.mxu0 %v901
        %930 = vmatprep.subr.bf16.mxu0 0
        %931 = vmatpush1.bf16.msra.mxu0 %v900
        %932 = vmatprep.subr.bf16.mxu0 0
        %933 = vmatpush2.bf16.msra.mxu0 0
        %934 = vmatprep.subr.bf16.mxu0 0
        %935 = vmatpush2.bf16.msra.mxu0 0
        %936 = vmatprep.subr.bf16.mxu0 0
        %937 = vmatpush2.bf16.msra.mxu0 0
        %938 = vmatprep.subr.bf16.mxu0 0
        %939 = vmatpush2.bf16.msra.mxu0 0
        %940 = vmatprep.subr.bf16.mxu0 0
        %941 = vmatpush2.bf16.msra.mxu0 0
        %942 = vmatprep.subr.bf16.mxu0 0
        %943 = vmatpush2.bf16.msra.mxu0 0
        %944 = vmatprep.subr.bf16.mxu0 0
        %945 = vmatpush2.bf16.msra.mxu0 0
        %946 = vmatprep.subr.bf16.mxu0 0
        %947 = vmatpush2.bf16.msra.mxu0 0
        %948 = vmatprep.mubr.bf16.mxu0 0
        %949 = vmatmul.mubr.bf16.gmra.mxu0 %v842
        %v950 = vpop.f32.mrf.mxu0
        %v951 = vadd.f32 0.0, %v950
        %v952 = vpop.f32.mrf.mxu0
        %v953 = vpop.f32.mrf.mxu0
        %v954 = vadd.f32 0.0, %v953
        %v955 = vpop.f32.mrf.mxu0
        %956 = vmatprep.mubr.bf16.mxu0 0
        %957 = vmatmul.mubr.bf16.gmra.mxu0 %v843
        %v958 = vpop.f32.mrf.mxu0
        %v959 = vadd.f32 0.0, %v958
        %v960 = vpop.f32.mrf.mxu0
        %v961 = vpop.f32.mrf.mxu0
        %v962 = vadd.f32 0.0, %v961
        %v963 = vpop.f32.mrf.mxu0
        %964 = vdwg.mxu0
        %s965 = scalar_lea.vmem [#allocation11], 64
        %v966 = vld [vmem:[%s965] sm:$0xf]
        %v967 = vld [vmem:[%s965 + $0x4] sm:$0xf]
        %v968 = vld [vmem:[%s965 + $0x8] sm:$0xf]
        %v969 = vld [vmem:[%s965 + $0xc] sm:$0xf]
        %v970 = vld [vmem:[%s965 + $0x10] sm:$0xf]
        %v971 = vld [vmem:[%s965 + $0x14] sm:$0xf]
        %v972 = vld [vmem:[%s965 + $0x18] sm:$0xf]
        %v973 = vld [vmem:[%s965 + $0x1c] sm:$0xf]
        %v974 = vld [vmem:[%s965 + $0x20] sm:$0xf]
        %v975 = vld [vmem:[%s965 + $0x24] sm:$0xf]
        %v976 = vld [vmem:[%s965 + $0x28] sm:$0xf]
        %v977 = vld [vmem:[%s965 + $0x2c] sm:$0xf]
        %v978 = vld [vmem:[%s965 + $0x30] sm:$0xf]
        %v979 = vld [vmem:[%s965 + $0x34] sm:$0xf]
        %v980 = vld [vmem:[%s965 + $0x38] sm:$0xf]
        %v981 = vld [vmem:[%s965 + $0x3c] sm:$0xf]
        %v998 = vunpack.c.l.b16 %v966
        %v999 = vunpack.c.l.b16 %v967
        %v1000 = vunpack.c.l.b16 %v968
        %v1001 = vunpack.c.l.b16 %v969
        %v1002 = vunpack.c.l.b16 %v970
        %v1003 = vunpack.c.l.b16 %v971
        %v1004 = vunpack.c.l.b16 %v972
        %v1005 = vunpack.c.l.b16 %v973
        %v1006 = vunpack.c.l.b16 %v974
        %v1007 = vunpack.c.l.b16 %v975
        %v1008 = vunpack.c.l.b16 %v976
        %v1009 = vunpack.c.l.b16 %v977
        %v1010 = vunpack.c.l.b16 %v978
        %v1011 = vunpack.c.l.b16 %v979
        %v1012 = vunpack.c.l.b16 %v980
        %v1013 = vunpack.c.l.b16 %v981
        %v1014 = vpack.c.b16 %v999, %v998
        %v1015 = vpack.c.b16 %v1001, %v1000
        %v1016 = vpack.c.b16 %v1003, %v1002
        %v1017 = vpack.c.b16 %v1005, %v1004
        %v1018 = vpack.c.b16 %v1007, %v1006
        %v1019 = vpack.c.b16 %v1009, %v1008
        %v1020 = vpack.c.b16 %v1011, %v1010
        %v1021 = vpack.c.b16 %v1013, %v1012
        %1030 = vmatprep.subr.bf16.mxu0 0
        %1031 = vmatpush1.bf16.msra.mxu0 %v1021
        %1032 = vmatprep.subr.bf16.mxu0 0
        %1033 = vmatpush1.bf16.msra.mxu0 %v1020
        %1034 = vmatprep.subr.bf16.mxu0 0
        %1035 = vmatpush1.bf16.msra.mxu0 %v1019
        %1036 = vmatprep.subr.bf16.mxu0 0
        %1037 = vmatpush1.bf16.msra.mxu0 %v1018
        %1038 = vmatprep.subr.bf16.mxu0 0
        %1039 = vmatpush1.bf16.msra.mxu0 %v1017
        %1040 = vmatprep.subr.bf16.mxu0 0
        %1041 = vmatpush1.bf16.msra.mxu0 %v1016
        %1042 = vmatprep.subr.bf16.mxu0 0
        %1043 = vmatpush1.bf16.msra.mxu0 %v1015
        %1044 = vmatprep.subr.bf16.mxu0 0
        %1045 = vmatpush1.bf16.msra.mxu0 %v1014
        %1046 = vmatprep.subr.bf16.mxu0 0
        %1047 = vmatpush2.bf16.msra.mxu0 0
        %1048 = vmatprep.subr.bf16.mxu0 0
        %1049 = vmatpush2.bf16.msra.mxu0 0
        %1050 = vmatprep.subr.bf16.mxu0 0
        %1051 = vmatpush2.bf16.msra.mxu0 0
        %1052 = vmatprep.subr.bf16.mxu0 0
        %1053 = vmatpush2.bf16.msra.mxu0 0
        %1054 = vmatprep.subr.bf16.mxu0 0
        %1055 = vmatpush2.bf16.msra.mxu0 0
        %1056 = vmatprep.subr.bf16.mxu0 0
        %1057 = vmatpush2.bf16.msra.mxu0 0
        %1058 = vmatprep.subr.bf16.mxu0 0
        %1059 = vmatpush2.bf16.msra.mxu0 0
        %1060 = vmatprep.subr.bf16.mxu0 0
        %1061 = vmatpush2.bf16.msra.mxu0 0
        %1062 = vmatprep.mubr.bf16.mxu0 0
        %1063 = vmatmul.mubr.bf16.gmra.mxu0 %v844
        %v1064 = vpop.f32.mrf.mxu0
        %v1065 = vadd.f32 0.0, %v1064
        %v1066 = vpop.f32.mrf.mxu0
        %v1067 = vpop.f32.mrf.mxu0
        %v1068 = vadd.f32 0.0, %v1067
        %v1069 = vpop.f32.mrf.mxu0
        %1070 = vmatprep.mubr.bf16.mxu0 0
        %1071 = vmatmul.mubr.bf16.gmra.mxu0 %v845
        %v1072 = vpop.f32.mrf.mxu0
        %v1073 = vadd.f32 0.0, %v1072
        %v1074 = vpop.f32.mrf.mxu0
        %v1075 = vpop.f32.mrf.mxu0
        %v1076 = vadd.f32 0.0, %v1075
        %v1077 = vpop.f32.mrf.mxu0
        %1078 = vdwg.mxu0
        %s1079 = scalar_lea.vmem [#allocation11], 128
        %v1080 = vld [vmem:[%s1079] sm:$0xf]
        %v1081 = vld [vmem:[%s1079 + $0x4] sm:$0xf]
        %v1082 = vld [vmem:[%s1079 + $0x8] sm:$0xf]
        %v1083 = vld [vmem:[%s1079 + $0xc] sm:$0xf]
        %v1084 = vld [vmem:[%s1079 + $0x10] sm:$0xf]
        %v1085 = vld [vmem:[%s1079 + $0x14] sm:$0xf]
        %v1086 = vld [vmem:[%s1079 + $0x18] sm:$0xf]
        %v1087 = vld [vmem:[%s1079 + $0x1c] sm:$0xf]
        %v1088 = vld [vmem:[%s1079 + $0x20] sm:$0xf]
        %v1089 = vld [vmem:[%s1079 + $0x24] sm:$0xf]
        %v1090 = vld [vmem:[%s1079 + $0x28] sm:$0xf]
        %v1091 = vld [vmem:[%s1079 + $0x2c] sm:$0xf]
        %v1092 = vld [vmem:[%s1079 + $0x30] sm:$0xf]
        %v1093 = vld [vmem:[%s1079 + $0x34] sm:$0xf]
        %v1094 = vld [vmem:[%s1079 + $0x38] sm:$0xf]
        %v1095 = vld [vmem:[%s1079 + $0x3c] sm:$0xf]
        %v1112 = vunpack.c.l.b16 %v1080
        %v1113 = vunpack.c.l.b16 %v1081
        %v1114 = vunpack.c.l.b16 %v1082
        %v1115 = vunpack.c.l.b16 %v1083
        %v1116 = vunpack.c.l.b16 %v1084
        %v1117 = vunpack.c.l.b16 %v1085
        %v1118 = vunpack.c.l.b16 %v1086
        %v1119 = vunpack.c.l.b16 %v1087
        %v1120 = vunpack.c.l.b16 %v1088
        %v1121 = vunpack.c.l.b16 %v1089
        %v1122 = vunpack.c.l.b16 %v1090
        %v1123 = vunpack.c.l.b16 %v1091
        %v1124 = vunpack.c.l.b16 %v1092
        %v1125 = vunpack.c.l.b16 %v1093
        %v1126 = vunpack.c.l.b16 %v1094
        %v1127 = vunpack.c.l.b16 %v1095
        %v1128 = vpack.c.b16 %v1113, %v1112
        %v1129 = vpack.c.b16 %v1115, %v1114
        %v1130 = vpack.c.b16 %v1117, %v1116
        %v1131 = vpack.c.b16 %v1119, %v1118
        %v1132 = vpack.c.b16 %v1121, %v1120
        %v1133 = vpack.c.b16 %v1123, %v1122
        %v1134 = vpack.c.b16 %v1125, %v1124
        %v1135 = vpack.c.b16 %v1127, %v1126
        %1144 = vmatprep.subr.bf16.mxu0 0
        %1145 = vmatpush1.bf16.msra.mxu0 %v1135
        %1146 = vmatprep.subr.bf16.mxu0 0
        %1147 = vmatpush1.bf16.msra.mxu0 %v1134
        %1148 = vmatprep.subr.bf16.mxu0 0
        %1149 = vmatpush1.bf16.msra.mxu0 %v1133
        %1150 = vmatprep.subr.bf16.mxu0 0
        %1151 = vmatpush1.bf16.msra.mxu0 %v1132
        %1152 = vmatprep.subr.bf16.mxu0 0
        %1153 = vmatpush1.bf16.msra.mxu0 %v1131
        %1154 = vmatprep.subr.bf16.mxu0 0
        %1155 = vmatpush1.bf16.msra.mxu0 %v1130
        %1156 = vmatprep.subr.bf16.mxu0 0
        %1157 = vmatpush1.bf16.msra.mxu0 %v1129
        %1158 = vmatprep.subr.bf16.mxu0 0
        %1159 = vmatpush1.bf16.msra.mxu0 %v1128
        %1160 = vmatprep.subr.bf16.mxu0 0
        %1161 = vmatpush2.bf16.msra.mxu0 0
        %1162 = vmatprep.subr.bf16.mxu0 0
        %1163 = vmatpush2.bf16.msra.mxu0 0
        %1164 = vmatprep.subr.bf16.mxu0 0
        %1165 = vmatpush2.bf16.msra.mxu0 0
        %1166 = vmatprep.subr.bf16.mxu0 0
        %1167 = vmatpush2.bf16.msra.mxu0 0
        %1168 = vmatprep.subr.bf16.mxu0 0
        %1169 = vmatpush2.bf16.msra.mxu0 0
        %1170 = vmatprep.subr.bf16.mxu0 0
        %1171 = vmatpush2.bf16.msra.mxu0 0
        %1172 = vmatprep.subr.bf16.mxu0 0
        %1173 = vmatpush2.bf16.msra.mxu0 0
        %1174 = vmatprep.subr.bf16.mxu0 0
        %1175 = vmatpush2.bf16.msra.mxu0 0
        %1176 = vmatprep.mubr.bf16.mxu0 0
        %1177 = vmatmul.mubr.bf16.gmra.mxu0 %v850
        %v1178 = vpop.f32.mrf.mxu0
        %v1179 = vadd.f32 0.0, %v1178
        %v1180 = vpop.f32.mrf.mxu0
        %v1181 = vpop.f32.mrf.mxu0
        %v1182 = vadd.f32 0.0, %v1181
        %v1183 = vpop.f32.mrf.mxu0
        %1184 = vmatprep.mubr.bf16.mxu0 0
        %1185 = vmatmul.mubr.bf16.gmra.mxu0 %v851
        %v1186 = vpop.f32.mrf.mxu0
        %v1187 = vadd.f32 0.0, %v1186
        %v1188 = vpop.f32.mrf.mxu0
        %v1189 = vpop.f32.mrf.mxu0
        %v1190 = vadd.f32 0.0, %v1189
        %v1191 = vpop.f32.mrf.mxu0
        %1192 = vdwg.mxu0
        %v1193 = vsub.f32 %v951, %v1065
        %v1194 = vsub.f32 %v954, %v1068
        %v1195 = vsub.f32 %v959, %v1073
        %v1196 = vsub.f32 %v962, %v1076
        %v1197 = vsub.f32 %v1179, %v951
        %v1198 = vsub.f32 %v1182, %v954
        %v1199 = vsub.f32 %v1187, %v959
        %v1200 = vsub.f32 %v1190, %v962
        %v1201 = vsub.f32 %v1197, %v1065
        %v1202 = vsub.f32 %v1198, %v1068
        %v1203 = vsub.f32 %v1199, %v1073
        %v1204 = vsub.f32 %v1200, %v1076
        %v1205 = vld [vmem:[%s506] sm:$0xff]
        %v1206 = vld [vmem:[%s506 + $0x8] sm:$0xff]
        %v1207 = vld [vmem:[%s506 + $0x10] sm:$0xff]
        %v1208 = vld [vmem:[%s506 + $0x18] sm:$0xff]
        %s1209 = scalar_lea.vmem %s506, 32 [#allocation5]
        %v1210 = vld [vmem:[%s1209] sm:$0xff]
        %v1211 = vld [vmem:[%s1209 + $0x8] sm:$0xff]
        %v1212 = vld [vmem:[%s1209 + $0x10] sm:$0xff]
        %v1213 = vld [vmem:[%s1209 + $0x18] sm:$0xff]
        %v1214 = vmul.f32 %v1193, %v1205
        %v1215 = vmul.f32 %v1194, %v1206
        %v1216 = vmul.f32 %v1195, %v1207
        %v1217 = vmul.f32 %v1196, %v1208
        %v1218 = vmul.f32 %v1201, %v1210
        %v1219 = vmul.f32 %v1202, %v1211
        %v1220 = vmul.f32 %v1203, %v1212
        %v1221 = vmul.f32 %v1204, %v1213
        %v1222 = vsub.f32 %v1214, %v1218
        %v1223 = vsub.f32 %v1215, %v1219
        %v1224 = vsub.f32 %v1216, %v1220
        %v1225 = vsub.f32 %v1217, %v1221
        %v1226 = vmul.f32 %v1193, %v1210
        %v1227 = vmul.f32 %v1194, %v1211
        %v1228 = vmul.f32 %v1195, %v1212
        %v1229 = vmul.f32 %v1196, %v1213
        %v1230 = vmul.f32 %v1201, %v1205
        %v1231 = vmul.f32 %v1202, %v1206
        %v1232 = vmul.f32 %v1203, %v1207
        %v1233 = vmul.f32 %v1204, %v1208
        %v1234 = vadd.f32 %v1226, %v1230
        %v1235 = vadd.f32 %v1227, %v1231
        %v1236 = vadd.f32 %v1228, %v1232
        %v1237 = vadd.f32 %v1229, %v1233
        %v1238 = vpack.c.bf16 %v1223, %v1222
        %v1239 = vpack.c.bf16 %v1225, %v1224
        %v1240 = vpack.c.bf16 %v1235, %v1234
        %v1241 = vpack.c.bf16 %v1237, %v1236
        %v1242 = vadd.f32 %v1222, %v1234
        %v1243 = vadd.f32 %v1223, %v1235
        %v1244 = vadd.f32 %v1224, %v1236
        %v1245 = vadd.f32 %v1225, %v1237
        %v1246 = vpack.c.bf16 %v1243, %v1242
        %v1247 = vpack.c.bf16 %v1245, %v1244
        %v1248 = vld [vmem:[#allocation13] sm:$0xf]
        %v1249 = vld [vmem:[#allocation13 + $0x4] sm:$0xf]
        %v1250 = vld [vmem:[#allocation13 + $0x8] sm:$0xf]
        %v1251 = vld [vmem:[#allocation13 + $0xc] sm:$0xf]
        %v1256 = vunpack.c.l.b16 %v1248
        %v1257 = vunpack.c.l.b16 %v1249
        %v1258 = vunpack.c.l.b16 %v1250
        %v1259 = vunpack.c.l.b16 %v1251
        %v1260 = vpack.c.b16 %v1257, %v1256
        %v1261 = vpack.c.b16 %v1259, %v1258
        %v1263 = vsel %vm634, %v1260, 0
        %v1266 = vsel %vm634, %v1261, 0
        %1268 = vmatprep.subr.bf16.mxu0 0
        %1269 = vmatpush1.bf16.msra.mxu0 0
        %1270 = vmatprep.subr.bf16.mxu0 0
        %1271 = vmatpush1.bf16.msra.mxu0 0
        %1272 = vmatprep.subr.bf16.mxu0 0
        %1273 = vmatpush1.bf16.msra.mxu0 0
        %1274 = vmatprep.subr.bf16.mxu0 0
        %1275 = vmatpush1.bf16.msra.mxu0 0
        %1276 = vmatprep.subr.bf16.mxu0 0
        %1277 = vmatpush1.bf16.msra.mxu0 0
        %1278 = vmatprep.subr.bf16.mxu0 0
        %1279 = vmatpush1.bf16.msra.mxu0 0
        %1280 = vmatprep.subr.bf16.mxu0 0
        %1281 = vmatpush1.bf16.msra.mxu0 %v1239
        %1282 = vmatprep.subr.bf16.mxu0 0
        %1283 = vmatpush1.bf16.msra.mxu0 %v1238
        %1284 = vmatprep.subr.bf16.mxu0 0
        %1285 = vmatpush2.bf16.msra.mxu0 0
        %1286 = vmatprep.subr.bf16.mxu0 0
        %1287 = vmatpush2.bf16.msra.mxu0 0
        %1288 = vmatprep.subr.bf16.mxu0 0
        %1289 = vmatpush2.bf16.msra.mxu0 0
        %1290 = vmatprep.subr.bf16.mxu0 0
        %1291 = vmatpush2.bf16.msra.mxu0 0
        %1292 = vmatprep.subr.bf16.mxu0 0
        %1293 = vmatpush2.bf16.msra.mxu0 0
        %1294 = vmatprep.subr.bf16.mxu0 0
        %1295 = vmatpush2.bf16.msra.mxu0 0
        %1296 = vmatprep.subr.bf16.mxu0 0
        %1297 = vmatpush2.bf16.msra.mxu0 0
        %1298 = vmatprep.subr.bf16.mxu0 0
        %1299 = vmatpush2.bf16.msra.mxu0 0
        %1300 = vmatprep.mubr.bf16.mxu0 0
        %1301 = vmatmul.mubr.bf16.gmra.mxu0 %v1263
        %v1302 = vpop.f32.mrf.mxu0
        %v1303 = vadd.f32 0.0, %v1302
        %v1304 = vpop.f32.mrf.mxu0
        %v1305 = vpop.f32.mrf.mxu0
        %v1306 = vadd.f32 0.0, %v1305
        %v1307 = vpop.f32.mrf.mxu0
        %1308 = vmatprep.mubr.bf16.mxu0 0
        %1309 = vmatmul.mubr.bf16.gmra.mxu0 %v1266
        %v1310 = vpop.f32.mrf.mxu0
        %v1311 = vadd.f32 0.0, %v1310
        %v1312 = vpop.f32.mrf.mxu0
        %v1313 = vpop.f32.mrf.mxu0
        %v1314 = vadd.f32 0.0, %v1313
        %v1315 = vpop.f32.mrf.mxu0
        %1316 = vdwg.mxu0
        %s1317 = scalar_lea.vmem [#allocation13], 16
        %v1318 = vld [vmem:[%s1317] sm:$0xf]
        %v1319 = vld [vmem:[%s1317 + $0x4] sm:$0xf]
        %v1320 = vld [vmem:[%s1317 + $0x8] sm:$0xf]
        %v1321 = vld [vmem:[%s1317 + $0xc] sm:$0xf]
        %v1326 = vunpack.c.l.b16 %v1318
        %v1327 = vunpack.c.l.b16 %v1319
        %v1328 = vunpack.c.l.b16 %v1320
        %v1329 = vunpack.c.l.b16 %v1321
        %v1330 = vpack.c.b16 %v1327, %v1326
        %v1331 = vpack.c.b16 %v1329, %v1328
        %v1333 = vsel %vm634, %v1330, 0
        %v1336 = vsel %vm634, %v1331, 0
        %1338 = vmatprep.subr.bf16.mxu0 0
        %1339 = vmatpush1.bf16.msra.mxu0 0
        %1340 = vmatprep.subr.bf16.mxu0 0
        %1341 = vmatpush1.bf16.msra.mxu0 0
        %1342 = vmatprep.subr.bf16.mxu0 0
        %1343 = vmatpush1.bf16.msra.mxu0 0
        %1344 = vmatprep.subr.bf16.mxu0 0
        %1345 = vmatpush1.bf16.msra.mxu0 0
        %1346 = vmatprep.subr.bf16.mxu0 0
        %1347 = vmatpush1.bf16.msra.mxu0 0
        %1348 = vmatprep.subr.bf16.mxu0 0
        %1349 = vmatpush1.bf16.msra.mxu0 0
        %1350 = vmatprep.subr.bf16.mxu0 0
        %1351 = vmatpush1.bf16.msra.mxu0 %v1241
        %1352 = vmatprep.subr.bf16.mxu0 0
        %1353 = vmatpush1.bf16.msra.mxu0 %v1240
        %1354 = vmatprep.subr.bf16.mxu0 0
        %1355 = vmatpush2.bf16.msra.mxu0 0
        %1356 = vmatprep.subr.bf16.mxu0 0
        %1357 = vmatpush2.bf16.msra.mxu0 0
        %1358 = vmatprep.subr.bf16.mxu0 0
        %1359 = vmatpush2.bf16.msra.mxu0 0
        %1360 = vmatprep.subr.bf16.mxu0 0
        %1361 = vmatpush2.bf16.msra.mxu0 0
        %1362 = vmatprep.subr.bf16.mxu0 0
        %1363 = vmatpush2.bf16.msra.mxu0 0
        %1364 = vmatprep.subr.bf16.mxu0 0
        %1365 = vmatpush2.bf16.msra.mxu0 0
        %1366 = vmatprep.subr.bf16.mxu0 0
        %1367 = vmatpush2.bf16.msra.mxu0 0
        %1368 = vmatprep.subr.bf16.mxu0 0
        %1369 = vmatpush2.bf16.msra.mxu0 0
        %1370 = vmatprep.mubr.bf16.mxu0 0
        %1371 = vmatmul.mubr.bf16.gmra.mxu0 %v1333
        %v1372 = vpop.f32.mrf.mxu0
        %v1373 = vadd.f32 0.0, %v1372
        %v1374 = vpop.f32.mrf.mxu0
        %v1375 = vpop.f32.mrf.mxu0
        %v1376 = vadd.f32 0.0, %v1375
        %v1377 = vpop.f32.mrf.mxu0
        %1378 = vmatprep.mubr.bf16.mxu0 0
        %1379 = vmatmul.mubr.bf16.gmra.mxu0 %v1336
        %v1380 = vpop.f32.mrf.mxu0
        %v1381 = vadd.f32 0.0, %v1380
        %v1382 = vpop.f32.mrf.mxu0
        %v1383 = vpop.f32.mrf.mxu0
        %v1384 = vadd.f32 0.0, %v1383
        %v1385 = vpop.f32.mrf.mxu0
        %1386 = vdwg.mxu0
        %s1387 = scalar_lea.vmem [#allocation13], 32
        %v1388 = vld [vmem:[%s1387] sm:$0xf]
        %v1389 = vld [vmem:[%s1387 + $0x4] sm:$0xf]
        %v1390 = vld [vmem:[%s1387 + $0x8] sm:$0xf]
        %v1391 = vld [vmem:[%s1387 + $0xc] sm:$0xf]
        %v1396 = vunpack.c.l.b16 %v1388
        %v1397 = vunpack.c.l.b16 %v1389
        %v1398 = vunpack.c.l.b16 %v1390
        %v1399 = vunpack.c.l.b16 %v1391
        %v1400 = vpack.c.b16 %v1397, %v1396
        %v1401 = vpack.c.b16 %v1399, %v1398
        %v1403 = vsel %vm634, %v1400, 0
        %v1406 = vsel %vm634, %v1401, 0
        %1408 = vmatprep.subr.bf16.mxu0 0
        %1409 = vmatpush1.bf16.msra.mxu0 0
        %1410 = vmatprep.subr.bf16.mxu0 0
        %1411 = vmatpush1.bf16.msra.mxu0 0
        %1412 = vmatprep.subr.bf16.mxu0 0
        %1413 = vmatpush1.bf16.msra.mxu0 0
        %1414 = vmatprep.subr.bf16.mxu0 0
        %1415 = vmatpush1.bf16.msra.mxu0 0
        %1416 = vmatprep.subr.bf16.mxu0 0
        %1417 = vmatpush1.bf16.msra.mxu0 0
        %1418 = vmatprep.subr.bf16.mxu0 0
        %1419 = vmatpush1.bf16.msra.mxu0 0
        %1420 = vmatprep.subr.bf16.mxu0 0
        %1421 = vmatpush1.bf16.msra.mxu0 %v1247
        %1422 = vmatprep.subr.bf16.mxu0 0
        %1423 = vmatpush1.bf16.msra.mxu0 %v1246
        %1424 = vmatprep.subr.bf16.mxu0 0
        %1425 = vmatpush2.bf16.msra.mxu0 0
        %1426 = vmatprep.subr.bf16.mxu0 0
        %1427 = vmatpush2.bf16.msra.mxu0 0
        %1428 = vmatprep.subr.bf16.mxu0 0
        %1429 = vmatpush2.bf16.msra.mxu0 0
        %1430 = vmatprep.subr.bf16.mxu0 0
        %1431 = vmatpush2.bf16.msra.mxu0 0
        %1432 = vmatprep.subr.bf16.mxu0 0
        %1433 = vmatpush2.bf16.msra.mxu0 0
        %1434 = vmatprep.subr.bf16.mxu0 0
        %1435 = vmatpush2.bf16.msra.mxu0 0
        %1436 = vmatprep.subr.bf16.mxu0 0
        %1437 = vmatpush2.bf16.msra.mxu0 0
        %1438 = vmatprep.subr.bf16.mxu0 0
        %1439 = vmatpush2.bf16.msra.mxu0 0
        %1440 = vmatprep.mubr.bf16.mxu0 0
        %1441 = vmatmul.mubr.bf16.gmra.mxu0 %v1403
        %v1442 = vpop.f32.mrf.mxu0
        %v1443 = vadd.f32 0.0, %v1442
        %v1444 = vpop.f32.mrf.mxu0
        %v1445 = vpop.f32.mrf.mxu0
        %v1446 = vadd.f32 0.0, %v1445
        %v1447 = vpop.f32.mrf.mxu0
        %1448 = vmatprep.mubr.bf16.mxu0 0
        %1449 = vmatmul.mubr.bf16.gmra.mxu0 %v1406
        %v1450 = vpop.f32.mrf.mxu0
        %v1451 = vadd.f32 0.0, %v1450
        %v1452 = vpop.f32.mrf.mxu0
        %v1453 = vpop.f32.mrf.mxu0
        %v1454 = vadd.f32 0.0, %v1453
        %v1455 = vpop.f32.mrf.mxu0
        %1456 = vdwg.mxu0
        %v1457 = vsub.f32 %v1303, %v1373
        %v1458 = vsub.f32 %v1306, %v1376
        %v1459 = vsub.f32 %v1311, %v1381
        %v1460 = vsub.f32 %v1314, %v1384
        %v1461 = vsub.f32 %v1443, %v1303
        %v1462 = vsub.f32 %v1446, %v1306
        %v1463 = vsub.f32 %v1451, %v1311
        %v1464 = vsub.f32 %v1454, %v1314
        %v1465 = vsub.f32 %v1461, %v1373
        %v1466 = vsub.f32 %v1462, %v1376
        %v1467 = vsub.f32 %v1463, %v1381
        %v1468 = vsub.f32 %v1464, %v1384
        %v1469 = vpack.c.bf16 %v1458, %v1457
        %v1470 = vpack.c.bf16 %v1460, %v1459
        %v1471 = vpack.c.bf16 %v1466, %v1465
        %v1472 = vpack.c.bf16 %v1468, %v1467
        %v1473 = vadd.f32 %v1457, %v1465
        %v1474 = vadd.f32 %v1458, %v1466
        %v1475 = vadd.f32 %v1459, %v1467
        %v1476 = vadd.f32 %v1460, %v1468
        %v1477 = vpack.c.bf16 %v1474, %v1473
        %v1478 = vpack.c.bf16 %v1476, %v1475
        %v1479 = vld [vmem:[#allocation14] sm:$0xf]
        %v1480 = vld [vmem:[#allocation14 + $0x4] sm:$0xf]
        %v1481 = vld [vmem:[#allocation14 + $0x8] sm:$0xf]
        %v1482 = vld [vmem:[#allocation14 + $0xc] sm:$0xf]
        %v1483 = vld [vmem:[#allocation14 + $0x10] sm:$0xf]
        %v1484 = vld [vmem:[#allocation14 + $0x14] sm:$0xf]
        %v1485 = vld [vmem:[#allocation14 + $0x18] sm:$0xf]
        %v1486 = vld [vmem:[#allocation14 + $0x1c] sm:$0xf]
        %v1487 = vld [vmem:[#allocation14 + $0x20] sm:$0xf]
        %v1488 = vld [vmem:[#allocation14 + $0x24] sm:$0xf]
        %v1489 = vld [vmem:[#allocation14 + $0x28] sm:$0xf]
        %v1490 = vld [vmem:[#allocation14 + $0x2c] sm:$0xf]
        %v1491 = vld [vmem:[#allocation14 + $0x30] sm:$0xf]
        %v1492 = vld [vmem:[#allocation14 + $0x34] sm:$0xf]
        %v1493 = vld [vmem:[#allocation14 + $0x38] sm:$0xf]
        %v1494 = vld [vmem:[#allocation14 + $0x3c] sm:$0xf]
        %v1511 = vunpack.c.l.b16 %v1479
        %v1512 = vunpack.c.l.b16 %v1480
        %v1513 = vunpack.c.l.b16 %v1481
        %v1514 = vunpack.c.l.b16 %v1482
        %v1515 = vunpack.c.l.b16 %v1483
        %v1516 = vunpack.c.l.b16 %v1484
        %v1517 = vunpack.c.l.b16 %v1485
        %v1518 = vunpack.c.l.b16 %v1486
        %v1519 = vunpack.c.l.b16 %v1487
        %v1520 = vunpack.c.l.b16 %v1488
        %v1521 = vunpack.c.l.b16 %v1489
        %v1522 = vunpack.c.l.b16 %v1490
        %v1523 = vunpack.c.l.b16 %v1491
        %v1524 = vunpack.c.l.b16 %v1492
        %v1525 = vunpack.c.l.b16 %v1493
        %v1526 = vunpack.c.l.b16 %v1494
        %v1527 = vpack.c.b16 %v1512, %v1511
        %v1528 = vpack.c.b16 %v1514, %v1513
        %v1529 = vpack.c.b16 %v1516, %v1515
        %v1530 = vpack.c.b16 %v1518, %v1517
        %v1531 = vpack.c.b16 %v1520, %v1519
        %v1532 = vpack.c.b16 %v1522, %v1521
        %v1533 = vpack.c.b16 %v1524, %v1523
        %v1534 = vpack.c.b16 %v1526, %v1525
        %1543 = vmatprep.subr.bf16.mxu0 0
        %1544 = vmatpush1.bf16.msra.mxu0 %v1534
        %1545 = vmatprep.subr.bf16.mxu0 0
        %1546 = vmatpush1.bf16.msra.mxu0 %v1533
        %1547 = vmatprep.subr.bf16.mxu0 0
        %1548 = vmatpush1.bf16.msra.mxu0 %v1532
        %1549 = vmatprep.subr.bf16.mxu0 0
        %1550 = vmatpush1.bf16.msra.mxu0 %v1531
        %1551 = vmatprep.subr.bf16.mxu0 0
        %1552 = vmatpush1.bf16.msra.mxu0 %v1530
        %1553 = vmatprep.subr.bf16.mxu0 0
        %1554 = vmatpush1.bf16.msra.mxu0 %v1529
        %1555 = vmatprep.subr.bf16.mxu0 0
        %1556 = vmatpush1.bf16.msra.mxu0 %v1528
        %1557 = vmatprep.subr.bf16.mxu0 0
        %1558 = vmatpush1.bf16.msra.mxu0 %v1527
        %1559 = vmatprep.subr.bf16.mxu0 0
        %1560 = vmatpush2.bf16.msra.mxu0 0
        %1561 = vmatprep.subr.bf16.mxu0 0
        %1562 = vmatpush2.bf16.msra.mxu0 0
        %1563 = vmatprep.subr.bf16.mxu0 0
        %1564 = vmatpush2.bf16.msra.mxu0 0
        %1565 = vmatprep.subr.bf16.mxu0 0
        %1566 = vmatpush2.bf16.msra.mxu0 0
        %1567 = vmatprep.subr.bf16.mxu0 0
        %1568 = vmatpush2.bf16.msra.mxu0 0
        %1569 = vmatprep.subr.bf16.mxu0 0
        %1570 = vmatpush2.bf16.msra.mxu0 0
        %1571 = vmatprep.subr.bf16.mxu0 0
        %1572 = vmatpush2.bf16.msra.mxu0 0
        %1573 = vmatprep.subr.bf16.mxu0 0
        %1574 = vmatpush2.bf16.msra.mxu0 0
        %1575 = vmatprep.mubr.bf16.mxu0 0
        %1576 = vmatmul.mubr.bf16.gmra.mxu0 %v1469
        %v1577 = vpop.f32.mrf.mxu0
        %v1578 = vadd.f32 0.0, %v1577
        %v1579 = vpop.f32.mrf.mxu0
        %v1580 = vpop.f32.mrf.mxu0
        %v1581 = vadd.f32 0.0, %v1580
        %v1582 = vpop.f32.mrf.mxu0
        %1583 = vmatprep.mubr.bf16.mxu0 0
        %1584 = vmatmul.mubr.bf16.gmra.mxu0 %v1470
        %v1585 = vpop.f32.mrf.mxu0
        %v1586 = vadd.f32 0.0, %v1585
        %v1587 = vpop.f32.mrf.mxu0
        %v1588 = vpop.f32.mrf.mxu0
        %v1589 = vadd.f32 0.0, %v1588
        %v1590 = vpop.f32.mrf.mxu0
        %1591 = vdwg.mxu0
        %s1592 = scalar_lea.vmem [#allocation14], 64
        %v1593 = vld [vmem:[%s1592] sm:$0xf]
        %v1594 = vld [vmem:[%s1592 + $0x4] sm:$0xf]
        %v1595 = vld [vmem:[%s1592 + $0x8] sm:$0xf]
        %v1596 = vld [vmem:[%s1592 + $0xc] sm:$0xf]
        %v1597 = vld [vmem:[%s1592 + $0x10] sm:$0xf]
        %v1598 = vld [vmem:[%s1592 + $0x14] sm:$0xf]
        %v1599 = vld [vmem:[%s1592 + $0x18] sm:$0xf]
        %v1600 = vld [vmem:[%s1592 + $0x1c] sm:$0xf]
        %v1601 = vld [vmem:[%s1592 + $0x20] sm:$0xf]
        %v1602 = vld [vmem:[%s1592 + $0x24] sm:$0xf]
        %v1603 = vld [vmem:[%s1592 + $0x28] sm:$0xf]
        %v1604 = vld [vmem:[%s1592 + $0x2c] sm:$0xf]
        %v1605 = vld [vmem:[%s1592 + $0x30] sm:$0xf]
        %v1606 = vld [vmem:[%s1592 + $0x34] sm:$0xf]
        %v1607 = vld [vmem:[%s1592 + $0x38] sm:$0xf]
        %v1608 = vld [vmem:[%s1592 + $0x3c] sm:$0xf]
        %v1625 = vunpack.c.l.b16 %v1593
        %v1626 = vunpack.c.l.b16 %v1594
        %v1627 = vunpack.c.l.b16 %v1595
        %v1628 = vunpack.c.l.b16 %v1596
        %v1629 = vunpack.c.l.b16 %v1597
        %v1630 = vunpack.c.l.b16 %v1598
        %v1631 = vunpack.c.l.b16 %v1599
        %v1632 = vunpack.c.l.b16 %v1600
        %v1633 = vunpack.c.l.b16 %v1601
        %v1634 = vunpack.c.l.b16 %v1602
        %v1635 = vunpack.c.l.b16 %v1603
        %v1636 = vunpack.c.l.b16 %v1604
        %v1637 = vunpack.c.l.b16 %v1605
        %v1638 = vunpack.c.l.b16 %v1606
        %v1639 = vunpack.c.l.b16 %v1607
        %v1640 = vunpack.c.l.b16 %v1608
        %v1641 = vpack.c.b16 %v1626, %v1625
        %v1642 = vpack.c.b16 %v1628, %v1627
        %v1643 = vpack.c.b16 %v1630, %v1629
        %v1644 = vpack.c.b16 %v1632, %v1631
        %v1645 = vpack.c.b16 %v1634, %v1633
        %v1646 = vpack.c.b16 %v1636, %v1635
        %v1647 = vpack.c.b16 %v1638, %v1637
        %v1648 = vpack.c.b16 %v1640, %v1639
        %1657 = vmatprep.subr.bf16.mxu0 0
        %1658 = vmatpush1.bf16.msra.mxu0 %v1648
        %1659 = vmatprep.subr.bf16.mxu0 0
        %1660 = vmatpush1.bf16.msra.mxu0 %v1647
        %1661 = vmatprep.subr.bf16.mxu0 0
        %1662 = vmatpush1.bf16.msra.mxu0 %v1646
        %1663 = vmatprep.subr.bf16.mxu0 0
        %1664 = vmatpush1.bf16.msra.mxu0 %v1645
        %1665 = vmatprep.subr.bf16.mxu0 0
        %1666 = vmatpush1.bf16.msra.mxu0 %v1644
        %1667 = vmatprep.subr.bf16.mxu0 0
        %1668 = vmatpush1.bf16.msra.mxu0 %v1643
        %1669 = vmatprep.subr.bf16.mxu0 0
        %1670 = vmatpush1.bf16.msra.mxu0 %v1642
        %1671 = vmatprep.subr.bf16.mxu0 0
        %1672 = vmatpush1.bf16.msra.mxu0 %v1641
        %1673 = vmatprep.subr.bf16.mxu0 0
        %1674 = vmatpush2.bf16.msra.mxu0 0
        %1675 = vmatprep.subr.bf16.mxu0 0
        %1676 = vmatpush2.bf16.msra.mxu0 0
        %1677 = vmatprep.subr.bf16.mxu0 0
        %1678 = vmatpush2.bf16.msra.mxu0 0
        %1679 = vmatprep.subr.bf16.mxu0 0
        %1680 = vmatpush2.bf16.msra.mxu0 0
        %1681 = vmatprep.subr.bf16.mxu0 0
        %1682 = vmatpush2.bf16.msra.mxu0 0
        %1683 = vmatprep.subr.bf16.mxu0 0
        %1684 = vmatpush2.bf16.msra.mxu0 0
        %1685 = vmatprep.subr.bf16.mxu0 0
        %1686 = vmatpush2.bf16.msra.mxu0 0
        %1687 = vmatprep.subr.bf16.mxu0 0
        %1688 = vmatpush2.bf16.msra.mxu0 0
        %1689 = vmatprep.mubr.bf16.mxu0 0
        %1690 = vmatmul.mubr.bf16.gmra.mxu0 %v1471
        %v1691 = vpop.f32.mrf.mxu0
        %v1692 = vadd.f32 0.0, %v1691
        %v1693 = vpop.f32.mrf.mxu0
        %v1694 = vpop.f32.mrf.mxu0
        %v1695 = vadd.f32 0.0, %v1694
        %v1696 = vpop.f32.mrf.mxu0
        %1697 = vmatprep.mubr.bf16.mxu0 0
        %1698 = vmatmul.mubr.bf16.gmra.mxu0 %v1472
        %v1699 = vpop.f32.mrf.mxu0
        %v1700 = vadd.f32 0.0, %v1699
        %v1701 = vpop.f32.mrf.mxu0
        %v1702 = vpop.f32.mrf.mxu0
        %v1703 = vadd.f32 0.0, %v1702
        %v1704 = vpop.f32.mrf.mxu0
        %1705 = vdwg.mxu0
        %s1706 = scalar_lea.vmem [#allocation14], 128
        %v1707 = vld [vmem:[%s1706] sm:$0xf]
        %v1708 = vld [vmem:[%s1706 + $0x4] sm:$0xf]
        %v1709 = vld [vmem:[%s1706 + $0x8] sm:$0xf]
        %v1710 = vld [vmem:[%s1706 + $0xc] sm:$0xf]
        %v1711 = vld [vmem:[%s1706 + $0x10] sm:$0xf]
        %v1712 = vld [vmem:[%s1706 + $0x14] sm:$0xf]
        %v1713 = vld [vmem:[%s1706 + $0x18] sm:$0xf]
        %v1714 = vld [vmem:[%s1706 + $0x1c] sm:$0xf]
        %v1715 = vld [vmem:[%s1706 + $0x20] sm:$0xf]
        %v1716 = vld [vmem:[%s1706 + $0x24] sm:$0xf]
        %v1717 = vld [vmem:[%s1706 + $0x28] sm:$0xf]
        %v1718 = vld [vmem:[%s1706 + $0x2c] sm:$0xf]
        %v1719 = vld [vmem:[%s1706 + $0x30] sm:$0xf]
        %v1720 = vld [vmem:[%s1706 + $0x34] sm:$0xf]
        %v1721 = vld [vmem:[%s1706 + $0x38] sm:$0xf]
        %v1722 = vld [vmem:[%s1706 + $0x3c] sm:$0xf]
        %v1739 = vunpack.c.l.b16 %v1707
        %v1740 = vunpack.c.l.b16 %v1708
        %v1741 = vunpack.c.l.b16 %v1709
        %v1742 = vunpack.c.l.b16 %v1710
        %v1743 = vunpack.c.l.b16 %v1711
        %v1744 = vunpack.c.l.b16 %v1712
        %v1745 = vunpack.c.l.b16 %v1713
        %v1746 = vunpack.c.l.b16 %v1714
        %v1747 = vunpack.c.l.b16 %v1715
        %v1748 = vunpack.c.l.b16 %v1716
        %v1749 = vunpack.c.l.b16 %v1717
        %v1750 = vunpack.c.l.b16 %v1718
        %v1751 = vunpack.c.l.b16 %v1719
        %v1752 = vunpack.c.l.b16 %v1720
        %v1753 = vunpack.c.l.b16 %v1721
        %v1754 = vunpack.c.l.b16 %v1722
        %v1755 = vpack.c.b16 %v1740, %v1739
        %v1756 = vpack.c.b16 %v1742, %v1741
        %v1757 = vpack.c.b16 %v1744, %v1743
        %v1758 = vpack.c.b16 %v1746, %v1745
        %v1759 = vpack.c.b16 %v1748, %v1747
        %v1760 = vpack.c.b16 %v1750, %v1749
        %v1761 = vpack.c.b16 %v1752, %v1751
        %v1762 = vpack.c.b16 %v1754, %v1753
        %1771 = vmatprep.subr.bf16.mxu0 0
        %1772 = vmatpush1.bf16.msra.mxu0 %v1762
        %1773 = vmatprep.subr.bf16.mxu0 0
        %1774 = vmatpush1.bf16.msra.mxu0 %v1761
        %1775 = vmatprep.subr.bf16.mxu0 0
        %1776 = vmatpush1.bf16.msra.mxu0 %v1760
        %1777 = vmatprep.subr.bf16.mxu0 0
        %1778 = vmatpush1.bf16.msra.mxu0 %v1759
        %1779 = vmatprep.subr.bf16.mxu0 0
        %1780 = vmatpush1.bf16.msra.mxu0 %v1758
        %1781 = vmatprep.subr.bf16.mxu0 0
        %1782 = vmatpush1.bf16.msra.mxu0 %v1757
        %1783 = vmatprep.subr.bf16.mxu0 0
        %1784 = vmatpush1.bf16.msra.mxu0 %v1756
        %1785 = vmatprep.subr.bf16.mxu0 0
        %1786 = vmatpush1.bf16.msra.mxu0 %v1755
        %1787 = vmatprep.subr.bf16.mxu0 0
        %1788 = vmatpush2.bf16.msra.mxu0 0
        %1789 = vmatprep.subr.bf16.mxu0 0
        %1790 = vmatpush2.bf16.msra.mxu0 0
        %1791 = vmatprep.subr.bf16.mxu0 0
        %1792 = vmatpush2.bf16.msra.mxu0 0
        %1793 = vmatprep.subr.bf16.mxu0 0
        %1794 = vmatpush2.bf16.msra.mxu0 0
        %1795 = vmatprep.subr.bf16.mxu0 0
        %1796 = vmatpush2.bf16.msra.mxu0 0
        %1797 = vmatprep.subr.bf16.mxu0 0
        %1798 = vmatpush2.bf16.msra.mxu0 0
        %1799 = vmatprep.subr.bf16.mxu0 0
        %1800 = vmatpush2.bf16.msra.mxu0 0
        %1801 = vmatprep.subr.bf16.mxu0 0
        %1802 = vmatpush2.bf16.msra.mxu0 0
        %1803 = vmatprep.mubr.bf16.mxu0 0
        %1804 = vmatmul.mubr.bf16.gmra.mxu0 %v1477
        %v1805 = vpop.f32.mrf.mxu0
        %v1806 = vadd.f32 0.0, %v1805
        %v1807 = vpop.f32.mrf.mxu0
        %v1808 = vpop.f32.mrf.mxu0
        %v1809 = vadd.f32 0.0, %v1808
        %v1810 = vpop.f32.mrf.mxu0
        %1811 = vmatprep.mubr.bf16.mxu0 0
        %1812 = vmatmul.mubr.bf16.gmra.mxu0 %v1478
        %v1813 = vpop.f32.mrf.mxu0
        %v1814 = vadd.f32 0.0, %v1813
        %v1815 = vpop.f32.mrf.mxu0
        %v1816 = vpop.f32.mrf.mxu0
        %v1817 = vadd.f32 0.0, %v1816
        %v1818 = vpop.f32.mrf.mxu0
        %1819 = vdwg.mxu0
        %v1820 = vsub.f32 %v1578, %v1692
        %v1821 = vsub.f32 %v1581, %v1695
        %v1822 = vsub.f32 %v1586, %v1700
        %v1823 = vsub.f32 %v1589, %v1703
        %v1824 = vsub.f32 %v1806, %v1578
        %v1825 = vsub.f32 %v1809, %v1581
        %v1826 = vsub.f32 %v1814, %v1586
        %v1827 = vsub.f32 %v1817, %v1589
        %v1828 = vsub.f32 %v1824, %v1692
        %v1829 = vsub.f32 %v1825, %v1695
        %v1830 = vsub.f32 %v1826, %v1700
        %v1831 = vsub.f32 %v1827, %v1703
        %v1832 = vld [vmem:[%s515] sm:$0xff]
        %v1833 = vld [vmem:[%s515 + $0x8] sm:$0xff]
        %v1834 = vld [vmem:[%s515 + $0x10] sm:$0xff]
        %v1835 = vld [vmem:[%s515 + $0x18] sm:$0xff]
        %s1836 = scalar_lea.vmem %s515, 32 [#allocation7]
        %v1837 = vld [vmem:[%s1836] sm:$0xff]
        %v1838 = vld [vmem:[%s1836 + $0x8] sm:$0xff]
        %v1839 = vld [vmem:[%s1836 + $0x10] sm:$0xff]
        %v1840 = vld [vmem:[%s1836 + $0x18] sm:$0xff]
        %v1841 = vmul.f32 %v1820, %v1832
        %v1842 = vmul.f32 %v1821, %v1833
        %v1843 = vmul.f32 %v1822, %v1834
        %v1844 = vmul.f32 %v1823, %v1835
        %v1845 = vmul.f32 %v1828, %v1837
        %v1846 = vmul.f32 %v1829, %v1838
        %v1847 = vmul.f32 %v1830, %v1839
        %v1848 = vmul.f32 %v1831, %v1840
        %v1849 = vsub.f32 %v1841, %v1845
        %v1850 = vsub.f32 %v1842, %v1846
        %v1851 = vsub.f32 %v1843, %v1847
        %v1852 = vsub.f32 %v1844, %v1848
        %v1853 = vmul.f32 %v1820, %v1837
        %v1854 = vmul.f32 %v1821, %v1838
        %v1855 = vmul.f32 %v1822, %v1839
        %v1856 = vmul.f32 %v1823, %v1840
        %v1857 = vmul.f32 %v1828, %v1832
        %v1858 = vmul.f32 %v1829, %v1833
        %v1859 = vmul.f32 %v1830, %v1834
        %v1860 = vmul.f32 %v1831, %v1835
        %v1861 = vadd.f32 %v1853, %v1857
        %v1862 = vadd.f32 %v1854, %v1858
        %v1863 = vadd.f32 %v1855, %v1859
        %v1864 = vadd.f32 %v1856, %v1860
        %v1865 = vpack.c.bf16 %v1850, %v1849
        %v1866 = vpack.c.bf16 %v1852, %v1851
        %v1867 = vpack.c.bf16 %v1862, %v1861
        %v1868 = vpack.c.bf16 %v1864, %v1863
        %v1869 = vadd.f32 %v1849, %v1861
        %v1870 = vadd.f32 %v1850, %v1862
        %v1871 = vadd.f32 %v1851, %v1863
        %v1872 = vadd.f32 %v1852, %v1864
        %v1873 = vpack.c.bf16 %v1870, %v1869
        %v1874 = vpack.c.bf16 %v1872, %v1871
        %v1875 = vld [vmem:[#allocation16] sm:$0xf]
        %v1876 = vld [vmem:[#allocation16 + $0x4] sm:$0xf]
        %v1879 = vunpack.c.l.b16 %v1875
        %v1880 = vunpack.c.l.b16 %v1876
        %v1881 = vpack.c.b16 %v1880, %v1879
        %v1883 = vsel %vm634, %v1881, 0
        %1885 = vmatprep.subr.bf16.mxu0 0
        %1886 = vmatpush1.bf16.msra.mxu0 0
        %1887 = vmatprep.subr.bf16.mxu0 0
        %1888 = vmatpush1.bf16.msra.mxu0 0
        %1889 = vmatprep.subr.bf16.mxu0 0
        %1890 = vmatpush1.bf16.msra.mxu0 0
        %1891 = vmatprep.subr.bf16.mxu0 0
        %1892 = vmatpush1.bf16.msra.mxu0 0
        %1893 = vmatprep.subr.bf16.mxu0 0
        %1894 = vmatpush1.bf16.msra.mxu0 0
        %1895 = vmatprep.subr.bf16.mxu0 0
        %1896 = vmatpush1.bf16.msra.mxu0 0
        %1897 = vmatprep.subr.bf16.mxu0 0
        %1898 = vmatpush1.bf16.msra.mxu0 %v1866
        %1899 = vmatprep.subr.bf16.mxu0 0
        %1900 = vmatpush1.bf16.msra.mxu0 %v1865
        %1901 = vmatprep.subr.bf16.mxu0 0
        %1902 = vmatpush2.bf16.msra.mxu0 0
        %1903 = vmatprep.subr.bf16.mxu0 0
        %1904 = vmatpush2.bf16.msra.mxu0 0
        %1905 = vmatprep.subr.bf16.mxu0 0
        %1906 = vmatpush2.bf16.msra.mxu0 0
        %1907 = vmatprep.subr.bf16.mxu0 0
        %1908 = vmatpush2.bf16.msra.mxu0 0
        %1909 = vmatprep.subr.bf16.mxu0 0
        %1910 = vmatpush2.bf16.msra.mxu0 0
        %1911 = vmatprep.subr.bf16.mxu0 0
        %1912 = vmatpush2.bf16.msra.mxu0 0
        %1913 = vmatprep.subr.bf16.mxu0 0
        %1914 = vmatpush2.bf16.msra.mxu0 0
        %1915 = vmatprep.subr.bf16.mxu0 0
        %1916 = vmatpush2.bf16.msra.mxu0 0
        %1917 = vmatprep.mubr.bf16.mxu0 0
        %1918 = vmatmul.mubr.bf16.gmra.mxu0 %v1883
        %v1919 = vpop.f32.mrf.mxu0
        %v1920 = vadd.f32 0.0, %v1919
        %v1921 = vpop.f32.mrf.mxu0
        %v1922 = vpop.f32.mrf.mxu0
        %v1923 = vadd.f32 0.0, %v1922
        %v1924 = vpop.f32.mrf.mxu0
        %1925 = vdwg.mxu0
        %s1926 = scalar_lea.vmem [#allocation16], 8
        %v1927 = vld [vmem:[%s1926] sm:$0xf]
        %v1928 = vld [vmem:[%s1926 + $0x4] sm:$0xf]
        %v1931 = vunpack.c.l.b16 %v1927
        %v1932 = vunpack.c.l.b16 %v1928
        %v1933 = vpack.c.b16 %v1932, %v1931
        %v1935 = vsel %vm634, %v1933, 0
        %1937 = vmatprep.subr.bf16.mxu0 0
        %1938 = vmatpush1.bf16.msra.mxu0 0
        %1939 = vmatprep.subr.bf16.mxu0 0
        %1940 = vmatpush1.bf16.msra.mxu0 0
        %1941 = vmatprep.subr.bf16.mxu0 0
        %1942 = vmatpush1.bf16.msra.mxu0 0
        %1943 = vmatprep.subr.bf16.mxu0 0
        %1944 = vmatpush1.bf16.msra.mxu0 0
        %1945 = vmatprep.subr.bf16.mxu0 0
        %1946 = vmatpush1.bf16.msra.mxu0 0
        %1947 = vmatprep.subr.bf16.mxu0 0
        %1948 = vmatpush1.bf16.msra.mxu0 0
        %1949 = vmatprep.subr.bf16.mxu0 0
        %1950 = vmatpush1.bf16.msra.mxu0 %v1868
        %1951 = vmatprep.subr.bf16.mxu0 0
        %1952 = vmatpush1.bf16.msra.mxu0 %v1867
        %1953 = vmatprep.subr.bf16.mxu0 0
        %1954 = vmatpush2.bf16.msra.mxu0 0
        %1955 = vmatprep.subr.bf16.mxu0 0
        %1956 = vmatpush2.bf16.msra.mxu0 0
        %1957 = vmatprep.subr.bf16.mxu0 0
        %1958 = vmatpush2.bf16.msra.mxu0 0
        %1959 = vmatprep.subr.bf16.mxu0 0
        %1960 = vmatpush2.bf16.msra.mxu0 0
        %1961 = vmatprep.subr.bf16.mxu0 0
        %1962 = vmatpush2.bf16.msra.mxu0 0
        %1963 = vmatprep.subr.bf16.mxu0 0
        %1964 = vmatpush2.bf16.msra.mxu0 0
        %1965 = vmatprep.subr.bf16.mxu0 0
        %1966 = vmatpush2.bf16.msra.mxu0 0
        %1967 = vmatprep.subr.bf16.mxu0 0
        %1968 = vmatpush2.bf16.msra.mxu0 0
        %1969 = vmatprep.mubr.bf16.mxu0 0
        %1970 = vmatmul.mubr.bf16.gmra.mxu0 %v1935
        %v1971 = vpop.f32.mrf.mxu0
        %v1972 = vadd.f32 0.0, %v1971
        %v1973 = vpop.f32.mrf.mxu0
        %v1974 = vpop.f32.mrf.mxu0
        %v1975 = vadd.f32 0.0, %v1974
        %v1976 = vpop.f32.mrf.mxu0
        %1977 = vdwg.mxu0
        %s1978 = scalar_lea.vmem [#allocation16], 16
        %v1979 = vld [vmem:[%s1978] sm:$0xf]
        %v1980 = vld [vmem:[%s1978 + $0x4] sm:$0xf]
        %v1983 = vunpack.c.l.b16 %v1979
        %v1984 = vunpack.c.l.b16 %v1980
        %v1985 = vpack.c.b16 %v1984, %v1983
        %v1987 = vsel %vm634, %v1985, 0
        %1989 = vmatprep.subr.bf16.mxu0 0
        %1990 = vmatpush1.bf16.msra.mxu0 0
        %1991 = vmatprep.subr.bf16.mxu0 0
        %1992 = vmatpush1.bf16.msra.mxu0 0
        %1993 = vmatprep.subr.bf16.mxu0 0
        %1994 = vmatpush1.bf16.msra.mxu0 0
        %1995 = vmatprep.subr.bf16.mxu0 0
        %1996 = vmatpush1.bf16.msra.mxu0 0
        %1997 = vmatprep.subr.bf16.mxu0 0
        %1998 = vmatpush1.bf16.msra.mxu0 0
        %1999 = vmatprep.subr.bf16.mxu0 0
        %2000 = vmatpush1.bf16.msra.mxu0 0
        %2001 = vmatprep.subr.bf16.mxu0 0
        %2002 = vmatpush1.bf16.msra.mxu0 %v1874
        %2003 = vmatprep.subr.bf16.mxu0 0
        %2004 = vmatpush1.bf16.msra.mxu0 %v1873
        %2005 = vmatprep.subr.bf16.mxu0 0
        %2006 = vmatpush2.bf16.msra.mxu0 0
        %2007 = vmatprep.subr.bf16.mxu0 0
        %2008 = vmatpush2.bf16.msra.mxu0 0
        %2009 = vmatprep.subr.bf16.mxu0 0
        %2010 = vmatpush2.bf16.msra.mxu0 0
        %2011 = vmatprep.subr.bf16.mxu0 0
        %2012 = vmatpush2.bf16.msra.mxu0 0
        %2013 = vmatprep.subr.bf16.mxu0 0
        %2014 = vmatpush2.bf16.msra.mxu0 0
        %2015 = vmatprep.subr.bf16.mxu0 0
        %2016 = vmatpush2.bf16.msra.mxu0 0
        %2017 = vmatprep.subr.bf16.mxu0 0
        %2018 = vmatpush2.bf16.msra.mxu0 0
        %2019 = vmatprep.subr.bf16.mxu0 0
        %2020 = vmatpush2.bf16.msra.mxu0 0
        %2021 = vmatprep.mubr.bf16.mxu0 0
        %2022 = vmatmul.mubr.bf16.gmra.mxu0 %v1987
        %v2023 = vpop.f32.mrf.mxu0
        %v2024 = vadd.f32 0.0, %v2023
        %v2025 = vpop.f32.mrf.mxu0
        %v2026 = vpop.f32.mrf.mxu0
        %v2027 = vadd.f32 0.0, %v2026
        %v2028 = vpop.f32.mrf.mxu0
        %2029 = vdwg.mxu0
        %v2030 = vsub.f32 %v1920, %v1972
        %v2031 = vsub.f32 %v1923, %v1975
        %v2032 = vsub.f32 %v2024, %v1920
        %v2033 = vsub.f32 %v2027, %v1923
        %v2034 = vsub.f32 %v2032, %v1972
        %v2035 = vsub.f32 %v2033, %v1975
        %v2036 = vpack.c.bf16 %v2031, %v2030
        %v2037 = vpack.c.bf16 %v2035, %v2034
        %v2038 = vadd.f32 %v2030, %v2034
        %v2039 = vadd.f32 %v2031, %v2035
        %v2040 = vpack.c.bf16 %v2039, %v2038
        %v2041 = vld [vmem:[#allocation17] sm:$0xf]
        %v2042 = vld [vmem:[#allocation17 + $0x4] sm:$0xf]
        %v2043 = vld [vmem:[#allocation17 + $0x8] sm:$0xf]
        %v2044 = vld [vmem:[#allocation17 + $0xc] sm:$0xf]
        %v2045 = vld [vmem:[#allocation17 + $0x10] sm:$0xf]
        %v2046 = vld [vmem:[#allocation17 + $0x14] sm:$0xf]
        %v2047 = vld [vmem:[#allocation17 + $0x18] sm:$0xf]
        %v2048 = vld [vmem:[#allocation17 + $0x1c] sm:$0xf]
        %v2049 = vld [vmem:[#allocation17 + $0x20] sm:$0xf]
        %v2050 = vld [vmem:[#allocation17 + $0x24] sm:$0xf]
        %v2051 = vld [vmem:[#allocation17 + $0x28] sm:$0xf]
        %v2052 = vld [vmem:[#allocation17 + $0x2c] sm:$0xf]
        %v2053 = vld [vmem:[#allocation17 + $0x30] sm:$0xf]
        %v2054 = vld [vmem:[#allocation17 + $0x34] sm:$0xf]
        %v2055 = vld [vmem:[#allocation17 + $0x38] sm:$0xf]
        %v2056 = vld [vmem:[#allocation17 + $0x3c] sm:$0xf]
        %v2073 = vunpack.c.l.b16 %v2041
        %v2074 = vunpack.c.l.b16 %v2042
        %v2075 = vunpack.c.l.b16 %v2043
        %v2076 = vunpack.c.l.b16 %v2044
        %v2077 = vunpack.c.l.b16 %v2045
        %v2078 = vunpack.c.l.b16 %v2046
        %v2079 = vunpack.c.l.b16 %v2047
        %v2080 = vunpack.c.l.b16 %v2048
        %v2081 = vunpack.c.l.b16 %v2049
        %v2082 = vunpack.c.l.b16 %v2050
        %v2083 = vunpack.c.l.b16 %v2051
        %v2084 = vunpack.c.l.b16 %v2052
        %v2085 = vunpack.c.l.b16 %v2053
        %v2086 = vunpack.c.l.b16 %v2054
        %v2087 = vunpack.c.l.b16 %v2055
        %v2088 = vunpack.c.l.b16 %v2056
        %v2089 = vpack.c.b16 %v2074, %v2073
        %v2090 = vpack.c.b16 %v2076, %v2075
        %v2091 = vpack.c.b16 %v2078, %v2077
        %v2092 = vpack.c.b16 %v2080, %v2079
        %v2093 = vpack.c.b16 %v2082, %v2081
        %v2094 = vpack.c.b16 %v2084, %v2083
        %v2095 = vpack.c.b16 %v2086, %v2085
        %v2096 = vpack.c.b16 %v2088, %v2087
        %2105 = vmatprep.subr.bf16.mxu0 0
        %2106 = vmatpush1.bf16.msra.mxu0 %v2096
        %2107 = vmatprep.subr.bf16.mxu0 0
        %2108 = vmatpush1.bf16.msra.mxu0 %v2095
        %2109 = vmatprep.subr.bf16.mxu0 0
        %2110 = vmatpush1.bf16.msra.mxu0 %v2094
        %2111 = vmatprep.subr.bf16.mxu0 0
        %2112 = vmatpush1.bf16.msra.mxu0 %v2093
        %2113 = vmatprep.subr.bf16.mxu0 0
        %2114 = vmatpush1.bf16.msra.mxu0 %v2092
        %2115 = vmatprep.subr.bf16.mxu0 0
        %2116 = vmatpush1.bf16.msra.mxu0 %v2091
        %2117 = vmatprep.subr.bf16.mxu0 0
        %2118 = vmatpush1.bf16.msra.mxu0 %v2090
        %2119 = vmatprep.subr.bf16.mxu0 0
        %2120 = vmatpush1.bf16.msra.mxu0 %v2089
        %2121 = vmatprep.subr.bf16.mxu0 0
        %2122 = vmatpush2.bf16.msra.mxu0 0
        %2123 = vmatprep.subr.bf16.mxu0 0
        %2124 = vmatpush2.bf16.msra.mxu0 0
        %2125 = vmatprep.subr.bf16.mxu0 0
        %2126 = vmatpush2.bf16.msra.mxu0 0
        %2127 = vmatprep.subr.bf16.mxu0 0
        %2128 = vmatpush2.bf16.msra.mxu0 0
        %2129 = vmatprep.subr.bf16.mxu0 0
        %2130 = vmatpush2.bf16.msra.mxu0 0
        %2131 = vmatprep.subr.bf16.mxu0 0
        %2132 = vmatpush2.bf16.msra.mxu0 0
        %2133 = vmatprep.subr.bf16.mxu0 0
        %2134 = vmatpush2.bf16.msra.mxu0 0
        %2135 = vmatprep.subr.bf16.mxu0 0
        %2136 = vmatpush2.bf16.msra.mxu0 0
        %2137 = vmatprep.mubr.bf16.mxu0 0
        %2138 = vmatmul.mubr.bf16.gmra.mxu0 %v2036
        %v2139 = vpop.f32.mrf.mxu0
        %v2140 = vadd.f32 0.0, %v2139
        %v2141 = vpop.f32.mrf.mxu0
        %v2142 = vpop.f32.mrf.mxu0
        %v2143 = vadd.f32 0.0, %v2142
        %v2144 = vpop.f32.mrf.mxu0
        %2145 = vdwg.mxu0
        %s2146 = scalar_lea.vmem [#allocation17], 64
        %v2147 = vld [vmem:[%s2146] sm:$0xf]
        %v2148 = vld [vmem:[%s2146 + $0x4] sm:$0xf]
        %v2149 = vld [vmem:[%s2146 + $0x8] sm:$0xf]
        %v2150 = vld [vmem:[%s2146 + $0xc] sm:$0xf]
        %v2151 = vld [vmem:[%s2146 + $0x10] sm:$0xf]
        %v2152 = vld [vmem:[%s2146 + $0x14] sm:$0xf]
        %v2153 = vld [vmem:[%s2146 + $0x18] sm:$0xf]
        %v2154 = vld [vmem:[%s2146 + $0x1c] sm:$0xf]
        %v2155 = vld [vmem:[%s2146 + $0x20] sm:$0xf]
        %v2156 = vld [vmem:[%s2146 + $0x24] sm:$0xf]
        %v2157 = vld [vmem:[%s2146 + $0x28] sm:$0xf]
        %v2158 = vld [vmem:[%s2146 + $0x2c] sm:$0xf]
        %v2159 = vld [vmem:[%s2146 + $0x30] sm:$0xf]
        %v2160 = vld [vmem:[%s2146 + $0x34] sm:$0xf]
        %v2161 = vld [vmem:[%s2146 + $0x38] sm:$0xf]
        %v2162 = vld [vmem:[%s2146 + $0x3c] sm:$0xf]
        %v2179 = vunpack.c.l.b16 %v2147
        %v2180 = vunpack.c.l.b16 %v2148
        %v2181 = vunpack.c.l.b16 %v2149
        %v2182 = vunpack.c.l.b16 %v2150
        %v2183 = vunpack.c.l.b16 %v2151
        %v2184 = vunpack.c.l.b16 %v2152
        %v2185 = vunpack.c.l.b16 %v2153
        %v2186 = vunpack.c.l.b16 %v2154
        %v2187 = vunpack.c.l.b16 %v2155
        %v2188 = vunpack.c.l.b16 %v2156
        %v2189 = vunpack.c.l.b16 %v2157
        %v2190 = vunpack.c.l.b16 %v2158
        %v2191 = vunpack.c.l.b16 %v2159
        %v2192 = vunpack.c.l.b16 %v2160
        %v2193 = vunpack.c.l.b16 %v2161
        %v2194 = vunpack.c.l.b16 %v2162
        %v2195 = vpack.c.b16 %v2180, %v2179
        %v2196 = vpack.c.b16 %v2182, %v2181
        %v2197 = vpack.c.b16 %v2184, %v2183
        %v2198 = vpack.c.b16 %v2186, %v2185
        %v2199 = vpack.c.b16 %v2188, %v2187
        %v2200 = vpack.c.b16 %v2190, %v2189
        %v2201 = vpack.c.b16 %v2192, %v2191
        %v2202 = vpack.c.b16 %v2194, %v2193
        %2211 = vmatprep.subr.bf16.mxu0 0
        %2212 = vmatpush1.bf16.msra.mxu0 %v2202
        %2213 = vmatprep.subr.bf16.mxu0 0
        %2214 = vmatpush1.bf16.msra.mxu0 %v2201
        %2215 = vmatprep.subr.bf16.mxu0 0
        %2216 = vmatpush1.bf16.msra.mxu0 %v2200
        %2217 = vmatprep.subr.bf16.mxu0 0
        %2218 = vmatpush1.bf16.msra.mxu0 %v2199
        %2219 = vmatprep.subr.bf16.mxu0 0
        %2220 = vmatpush1.bf16.msra.mxu0 %v2198
        %2221 = vmatprep.subr.bf16.mxu0 0
        %2222 = vmatpush1.bf16.msra.mxu0 %v2197
        %2223 = vmatprep.subr.bf16.mxu0 0
        %2224 = vmatpush1.bf16.msra.mxu0 %v2196
        %2225 = vmatprep.subr.bf16.mxu0 0
        %2226 = vmatpush1.bf16.msra.mxu0 %v2195
        %2227 = vmatprep.subr.bf16.mxu0 0
        %2228 = vmatpush2.bf16.msra.mxu0 0
        %2229 = vmatprep.subr.bf16.mxu0 0
        %2230 = vmatpush2.bf16.msra.mxu0 0
        %2231 = vmatprep.subr.bf16.mxu0 0
        %2232 = vmatpush2.bf16.msra.mxu0 0
        %2233 = vmatprep.subr.bf16.mxu0 0
        %2234 = vmatpush2.bf16.msra.mxu0 0
        %2235 = vmatprep.subr.bf16.mxu0 0
        %2236 = vmatpush2.bf16.msra.mxu0 0
        %2237 = vmatprep.subr.bf16.mxu0 0
        %2238 = vmatpush2.bf16.msra.mxu0 0
        %2239 = vmatprep.subr.bf16.mxu0 0
        %2240 = vmatpush2.bf16.msra.mxu0 0
        %2241 = vmatprep.subr.bf16.mxu0 0
        %2242 = vmatpush2.bf16.msra.mxu0 0
        %2243 = vmatprep.mubr.bf16.mxu0 0
        %2244 = vmatmul.mubr.bf16.gmra.mxu0 %v2037
        %v2245 = vpop.f32.mrf.mxu0
        %v2246 = vadd.f32 0.0, %v2245
        %v2247 = vpop.f32.mrf.mxu0
        %v2248 = vpop.f32.mrf.mxu0
        %v2249 = vadd.f32 0.0, %v2248
        %v2250 = vpop.f32.mrf.mxu0
        %2251 = vdwg.mxu0
        %s2252 = scalar_lea.vmem [#allocation17], 128
        %v2253 = vld [vmem:[%s2252] sm:$0xf]
        %v2254 = vld [vmem:[%s2252 + $0x4] sm:$0xf]
        %v2255 = vld [vmem:[%s2252 + $0x8] sm:$0xf]
        %v2256 = vld [vmem:[%s2252 + $0xc] sm:$0xf]
        %v2257 = vld [vmem:[%s2252 + $0x10] sm:$0xf]
        %v2258 = vld [vmem:[%s2252 + $0x14] sm:$0xf]
        %v2259 = vld [vmem:[%s2252 + $0x18] sm:$0xf]
        %v2260 = vld [vmem:[%s2252 + $0x1c] sm:$0xf]
        %v2261 = vld [vmem:[%s2252 + $0x20] sm:$0xf]
        %v2262 = vld [vmem:[%s2252 + $0x24] sm:$0xf]
        %v2263 = vld [vmem:[%s2252 + $0x28] sm:$0xf]
        %v2264 = vld [vmem:[%s2252 + $0x2c] sm:$0xf]
        %v2265 = vld [vmem:[%s2252 + $0x30] sm:$0xf]
        %v2266 = vld [vmem:[%s2252 + $0x34] sm:$0xf]
        %v2267 = vld [vmem:[%s2252 + $0x38] sm:$0xf]
        %v2268 = vld [vmem:[%s2252 + $0x3c] sm:$0xf]
        %v2285 = vunpack.c.l.b16 %v2253
        %v2286 = vunpack.c.l.b16 %v2254
        %v2287 = vunpack.c.l.b16 %v2255
        %v2288 = vunpack.c.l.b16 %v2256
        %v2289 = vunpack.c.l.b16 %v2257
        %v2290 = vunpack.c.l.b16 %v2258
        %v2291 = vunpack.c.l.b16 %v2259
        %v2292 = vunpack.c.l.b16 %v2260
        %v2293 = vunpack.c.l.b16 %v2261
        %v2294 = vunpack.c.l.b16 %v2262
        %v2295 = vunpack.c.l.b16 %v2263
        %v2296 = vunpack.c.l.b16 %v2264
        %v2297 = vunpack.c.l.b16 %v2265
        %v2298 = vunpack.c.l.b16 %v2266
        %v2299 = vunpack.c.l.b16 %v2267
        %v2300 = vunpack.c.l.b16 %v2268
        %v2301 = vpack.c.b16 %v2286, %v2285
        %v2302 = vpack.c.b16 %v2288, %v2287
        %v2303 = vpack.c.b16 %v2290, %v2289
        %v2304 = vpack.c.b16 %v2292, %v2291
        %v2305 = vpack.c.b16 %v2294, %v2293
        %v2306 = vpack.c.b16 %v2296, %v2295
        %v2307 = vpack.c.b16 %v2298, %v2297
        %v2308 = vpack.c.b16 %v2300, %v2299
        %2317 = vmatprep.subr.bf16.mxu0 0
        %2318 = vmatpush1.bf16.msra.mxu0 %v2308
        %2319 = vmatprep.subr.bf16.mxu0 0
        %2320 = vmatpush1.bf16.msra.mxu0 %v2307
        %2321 = vmatprep.subr.bf16.mxu0 0
        %2322 = vmatpush1.bf16.msra.mxu0 %v2306
        %2323 = vmatprep.subr.bf16.mxu0 0
        %2324 = vmatpush1.bf16.msra.mxu0 %v2305
        %2325 = vmatprep.subr.bf16.mxu0 0
        %2326 = vmatpush1.bf16.msra.mxu0 %v2304
        %2327 = vmatprep.subr.bf16.mxu0 0
        %2328 = vmatpush1.bf16.msra.mxu0 %v2303
        %2329 = vmatprep.subr.bf16.mxu0 0
        %2330 = vmatpush1.bf16.msra.mxu0 %v2302
        %2331 = vmatprep.subr.bf16.mxu0 0
        %2332 = vmatpush1.bf16.msra.mxu0 %v2301
        %2333 = vmatprep.subr.bf16.mxu0 0
        %2334 = vmatpush2.bf16.msra.mxu0 0
        %2335 = vmatprep.subr.bf16.mxu0 0
        %2336 = vmatpush2.bf16.msra.mxu0 0
        %2337 = vmatprep.subr.bf16.mxu0 0
        %2338 = vmatpush2.bf16.msra.mxu0 0
        %2339 = vmatprep.subr.bf16.mxu0 0
        %2340 = vmatpush2.bf16.msra.mxu0 0
        %2341 = vmatprep.subr.bf16.mxu0 0
        %2342 = vmatpush2.bf16.msra.mxu0 0
        %2343 = vmatprep.subr.bf16.mxu0 0
        %2344 = vmatpush2.bf16.msra.mxu0 0
        %2345 = vmatprep.subr.bf16.mxu0 0
        %2346 = vmatpush2.bf16.msra.mxu0 0
        %2347 = vmatprep.subr.bf16.mxu0 0
        %2348 = vmatpush2.bf16.msra.mxu0 0
        %2349 = vmatprep.mubr.bf16.mxu0 0
        %2350 = vmatmul.mubr.bf16.gmra.mxu0 %v2040
        %v2351 = vpop.f32.mrf.mxu0
        %v2352 = vadd.f32 0.0, %v2351
        %v2353 = vpop.f32.mrf.mxu0
        %v2354 = vpop.f32.mrf.mxu0
        %v2355 = vadd.f32 0.0, %v2354
        %v2356 = vpop.f32.mrf.mxu0
        %2357 = vdwg.mxu0
        %v2358 = vsub.f32 %v2140, %v2246
        %v2359 = vsub.f32 %v2143, %v2249
        %v2360 = vsub.f32 %v2352, %v2140
        %v2361 = vsub.f32 %v2355, %v2143
        %v2362 = vsub.f32 %v2360, %v2246
        %v2363 = vsub.f32 %v2361, %v2249
        %v2364 = vld [vmem:[%s524] sm:$0xff]
        %v2365 = vld [vmem:[%s524 + $0x8] sm:$0xff]
        %s2366 = scalar_lea.vmem %s524, 16 [#allocation8]
        %v2367 = vld [vmem:[%s2366] sm:$0xff]
        %v2368 = vld [vmem:[%s2366 + $0x8] sm:$0xff]
        %v2369 = vmul.f32 %v2358, %v2364
        %v2370 = vmul.f32 %v2359, %v2365
        %v2371 = vmul.f32 %v2362, %v2367
        %v2372 = vmul.f32 %v2363, %v2368
        %v2373 = vsub.f32 %v2369, %v2371
        %v2374 = vsub.f32 %v2370, %v2372
        %v2375 = vmul.f32 %v2358, %v2367
        %v2376 = vmul.f32 %v2359, %v2368
        %v2377 = vmul.f32 %v2362, %v2364
        %v2378 = vmul.f32 %v2363, %v2365
        %v2379 = vadd.f32 %v2375, %v2377
        %v2380 = vadd.f32 %v2376, %v2378
        %2381 = vst [vmem:[%s599] sm:$0xff] %v2373
        %2382 = vst [vmem:[%s599 + $0x8] sm:$0xff] %v2374
        %s2383 = scalar_lea.vmem %s599, 16 [#allocation19]
        %2384 = vst [vmem:[%s2383] sm:$0xff] %v2379
        %2385 = vst [vmem:[%s2383 + $0x8] sm:$0xff] %v2380
        %s2386 = sand.u32 %s290, 1
        %s2387 = scalar_lea.sflag [#allocation4], %s2386
        %s2388 = sand.u32 %s290, 1
        %s2389 = smul.addr %s2388, 32
        %s2390 = scalar_lea.vmem [#allocation19], %s2389
        // Predicated region
        $region101: #{tpu_custom_call.1} parent=59 // pred_check
          %p2391 = pneg %p300
        $region102: #{tpu_custom_call.1} parent=59 // pred_check_branch
          %2393 = sbr.rel (%p2391) target = $region104
        $region103: #{tpu_custom_call.1} parent=59 // pred_region
          %s2395 = ssub.s32 512, 512
          %2396 = vsyncadd %s2387, %s2395
          %s2397 = smul.addr %s40, 4
          %s2398 = smul.addr %s41, 12
          %s2399 = sadd.s32 %s2397, %s2398
          %s2400 = smul.addr %s2399, 128
          %s2401 = scalar_lea.hbm %s10, %s2400
          %s2402 = sshll.u32 %s2390, 4
          %s2403 = int_to_ptr.vmem [resolvable:$true] %s2402
          %2408 = dma.vmem_to_hbm [thread:$0]  %s2403, 512, %s2401, %s2387, 128, 128, 8
        $region104: #{tpu_custom_call.1} parent=59 // pred_fallthru
          _
      $region60: #{tpu_custom_call.1} parent=5 // pred_fallthru
        _
      %p2409 = scmp.le.s32.totalorder 2, %s31
      // Predicated region
      $region105: #{tpu_custom_call.1} parent=5 // pred_check
        %p2410 = pneg %p2409
      $region106: #{tpu_custom_call.1} parent=5 // pred_check_branch
        %2412 = sbr.rel (%p2410) target = $region108
      $region107: #{tpu_custom_call.1} parent=5 // pred_region
        %s2413 = ssub.s32 %s31, 2
        // Predicated region
        $region109: #{tpu_custom_call.1} parent=107 // pred_check
          %p2414 = pneg %p306
        $region110: #{tpu_custom_call.1} parent=107 // pred_check_branch
          %2416 = sbr.rel (%p2414) target = $region112
        $region111: #{tpu_custom_call.1} parent=107 // pred_region
          %s2417 = sand.u32 %s291, 1
          %s2418 = scalar_lea.sflag [#allocation4], %s2417
          %s2419 = sand.u32 %s291, 1
          %s2420 = smul.addr %s2419, 32
          %s2421 = scalar_lea.vmem [#allocation19], %s2420
          %2422 = dma.done %s2418, 512
        $region112: #{tpu_custom_call.1} parent=107 // pred_fallthru
          _
      $region108: #{tpu_custom_call.1} parent=5 // pred_fallthru
        _
    $region6: #{tpu_custom_call.1} parent=1 // loop_footer
      %s35 = sadd.s32 1, %s31
    $region7: #{tpu_custom_call.1} parent=1 // loop_footer_branch
      %30 = sbr.rel target = $region3
    $region8: #{tpu_custom_call.1} parent=1 // loop_exit
      _
    %2423 = vsyncpa [#allocation3], 1
    %s2424 = scalar_lea.sflag [#allocation3], 1
    %2425 = vsyncpa %s2424, 1
    %2426 = vsyncpa [#allocation6], 1
    %s2427 = scalar_lea.sflag [#allocation6], 1
    %2428 = vsyncpa %s2427, 1
    %2429 = vsyncpa [#allocation9], 1
    %s2430 = scalar_lea.sflag [#allocation9], 1
    %2431 = vsyncpa %s2430, 1
    %2432 = vsyncpa [#allocation12], 1
    %2433 = vsyncpa [#allocation15], 1
    %2434 = vsyncpa [#allocation18], 1
    %2435 = vsyncpa [#allocation4], 1
    %s2436 = scalar_lea.sflag [#allocation4], 1
    %2437 = vsyncpa %s2436, 1

</llo_original>
